<compile_context>
chip_gen: v6e
topology: v6e:2x2x1
jax: 0.10.0
libtpu: 0.0.40
codegen_flags: <defaults>
</compile_context>

<pallas_src>
import jax
import jax.numpy as jnp
import numpy as np
from jax.experimental import pallas as pl
from jax.experimental.pallas import tpu as pltpu

# ---------------- small, deterministic configuration ----------------
CFG_PARAMETER_NET = dict(input_dim=2, units=32, nlayers=2, latent_dim=8,
                         activation="tanh", use_resblock=False)
CFG_SHAPE_NET = dict(input_dim=2, units=32, nlayers=2, output_dim=1,
                     activation="tanh")

P_IN = CFG_PARAMETER_NET["input_dim"]
U = CFG_PARAMETER_NET["units"]
NL_P = CFG_PARAMETER_NET["nlayers"]
LAT = CFG_PARAMETER_NET["latent_dim"]
S_IN = CFG_SHAPE_NET["input_dim"]
SU = CFG_SHAPE_NET["units"]
SN = CFG_SHAPE_NET["nlayers"]
SO = CFG_SHAPE_NET["output_dim"]


def get_weights_dim(cfg):
    return (cfg["input_dim"] * cfg["units"]
            + cfg["nlayers"] * cfg["units"] ** 2
            + cfg["output_dim"] * cfg["units"])


def get_biases_dim(cfg):
    return (cfg["nlayers"] + 1) * cfg["units"] + cfg["output_dim"]


WEIGHTS_DIM = get_weights_dim(CFG_SHAPE_NET)                 # 2144
BIASES_DIM = get_biases_dim(CFG_SHAPE_NET)                   # 97
P_OUT = WEIGHTS_DIM + BIASES_DIM                             # 2241
WF_OUT = S_IN * SU + SN * SU * SU                            # 2112 (output-layer w offset)

# Shrunk per-sample slab layout (rows): first-layer W | output-layer W | biases
FLW_OFF = 0
OUTW_OFF = S_IN * SU                                         # 64
BIAS_OFF = OUTW_OFF + SO * SU                                # 96 (8-aligned)
P_SMALL = BIAS_OFF + BIASES_DIM                              # 193
P_SMALL_PAD = ((P_SMALL + 7) // 8) * 8                       # 200
GSZ = (LAT + 1) * SU                                         # 288


def shape_layer_plan(cfg):
    """Static bookkeeping mirroring NIF._build_shape_net slicing offsets.

    Entries: (w_from, w_to, b_from, b_to, d_in, d_out, use_activation).
    The final layer's bias offset (sn*su) is copied verbatim from the spec.
    """
    si, su, sn, so = cfg["input_dim"], cfg["units"], cfg["nlayers"], cfg["output_dim"]
    plan = [(0, si * su, 0, su, si, su, True)]
    for i in range(sn):
        wf = si * su + i * su * su
        plan.append((wf, wf + su * su, (i + 1) * su, (i + 2) * su, su, su, True))
    wf = si * su + sn * su * su
    plan.append((wf, wf + so * su, sn * su, sn * su + so, su, so, False))
    return tuple(plan)


SHAPE_PLAN = shape_layer_plan(CFG_SHAPE_NET)


# ------------------------------ kernel ------------------------------
def nif_kernel(xp_ref, xs_ref, w1t_ref, b1t_ref, wsct_ref, bsct_ref,
               wbnt_ref, bbnt_ref, pw_ref, pb_ref, wp_ref, o_ref):
    # All tensors are transposed: (features, batch_tile). Batch is on lanes.
    xpT = xp_ref[...]                     # (P_IN, bt)
    xsT = xs_ref[...]                     # (S_IN, bt)

    # ---- parameter net, first layer on the VPU (K=2 is too small for MXU) ----
    w1t = w1t_ref[...]                    # (U, P_IN)
    acc = w1t[:, 0:1] * xpT[0:1, :]
    for k in range(1, P_IN):
        acc = acc + w1t[:, k:k + 1] * xpT[k:k + 1, :]
    h = jnp.tanh(acc + b1t_ref[...])                          # (U, bt)

    # ---- Shortcut blocks: h = h + tanh(W h + b), K=32 MXU matmuls ----
    for l in range(NL_P):
        h = h + jnp.tanh(jnp.dot(wsct_ref[l], h,
                                 preferred_element_type=jnp.float32)
                         + bsct_ref[l])

    # ---- bottleneck ----
    z = jnp.tanh(jnp.dot(wbnt_ref[...], h,
                         preferred_element_type=jnp.float32)
                 + bbnt_ref[...])                             # (LAT, bt)

    # ---- per-sample parameters that MUST be materialized explicitly:
    #      first shape layer W (64 rows) | output layer W (32) | biases (97)
    #      single small MXU pass; parameter-net output bias folded as column.
    p_small = (jnp.dot(pw_ref[...], z, preferred_element_type=jnp.float32)
               + pb_ref[...])                                 # (P_SMALL_PAD, bt)

    # ---- shape net layer 0 (d_in = S_IN = 2, per-sample weights) ----
    acc = p_small[BIAS_OFF:BIAS_OFF + SU, :]
    for i in range(S_IN):
        acc = acc + (xsT[i:i + 1, :]
                     * p_small[FLW_OFF + i * SU:FLW_OFF + (i + 1) * SU, :])
    cur = jnp.tanh(acc)                                       # (SU, bt)

    # ---- hidden layers: rank-(LAT+1) factorization on the MXU ----
    #   G[r*SU+o, b] = sum_i W'_l[r*SU+o, i] * cur[i, b]
    #   next[o, b]   = bias[o, b] + sum_{r<LAT} z[r, b] * G[r*SU+o, b]
    #                  + G[LAT*SU+o, b]            (parameter-net bias term)
    for l in range(SN):
        G = jnp.dot(wp_ref[l], cur, preferred_element_type=jnp.float32)  # (GSZ, bt)
        acc = (p_small[BIAS_OFF + (l + 1) * SU:BIAS_OFF + (l + 2) * SU, :]
               + G[LAT * SU:(LAT + 1) * SU, :])
        for r in range(LAT):
            acc = acc + z[r:r + 1, :] * G[r * SU:(r + 1) * SU, :]
        cur = jnp.tanh(acc)

    # ---- output layer (d_out = SO = 1; bias offset SN*SU verbatim from spec) ----
    out = (jnp.sum(cur * p_small[OUTW_OFF:OUTW_OFF + SU, :],
                   axis=0, keepdims=True)
           + p_small[BIAS_OFF + SN * SU:BIAS_OFF + SN * SU + SO, :])
    o_ref[...] = out.astype(o_ref.dtype)                      # (SO, bt), lane-dense


# ------------------------------ wrapper ------------------------------
def nif_forward(x, weights, *, bt=512):
    B, F = x.shape
    assert F == P_IN + S_IN
    w1, b1, wsc, bsc, wbn, bbn, wout, bout = weights

    # Pad batch to a multiple of the tile so no rows are dropped.
    B_pad = pl.cdiv(B, bt) * bt
    if B_pad != B:
        x = jnp.pad(x, ((0, B_pad - B), (0, 0)))

    # Split + transpose inputs (wrapper-side layout plumbing).
    xpT = x[:, :P_IN].T                                       # (P_IN, B_pad)
    xsT = x[:, P_IN:].T                                       # (S_IN, B_pad)

    # Pre-transpose parameter-net weights (batch-on-lanes compute).
    w1t = w1.T                                                # (U, P_IN)
    b1t = b1.reshape(U, 1)
    wsct = jnp.swapaxes(wsc, 1, 2)                            # (NL_P, U, U)
    bsct = jnp.swapaxes(bsc, 1, 2)                            # (NL_P, U, 1)
    wbnt = wbn.T                                              # (LAT, U)
    bbnt = bbn.reshape(LAT, 1)

    # Shrunk per-sample slab: only rows that truly need per-sample values.
    sel = np.concatenate([np.arange(0, S_IN * SU),
                          np.arange(WF_OUT, WF_OUT + SO * SU),
                          np.arange(WEIGHTS_DIM, WEIGHTS_DIM + BIASES_DIM)])
    pw = jnp.pad(wout[:, sel].T,
                 ((0, P_SMALL_PAD - P_SMALL), (0, 0)))        # (P_SMALL_PAD, LAT)
    pb = jnp.pad(bout[0, sel].reshape(P_SMALL, 1),
                 ((0, P_SMALL_PAD - P_SMALL), (0, 0)))        # (P_SMALL_PAD, 1)

    # Factorized hidden-layer weights: W'_l[r*SU+o, i] = wout_full[r, wf+i*SU+o]
    wout_full = jnp.concatenate([wout, bout], axis=0)         # (LAT+1, P_OUT)
    wps = []
    for l in range(SN):
        wf = S_IN * SU + l * SU * SU
        blk = wout_full[:, wf:wf + SU * SU].reshape(LAT + 1, SU, SU)   # [r, i, o]
        wps.append(jnp.transpose(blk, (0, 2, 1)).reshape(GSZ, SU))     # [r*SU+o, i]
    wp = jnp.stack(wps, axis=0)                               # (SN, GSZ, SU)

    def full(shape):
        nd = len(shape)
        return pl.BlockSpec(shape, lambda i, _nd=nd: (0,) * _nd)

    # Advisory cost hint for XLA scheduling.
    flops = 2 * B_pad * (P_IN * U + NL_P * U * U + U * LAT
                         + P_SMALL_PAD * LAT + S_IN * SU
                         + SN * (GSZ * SU + (LAT + 1) * SU) + SU * SO)
    transc = B_pad * (U + NL_P * U + LAT + SU + SN * SU)
    weight_elems = sum(int(np.prod(a.shape)) for a in
                       (w1t, b1t, wsct, bsct, wbnt, bbnt, pw, pb, wp))
    bytes_accessed = 4 * (B_pad * (P_IN + S_IN + SO) + weight_elems)
    cost = pl.CostEstimate(flops=int(flops), transcendentals=int(transc),
                           bytes_accessed=int(bytes_accessed))

    outT = pl.pallas_call(
        nif_kernel,
        out_shape=jax.ShapeDtypeStruct((SO, B_pad), jnp.float32),
        grid_spec=pltpu.PrefetchScalarGridSpec(
            num_scalar_prefetch=0,
            grid=(B_pad // bt,),
            in_specs=[
                pl.BlockSpec((P_IN, bt), lambda i: (0, i)),   # xpT, tiled on lanes
                pl.BlockSpec((S_IN, bt), lambda i: (0, i)),   # xsT
                full(w1t.shape), full(b1t.shape),
                full(wsct.shape), full(bsct.shape),
                full(wbnt.shape), full(bbnt.shape),
                full(pw.shape), full(pb.shape), full(wp.shape),
            ],
            out_specs=pl.BlockSpec((SO, bt), lambda i: (0, i)),
        ),
        compiler_params=pltpu.CompilerParams(
            dimension_semantics=("parallel",),
            vmem_limit_bytes=32 * 1024 * 1024),
        cost_estimate=cost,
    )(xpT, xsT, w1t, b1t, wsct, bsct, wbnt, bbnt, pw, pb, wp)

    return outT[:, :B].T                                      # (B, SO)


# --------------------------- pure-JAX reference ---------------------------
def nif_reference(x, weights):
    w1, b1, wsc, bsc, wbn, bbn, wout, bout = weights
    hp = jax.lax.Precision.HIGHEST
    xp, xs = x[:, :P_IN], x[:, P_IN:]
    h = jnp.tanh(jnp.dot(xp, w1, precision=hp) + b1)
    for l in range(NL_P):
        h = h + jnp.tanh(jnp.dot(h, wsc[l], precision=hp) + bsc[l])
    z = jnp.tanh(jnp.dot(h, wbn, precision=hp) + bbn)
    params = jnp.dot(z, wout, precision=hp) + bout
    cur = xs
    for (wf, wt, bf, bto, d_in, d_out, use_act) in SHAPE_PLAN:
        w = params[:, wf:wt].reshape(-1, d_in, d_out)
        b = params[:, WEIGHTS_DIM + bf:WEIGHTS_DIM + bto]
        cur = jnp.einsum("bi,bio->bo", cur, w, precision=hp) + b
        if use_act:
            cur = jnp.tanh(cur)
    return cur


# --------------------------- deterministic init ---------------------------
def init_weights(key):
    ks = jax.random.split(key, 8)

    def tn(k, shape, std=0.1):   # trunc_normal_(std=0.1), truncated at +-2*std
        return std * jax.random.truncated_normal(k, -2.0, 2.0, shape, jnp.float32)

    w1 = tn(ks[0], (P_IN, U))
    b1 = tn(ks[1], (1, U))
    wsc = tn(ks[2], (NL_P, U, U))
    bsc = tn(ks[3], (NL_P, 1, U))
    wbn = tn(ks[4], (U, LAT))
    bbn = tn(ks[5], (1, LAT))
    wout = tn(ks[6], (LAT, P_OUT))
    bout = tn(ks[7], (1, P_OUT))
    return (w1, b1, wsc, bsc, wbn, bbn, wout, bout)


if __name__ == "__main__":
    key = jax.random.PRNGKey(0)
    kw, kx = jax.random.split(key)
    weights = init_weights(kw)

    batch = 600          # NOT a multiple of the 512 batch tile -> tests padding
    total_in = P_IN + S_IN
    x = jax.random.normal(kx, (batch, total_in), dtype=jnp.float32)

    out = jax.block_until_ready(nif_forward(x, weights))
    ref = jax.block_until_ready(nif_reference(x, weights))

    assert out.shape == (batch, SO)
    np.testing.assert_allclose(np.asarray(out), np.asarray(ref),
                               rtol=2e-3, atol=2e-3)
    print("KERNEL_OK")
</pallas_src>

<mosaic_0001>
module attributes {stable_mosaic.version = 11 : i64} {
  func.func @nif_kernel(%arg0: i32, %arg1: memref<2x512xf32, #tpu.memory_space<vmem>>, %arg2: memref<2x512xf32, #tpu.memory_space<vmem>>, %arg3: memref<32x2xf32, #tpu.memory_space<vmem>>, %arg4: memref<32x1xf32, #tpu.memory_space<vmem>>, %arg5: memref<2x32x32xf32, #tpu.memory_space<vmem>>, %arg6: memref<2x32x1xf32, #tpu.memory_space<vmem>>, %arg7: memref<8x32xf32, #tpu.memory_space<vmem>>, %arg8: memref<8x1xf32, #tpu.memory_space<vmem>>, %arg9: memref<200x8xf32, #tpu.memory_space<vmem>>, %arg10: memref<200x1xf32, #tpu.memory_space<vmem>>, %arg11: memref<2x288x32xf32, #tpu.memory_space<vmem>>, %arg12: memref<1x512xf32, #tpu.memory_space<vmem>>) attributes {dimension_semantics = [#tpu.dimension_semantics<parallel>], iteration_bounds = array<i64: 2>, scalar_prefetch = 0 : i64, scratch_operands = 0 : i64, tpu.core_type = #tpu.core_type<tc>, window_params = [{transform_indices = @transform_0, window_bounds = array<i64: 2, 512>}, {transform_indices = @transform_1, window_bounds = array<i64: 2, 512>}, {pipeline_mode = #tpu.pipeline_mode<synchronous>, transform_indices = @transform_2, window_bounds = array<i64: 32, 2>}, {pipeline_mode = #tpu.pipeline_mode<synchronous>, transform_indices = @transform_3, window_bounds = array<i64: 32, 1>}, {pipeline_mode = #tpu.pipeline_mode<synchronous>, transform_indices = @transform_4, window_bounds = array<i64: 2, 32, 32>}, {pipeline_mode = #tpu.pipeline_mode<synchronous>, transform_indices = @transform_5, window_bounds = array<i64: 2, 32, 1>}, {pipeline_mode = #tpu.pipeline_mode<synchronous>, transform_indices = @transform_6, window_bounds = array<i64: 8, 32>}, {pipeline_mode = #tpu.pipeline_mode<synchronous>, transform_indices = @transform_7, window_bounds = array<i64: 8, 1>}, {pipeline_mode = #tpu.pipeline_mode<synchronous>, transform_indices = @transform_8, window_bounds = array<i64: 200, 8>}, {pipeline_mode = #tpu.pipeline_mode<synchronous>, transform_indices = @transform_9, window_bounds = array<i64: 200, 1>}, {pipeline_mode = #tpu.pipeline_mode<synchronous>, transform_indices = @transform_10, window_bounds = array<i64: 2, 288, 32>}, {transform_indices = @transform_11, window_bounds = array<i64: 1, 512>}]} {
    %c0 = arith.constant 0 : index
    %c0_0 = arith.constant 0 : index
    %0 = vector.load %arg1[%c0, %c0_0] : memref<2x512xf32, #tpu.memory_space<vmem>>, vector<2x512xf32>
    %c0_1 = arith.constant 0 : index
    %c0_2 = arith.constant 0 : index
    %1 = vector.load %arg2[%c0_1, %c0_2] : memref<2x512xf32, #tpu.memory_space<vmem>>, vector<2x512xf32>
    %c0_3 = arith.constant 0 : index
    %c0_4 = arith.constant 0 : index
    %2 = vector.load %arg3[%c0_3, %c0_4] : memref<32x2xf32, #tpu.memory_space<vmem>>, vector<32x2xf32>
    %3 = vector.extract_strided_slice %2 {offsets = [0, 0], sizes = [32, 1], strides = [1, 1]} : vector<32x2xf32> to vector<32x1xf32>
    %4 = vector.extract_strided_slice %0 {offsets = [0, 0], sizes = [1, 512], strides = [1, 1]} : vector<2x512xf32> to vector<1x512xf32>
    %5 = vector.broadcast %3 : vector<32x1xf32> to vector<32x512xf32>
    %6 = vector.broadcast %4 : vector<1x512xf32> to vector<32x512xf32>
    %7 = arith.mulf %5, %6 : vector<32x512xf32>
    %8 = vector.extract_strided_slice %2 {offsets = [0, 1], sizes = [32, 1], strides = [1, 1]} : vector<32x2xf32> to vector<32x1xf32>
    %9 = vector.extract_strided_slice %0 {offsets = [1, 0], sizes = [1, 512], strides = [1, 1]} : vector<2x512xf32> to vector<1x512xf32>
    %10 = vector.broadcast %8 : vector<32x1xf32> to vector<32x512xf32>
    %11 = vector.broadcast %9 : vector<1x512xf32> to vector<32x512xf32>
    %12 = arith.mulf %10, %11 : vector<32x512xf32>
    %13 = arith.addf %7, %12 : vector<32x512xf32>
    %c0_5 = arith.constant 0 : index
    %c0_6 = arith.constant 0 : index
    %14 = vector.load %arg4[%c0_5, %c0_6] : memref<32x1xf32, #tpu.memory_space<vmem>>, vector<32x1xf32>
    %15 = vector.broadcast %14 : vector<32x1xf32> to vector<32x512xf32>
    %16 = arith.addf %13, %15 : vector<32x512xf32>
    %17 = math.tanh %16 : vector<32x512xf32>
    %c0_7 = arith.constant 0 : index
    %c0_8 = arith.constant 0 : index
    %c0_9 = arith.constant 0 : index
    %18 = vector.load %arg5[%c0_7, %c0_8, %c0_9] : memref<2x32x32xf32, #tpu.memory_space<vmem>>, vector<1x32x32xf32>
    %19 = vector.shape_cast %18 : vector<1x32x32xf32> to vector<32x32xf32>
    %cst = arith.constant dense<0.000000e+00> : vector<32x512xf32>
    %20 = tpu.matmul %19, %17, %cst {dimension_numbers = #tpu.dot_dimension_numbers<[1], [0], [0], [1], [0, 0, 1, 1], [], []>} : vector<32x32xf32>, vector<32x512xf32>, vector<32x512xf32> -> vector<32x512xf32>
    %c0_10 = arith.constant 0 : index
    %c0_11 = arith.constant 0 : index
    %c0_12 = arith.constant 0 : index
    %21 = vector.load %arg6[%c0_10, %c0_11, %c0_12] : memref<2x32x1xf32, #tpu.memory_space<vmem>>, vector<1x32x1xf32>
    %22 = vector.shape_cast %21 : vector<1x32x1xf32> to vector<32x1xf32>
    %23 = vector.broadcast %22 : vector<32x1xf32> to vector<32x512xf32>
    %24 = arith.addf %20, %23 : vector<32x512xf32>
    %25 = math.tanh %24 : vector<32x512xf32>
    %26 = arith.addf %17, %25 : vector<32x512xf32>
    %c1 = arith.constant 1 : index
    %c0_13 = arith.constant 0 : index
    %c0_14 = arith.constant 0 : index
    %27 = vector.load %arg5[%c1, %c0_13, %c0_14] : memref<2x32x32xf32, #tpu.memory_space<vmem>>, vector<1x32x32xf32>
    %28 = vector.shape_cast %27 : vector<1x32x32xf32> to vector<32x32xf32>
    %cst_15 = arith.constant dense<0.000000e+00> : vector<32x512xf32>
    %29 = tpu.matmul %28, %26, %cst_15 {dimension_numbers = #tpu.dot_dimension_numbers<[1], [0], [0], [1], [0, 0, 1, 1], [], []>} : vector<32x32xf32>, vector<32x512xf32>, vector<32x512xf32> -> vector<32x512xf32>
    %c1_16 = arith.constant 1 : index
    %c0_17 = arith.constant 0 : index
    %c0_18 = arith.constant 0 : index
    %30 = vector.load %arg6[%c1_16, %c0_17, %c0_18] : memref<2x32x1xf32, #tpu.memory_space<vmem>>, vector<1x32x1xf32>
    %31 = vector.shape_cast %30 : vector<1x32x1xf32> to vector<32x1xf32>
    %32 = vector.broadcast %31 : vector<32x1xf32> to vector<32x512xf32>
    %33 = arith.addf %29, %32 : vector<32x512xf32>
    %34 = math.tanh %33 : vector<32x512xf32>
    %35 = arith.addf %26, %34 : vector<32x512xf32>
    %c0_19 = arith.constant 0 : index
    %c0_20 = arith.constant 0 : index
    %36 = vector.load %arg7[%c0_19, %c0_20] : memref<8x32xf32, #tpu.memory_space<vmem>>, vector<8x32xf32>
    %cst_21 = arith.constant dense<0.000000e+00> : vector<8x512xf32>
    %37 = tpu.matmul %36, %35, %cst_21 {dimension_numbers = #tpu.dot_dimension_numbers<[1], [0], [0], [1], [0, 0, 1, 1], [], []>} : vector<8x32xf32>, vector<32x512xf32>, vector<8x512xf32> -> vector<8x512xf32>
    %c0_22 = arith.constant 0 : index
    %c0_23 = arith.constant 0 : index
    %38 = vector.load %arg8[%c0_22, %c0_23] : memref<8x1xf32, #tpu.memory_space<vmem>>, vector<8x1xf32>
    %39 = vector.broadcast %38 : vector<8x1xf32> to vector<8x512xf32>
    %40 = arith.addf %37, %39 : vector<8x512xf32>
    %41 = math.tanh %40 : vector<8x512xf32>
    %c0_24 = arith.constant 0 : index
    %c0_25 = arith.constant 0 : index
    %42 = vector.load %arg9[%c0_24, %c0_25] : memref<200x8xf32, #tpu.memory_space<vmem>>, vector<200x8xf32>
    %cst_26 = arith.constant dense<0.000000e+00> : vector<200x512xf32>
    %43 = tpu.matmul %42, %41, %cst_26 {dimension_numbers = #tpu.dot_dimension_numbers<[1], [0], [0], [1], [0, 0, 1, 1], [], []>} : vector<200x8xf32>, vector<8x512xf32>, vector<200x512xf32> -> vector<200x512xf32>
    %c0_27 = arith.constant 0 : index
    %c0_28 = arith.constant 0 : index
    %44 = vector.load %arg10[%c0_27, %c0_28] : memref<200x1xf32, #tpu.memory_space<vmem>>, vector<200x1xf32>
    %45 = vector.broadcast %44 : vector<200x1xf32> to vector<200x512xf32>
    %46 = arith.addf %43, %45 : vector<200x512xf32>
    %47 = vector.extract_strided_slice %46 {offsets = [96, 0], sizes = [32, 512], strides = [1, 1]} : vector<200x512xf32> to vector<32x512xf32>
    %48 = vector.extract_strided_slice %1 {offsets = [0, 0], sizes = [1, 512], strides = [1, 1]} : vector<2x512xf32> to vector<1x512xf32>
    %49 = vector.extract_strided_slice %46 {offsets = [0, 0], sizes = [32, 512], strides = [1, 1]} : vector<200x512xf32> to vector<32x512xf32>
    %50 = vector.broadcast %48 : vector<1x512xf32> to vector<32x512xf32>
    %51 = arith.mulf %50, %49 : vector<32x512xf32>
    %52 = arith.addf %47, %51 : vector<32x512xf32>
    %53 = vector.extract_strided_slice %1 {offsets = [1, 0], sizes = [1, 512], strides = [1, 1]} : vector<2x512xf32> to vector<1x512xf32>
    %54 = vector.extract_strided_slice %46 {offsets = [32, 0], sizes = [32, 512], strides = [1, 1]} : vector<200x512xf32> to vector<32x512xf32>
    %55 = vector.broadcast %53 : vector<1x512xf32> to vector<32x512xf32>
    %56 = arith.mulf %55, %54 : vector<32x512xf32>
    %57 = arith.addf %52, %56 : vector<32x512xf32>
    %58 = math.tanh %57 : vector<32x512xf32>
    %c0_29 = arith.constant 0 : index
    %c0_30 = arith.constant 0 : index
    %c0_31 = arith.constant 0 : index
    %59 = vector.load %arg11[%c0_29, %c0_30, %c0_31] : memref<2x288x32xf32, #tpu.memory_space<vmem>>, vector<1x288x32xf32>
    %60 = vector.shape_cast %59 : vector<1x288x32xf32> to vector<288x32xf32>
    %cst_32 = arith.constant dense<0.000000e+00> : vector<288x512xf32>
    %61 = tpu.matmul %60, %58, %cst_32 {dimension_numbers = #tpu.dot_dimension_numbers<[1], [0], [0], [1], [0, 0, 1, 1], [], []>} : vector<288x32xf32>, vector<32x512xf32>, vector<288x512xf32> -> vector<288x512xf32>
    %62 = vector.extract_strided_slice %46 {offsets = [128, 0], sizes = [32, 512], strides = [1, 1]} : vector<200x512xf32> to vector<32x512xf32>
    %63 = vector.extract_strided_slice %61 {offsets = [256, 0], sizes = [32, 512], strides = [1, 1]} : vector<288x512xf32> to vector<32x512xf32>
    %64 = arith.addf %62, %63 : vector<32x512xf32>
    %65 = vector.extract_strided_slice %41 {offsets = [0, 0], sizes = [1, 512], strides = [1, 1]} : vector<8x512xf32> to vector<1x512xf32>
    %66 = vector.extract_strided_slice %61 {offsets = [0, 0], sizes = [32, 512], strides = [1, 1]} : vector<288x512xf32> to vector<32x512xf32>
    %67 = vector.broadcast %65 : vector<1x512xf32> to vector<32x512xf32>
    %68 = arith.mulf %67, %66 : vector<32x512xf32>
    %69 = arith.addf %64, %68 : vector<32x512xf32>
    %70 = vector.extract_strided_slice %41 {offsets = [1, 0], sizes = [1, 512], strides = [1, 1]} : vector<8x512xf32> to vector<1x512xf32>
    %71 = vector.extract_strided_slice %61 {offsets = [32, 0], sizes = [32, 512], strides = [1, 1]} : vector<288x512xf32> to vector<32x512xf32>
    %72 = vector.broadcast %70 : vector<1x512xf32> to vector<32x512xf32>
    %73 = arith.mulf %72, %71 : vector<32x512xf32>
    %74 = arith.addf %69, %73 : vector<32x512xf32>
    %75 = vector.extract_strided_slice %41 {offsets = [2, 0], sizes = [1, 512], strides = [1, 1]} : vector<8x512xf32> to vector<1x512xf32>
    %76 = vector.extract_strided_slice %61 {offsets = [64, 0], sizes = [32, 512], strides = [1, 1]} : vector<288x512xf32> to vector<32x512xf32>
    %77 = vector.broadcast %75 : vector<1x512xf32> to vector<32x512xf32>
    %78 = arith.mulf %77, %76 : vector<32x512xf32>
    %79 = arith.addf %74, %78 : vector<32x512xf32>
    %80 = vector.extract_strided_slice %41 {offsets = [3, 0], sizes = [1, 512], strides = [1, 1]} : vector<8x512xf32> to vector<1x512xf32>
    %81 = vector.extract_strided_slice %61 {offsets = [96, 0], sizes = [32, 512], strides = [1, 1]} : vector<288x512xf32> to vector<32x512xf32>
    %82 = vector.broadcast %80 : vector<1x512xf32> to vector<32x512xf32>
    %83 = arith.mulf %82, %81 : vector<32x512xf32>
    %84 = arith.addf %79, %83 : vector<32x512xf32>
    %85 = vector.extract_strided_slice %41 {offsets = [4, 0], sizes = [1, 512], strides = [1, 1]} : vector<8x512xf32> to vector<1x512xf32>
    %86 = vector.extract_strided_slice %61 {offsets = [128, 0], sizes = [32, 512], strides = [1, 1]} : vector<288x512xf32> to vector<32x512xf32>
    %87 = vector.broadcast %85 : vector<1x512xf32> to vector<32x512xf32>
    %88 = arith.mulf %87, %86 : vector<32x512xf32>
    %89 = arith.addf %84, %88 : vector<32x512xf32>
    %90 = vector.extract_strided_slice %41 {offsets = [5, 0], sizes = [1, 512], strides = [1, 1]} : vector<8x512xf32> to vector<1x512xf32>
    %91 = vector.extract_strided_slice %61 {offsets = [160, 0], sizes = [32, 512], strides = [1, 1]} : vector<288x512xf32> to vector<32x512xf32>
    %92 = vector.broadcast %90 : vector<1x512xf32> to vector<32x512xf32>
    %93 = arith.mulf %92, %91 : vector<32x512xf32>
    %94 = arith.addf %89, %93 : vector<32x512xf32>
    %95 = vector.extract_strided_slice %41 {offsets = [6, 0], sizes = [1, 512], strides = [1, 1]} : vector<8x512xf32> to vector<1x512xf32>
    %96 = vector.extract_strided_slice %61 {offsets = [192, 0], sizes = [32, 512], strides = [1, 1]} : vector<288x512xf32> to vector<32x512xf32>
    %97 = vector.broadcast %95 : vector<1x512xf32> to vector<32x512xf32>
    %98 = arith.mulf %97, %96 : vector<32x512xf32>
    %99 = arith.addf %94, %98 : vector<32x512xf32>
    %100 = vector.extract_strided_slice %41 {offsets = [7, 0], sizes = [1, 512], strides = [1, 1]} : vector<8x512xf32> to vector<1x512xf32>
    %101 = vector.extract_strided_slice %61 {offsets = [224, 0], sizes = [32, 512], strides = [1, 1]} : vector<288x512xf32> to vector<32x512xf32>
    %102 = vector.broadcast %100 : vector<1x512xf32> to vector<32x512xf32>
    %103 = arith.mulf %102, %101 : vector<32x512xf32>
    %104 = arith.addf %99, %103 : vector<32x512xf32>
    %105 = math.tanh %104 : vector<32x512xf32>
    %c1_33 = arith.constant 1 : index
    %c0_34 = arith.constant 0 : index
    %c0_35 = arith.constant 0 : index
    %106 = vector.load %arg11[%c1_33, %c0_34, %c0_35] : memref<2x288x32xf32, #tpu.memory_space<vmem>>, vector<1x288x32xf32>
    %107 = vector.shape_cast %106 : vector<1x288x32xf32> to vector<288x32xf32>
    %cst_36 = arith.constant dense<0.000000e+00> : vector<288x512xf32>
    %108 = tpu.matmul %107, %105, %cst_36 {dimension_numbers = #tpu.dot_dimension_numbers<[1], [0], [0], [1], [0, 0, 1, 1], [], []>} : vector<288x32xf32>, vector<32x512xf32>, vector<288x512xf32> -> vector<288x512xf32>
    %109 = vector.extract_strided_slice %46 {offsets = [160, 0], sizes = [32, 512], strides = [1, 1]} : vector<200x512xf32> to vector<32x512xf32>
    %110 = vector.extract_strided_slice %108 {offsets = [256, 0], sizes = [32, 512], strides = [1, 1]} : vector<288x512xf32> to vector<32x512xf32>
    %111 = arith.addf %109, %110 : vector<32x512xf32>
    %112 = vector.extract_strided_slice %41 {offsets = [0, 0], sizes = [1, 512], strides = [1, 1]} : vector<8x512xf32> to vector<1x512xf32>
    %113 = vector.extract_strided_slice %108 {offsets = [0, 0], sizes = [32, 512], strides = [1, 1]} : vector<288x512xf32> to vector<32x512xf32>
    %114 = vector.broadcast %112 : vector<1x512xf32> to vector<32x512xf32>
    %115 = arith.mulf %114, %113 : vector<32x512xf32>
    %116 = arith.addf %111, %115 : vector<32x512xf32>
    %117 = vector.extract_strided_slice %41 {offsets = [1, 0], sizes = [1, 512], strides = [1, 1]} : vector<8x512xf32> to vector<1x512xf32>
    %118 = vector.extract_strided_slice %108 {offsets = [32, 0], sizes = [32, 512], strides = [1, 1]} : vector<288x512xf32> to vector<32x512xf32>
    %119 = vector.broadcast %117 : vector<1x512xf32> to vector<32x512xf32>
    %120 = arith.mulf %119, %118 : vector<32x512xf32>
    %121 = arith.addf %116, %120 : vector<32x512xf32>
    %122 = vector.extract_strided_slice %41 {offsets = [2, 0], sizes = [1, 512], strides = [1, 1]} : vector<8x512xf32> to vector<1x512xf32>
    %123 = vector.extract_strided_slice %108 {offsets = [64, 0], sizes = [32, 512], strides = [1, 1]} : vector<288x512xf32> to vector<32x512xf32>
    %124 = vector.broadcast %122 : vector<1x512xf32> to vector<32x512xf32>
    %125 = arith.mulf %124, %123 : vector<32x512xf32>
    %126 = arith.addf %121, %125 : vector<32x512xf32>
    %127 = vector.extract_strided_slice %41 {offsets = [3, 0], sizes = [1, 512], strides = [1, 1]} : vector<8x512xf32> to vector<1x512xf32>
    %128 = vector.extract_strided_slice %108 {offsets = [96, 0], sizes = [32, 512], strides = [1, 1]} : vector<288x512xf32> to vector<32x512xf32>
    %129 = vector.broadcast %127 : vector<1x512xf32> to vector<32x512xf32>
    %130 = arith.mulf %129, %128 : vector<32x512xf32>
    %131 = arith.addf %126, %130 : vector<32x512xf32>
    %132 = vector.extract_strided_slice %41 {offsets = [4, 0], sizes = [1, 512], strides = [1, 1]} : vector<8x512xf32> to vector<1x512xf32>
    %133 = vector.extract_strided_slice %108 {offsets = [128, 0], sizes = [32, 512], strides = [1, 1]} : vector<288x512xf32> to vector<32x512xf32>
    %134 = vector.broadcast %132 : vector<1x512xf32> to vector<32x512xf32>
    %135 = arith.mulf %134, %133 : vector<32x512xf32>
    %136 = arith.addf %131, %135 : vector<32x512xf32>
    %137 = vector.extract_strided_slice %41 {offsets = [5, 0], sizes = [1, 512], strides = [1, 1]} : vector<8x512xf32> to vector<1x512xf32>
    %138 = vector.extract_strided_slice %108 {offsets = [160, 0], sizes = [32, 512], strides = [1, 1]} : vector<288x512xf32> to vector<32x512xf32>
    %139 = vector.broadcast %137 : vector<1x512xf32> to vector<32x512xf32>
    %140 = arith.mulf %139, %138 : vector<32x512xf32>
    %141 = arith.addf %136, %140 : vector<32x512xf32>
    %142 = vector.extract_strided_slice %41 {offsets = [6, 0], sizes = [1, 512], strides = [1, 1]} : vector<8x512xf32> to vector<1x512xf32>
    %143 = vector.extract_strided_slice %108 {offsets = [192, 0], sizes = [32, 512], strides = [1, 1]} : vector<288x512xf32> to vector<32x512xf32>
    %144 = vector.broadcast %142 : vector<1x512xf32> to vector<32x512xf32>
    %145 = arith.mulf %144, %143 : vector<32x512xf32>
    %146 = arith.addf %141, %145 : vector<32x512xf32>
    %147 = vector.extract_strided_slice %41 {offsets = [7, 0], sizes = [1, 512], strides = [1, 1]} : vector<8x512xf32> to vector<1x512xf32>
    %148 = vector.extract_strided_slice %108 {offsets = [224, 0], sizes = [32, 512], strides = [1, 1]} : vector<288x512xf32> to vector<32x512xf32>
    %149 = vector.broadcast %147 : vector<1x512xf32> to vector<32x512xf32>
    %150 = arith.mulf %149, %148 : vector<32x512xf32>
    %151 = arith.addf %146, %150 : vector<32x512xf32>
    %152 = math.tanh %151 : vector<32x512xf32>
    %153 = vector.extract_strided_slice %46 {offsets = [64, 0], sizes = [32, 512], strides = [1, 1]} : vector<200x512xf32> to vector<32x512xf32>
    %154 = arith.mulf %152, %153 : vector<32x512xf32>
    %cst_37 = arith.constant dense<0.000000e+00> : vector<512xf32>
    %155 = vector.multi_reduction <add>, %154, %cst_37 [0] : vector<32x512xf32> to vector<512xf32>
    %156 = vector.shape_cast %155 : vector<512xf32> to vector<1x512xf32>
    %157 = vector.extract_strided_slice %46 {offsets = [160, 0], sizes = [1, 512], strides = [1, 1]} : vector<200x512xf32> to vector<1x512xf32>
    %158 = arith.addf %156, %157 : vector<1x512xf32>
    %c0_38 = arith.constant 0 : index
    %c0_39 = arith.constant 0 : index
    %159 = vector.load %arg12[%c0_38, %c0_39] : memref<1x512xf32, #tpu.memory_space<vmem>>, vector<1x512xf32>
    tpu.vector_store %arg12[%c0_38, %c0_39], %158 {strides = array<i32>} : memref<1x512xf32, #tpu.memory_space<vmem>>, vector<1x512xf32>,
    return
  }
  func.func @transform_0(%arg0: i32) -> (i32, i32) {
    %c0_i32 = arith.constant 0 : i32
    %c0_i32_0 = arith.constant 0 : i32
    return %c0_i32, %arg0 : i32, i32
  }
  func.func @transform_1(%arg0: i32) -> (i32, i32) {
    %c0_i32 = arith.constant 0 : i32
    %c0_i32_0 = arith.constant 0 : i32
    return %c0_i32, %arg0 : i32, i32
  }
  func.func @transform_2(%arg0: i32) -> (i32, i32) {
    %c0_i32 = arith.constant 0 : i32
    %c0_i32_0 = arith.constant 0 : i32
    %c0_i32_1 = arith.constant 0 : i32
    return %c0_i32, %c0_i32_0 : i32, i32
  }
  func.func @transform_3(%arg0: i32) -> (i32, i32) {
    %c0_i32 = arith.constant 0 : i32
    %c0_i32_0 = arith.constant 0 : i32
    %c0_i32_1 = arith.constant 0 : i32
    return %c0_i32, %c0_i32_0 : i32, i32
  }
  func.func @transform_4(%arg0: i32) -> (i32, i32, i32) {
    %c0_i32 = arith.constant 0 : i32
    %c0_i32_0 = arith.constant 0 : i32
    %c0_i32_1 = arith.constant 0 : i32
    %c0_i32_2 = arith.constant 0 : i32
    return %c0_i32, %c0_i32_0, %c0_i32_1 : i32, i32, i32
  }
  func.func @transform_5(%arg0: i32) -> (i32, i32, i32) {
    %c0_i32 = arith.constant 0 : i32
    %c0_i32_0 = arith.constant 0 : i32
    %c0_i32_1 = arith.constant 0 : i32
    %c0_i32_2 = arith.constant 0 : i32
    return %c0_i32, %c0_i32_0, %c0_i32_1 : i32, i32, i32
  }
  func.func @transform_6(%arg0: i32) -> (i32, i32) {
    %c0_i32 = arith.constant 0 : i32
    %c0_i32_0 = arith.constant 0 : i32
    %c0_i32_1 = arith.constant 0 : i32
    return %c0_i32, %c0_i32_0 : i32, i32
  }
  func.func @transform_7(%arg0: i32) -> (i32, i32) {
    %c0_i32 = arith.constant 0 : i32
    %c0_i32_0 = arith.constant 0 : i32
    %c0_i32_1 = arith.constant 0 : i32
    return %c0_i32, %c0_i32_0 : i32, i32
  }
  func.func @transform_8(%arg0: i32) -> (i32, i32) {
    %c0_i32 = arith.constant 0 : i32
    %c0_i32_0 = arith.constant 0 : i32
    %c0_i32_1 = arith.constant 0 : i32
    return %c0_i32, %c0_i32_0 : i32, i32
  }
  func.func @transform_9(%arg0: i32) -> (i32, i32) {
    %c0_i32 = arith.constant 0 : i32
    %c0_i32_0 = arith.constant 0 : i32
    %c0_i32_1 = arith.constant 0 : i32
    return %c0_i32, %c0_i32_0 : i32, i32
  }
  func.func @transform_10(%arg0: i32) -> (i32, i32, i32) {
    %c0_i32 = arith.constant 0 : i32
    %c0_i32_0 = arith.constant 0 : i32
    %c0_i32_1 = arith.constant 0 : i32
    %c0_i32_2 = arith.constant 0 : i32
    return %c0_i32, %c0_i32_0, %c0_i32_1 : i32, i32, i32
  }
  func.func @transform_11(%arg0: i32) -> (i32, i32) {
    %c0_i32 = arith.constant 0 : i32
    %c0_i32_0 = arith.constant 0 : i32
    return %c0_i32, %arg0 : i32, i32
  }
}

</mosaic_0001>

<llo_original>
// kernel: tpu_custom_call.1
$region0: #{tpu_custom_call.1}
  #allocation0 [shape = 'u32[]', space=smem, size = 0x4, offset = 0x4, fixed_abs, tag = 'smem constant byte address 0x4 - core index']
  #allocation1 [shape = 'u32[144,128]{1,0:T(1,128)}', space=vmem, size = 0x12000, scoped, tag = 'internal scratch']
  %s0 = inlined_call_operand.vmem [shape: f32[2,1024], index: 0, kind: input, shape index: {}]
  %s1 = inlined_call_operand.vmem [shape: f32[2,1024], index: 1, kind: input, shape index: {}]
  %s2 = inlined_call_operand.vmem [shape: f32[32,2], index: 2, kind: input, shape index: {}]
  %s3 = inlined_call_operand.vmem [shape: f32[32,1], index: 3, kind: input, shape index: {}]
  %s4 = inlined_call_operand.vmem [shape: f32[2,32,32], index: 4, kind: input, shape index: {}]
  %s5 = inlined_call_operand.vmem [shape: f32[2,32,1], index: 5, kind: input, shape index: {}]
  %s6 = inlined_call_operand.vmem [shape: f32[8,32], index: 6, kind: input, shape index: {}]
  %s7 = inlined_call_operand.vmem [shape: f32[8,1], index: 7, kind: input, shape index: {}]
  %s8 = inlined_call_operand.vmem [shape: f32[200,8], index: 8, kind: input, shape index: {}]
  %s9 = inlined_call_operand.vmem [shape: f32[200,1], index: 9, kind: input, shape index: {}]
  %s10 = inlined_call_operand.vmem [shape: f32[2,288,32], index: 10, kind: input, shape index: {}]
  %s11 = inlined_call_operand.hbm [shape: f32[1,1024], index: 11, kind: output, shape index: {}]
  %s12 = sld [smem:[#allocation0]]
  $region77: #{tpu_custom_call.1} parent=0
    _
  %s14 = ssub.s32 1, %s12
  %s15 = scalar_select 0, %s14, %s12
  $region1: #{tpu_custom_call.1} parent=0
    #allocation2 [shape = 'u8[4096]{0}', space=vmem, size = 0x1000, scoped, tag = 'output window, operand 0']
    #allocation3 [shape = 's32[2]{0}', space=sflag, size = 0x8, scoped, tag = 'scoped memory for tpu_custom_call.1']
    %16 = vsyncpa [#allocation3], 0
    %s17 = scalar_lea.sflag [#allocation3], 1
    %18 = vsyncpa %s17, 0
    loop: start=0, step=1, limit=4
    $region2: #{tpu_custom_call.1} parent=1 // loop_pre_header
      _
    $region3: #{tpu_custom_call.1} parent=1 // loop_header
      %s20 = sphi 0, %s24
      %p21 = scmp.ge.s32.totalorder %s20, 4
      %s30 = sphi 0, %s32
      %s33 = sphi 0, %s30
      %s34 = sphi 0, %s33
      %s50 = sphi 0, %s34
      %s56 = sphi 0, %s58
      %s59 = sphi 0, %s56
      %s60 = sphi 0, %s59
      %s76 = sphi 0, %s60
      %s80 = sphi 0, %s80
      %s82 = sphi 0, %s80
      %s83 = sphi 0, %s82
      %s97 = sphi 0, %s83
      %s101 = sphi 0, %s101
      %s103 = sphi 0, %s101
      %s104 = sphi 0, %s103
      %s118 = sphi 0, %s104
      %s122 = sphi 0, %s122
      %s124 = sphi 0, %s122
      %s125 = sphi 0, %s124
      %s139 = sphi 0, %s125
      %s143 = sphi 0, %s143
      %s145 = sphi 0, %s143
      %s146 = sphi 0, %s145
      %s160 = sphi 0, %s146
      %s164 = sphi 0, %s164
      %s166 = sphi 0, %s164
      %s167 = sphi 0, %s166
      %s181 = sphi 0, %s167
      %s185 = sphi 0, %s185
      %s187 = sphi 0, %s185
      %s188 = sphi 0, %s187
      %s202 = sphi 0, %s188
      %s206 = sphi 0, %s206
      %s208 = sphi 0, %s206
      %s209 = sphi 0, %s208
      %s223 = sphi 0, %s209
      %s227 = sphi 0, %s227
      %s229 = sphi 0, %s227
      %s230 = sphi 0, %s229
      %s244 = sphi 0, %s230
      %s248 = sphi 0, %s248
      %s250 = sphi 0, %s248
      %s251 = sphi 0, %s250
      %s265 = sphi 0, %s251
      %s271 = sphi 0, %s273
      %s274 = sphi 0, %s271
      %s275 = sphi 0, %s274
      %s291 = sphi 0, %s275
    $region4: #{tpu_custom_call.1} parent=1 // loop_header_branch
      %23 = sbr.rel (%p21) target = $region8
    $region5: #{tpu_custom_call.1} parent=1 // loop_body
      %s25 = ssub.s32 %s20, 1
      %s26 = ssub.s32 %s20, 2
      %s27 = sadd.s32 %s20, 1
      %s28 = ssub.s32 %s20, %s27
      %p29 = scmp.eq.s32.totalorder %s28, 0
      %s31 = sadd.s32 %s30, 1
      %s32 = scalar_select %p29, %s30, %s31
      %p35 = pneg %p29
      %p36 = scmp.eq.s32.totalorder %s20, 1
      %p37 = por %p35, %p36
      %p38 = scmp.ne.s32.totalorder %s30, %s33
      %p39 = scmp.eq.s32.totalorder %s20, 0
      %p40 = por %p38, %p39
      %p41 = scmp.ne.s32.totalorder %s30, %s33
      %p42 = scmp.eq.s32.totalorder %s25, 1
      %p43 = por %p41, %p42
      %p44 = scmp.ne.s32.totalorder %s33, %s34
      %p45 = scmp.eq.s32.totalorder %s25, 0
      %p46 = por %p44, %p45
      %p47 = scmp.ne.s32.totalorder %s33, %s34
      %p48 = scmp.eq.s32.totalorder %s26, 1
      %p49 = por %p47, %p48
      %p51 = scmp.ne.s32.totalorder %s34, %s50
      %p52 = scmp.eq.s32.totalorder %s26, 0
      %p53 = por %p51, %p52
      %s54 = ssub.s32 %s20, %s27
      %p55 = scmp.eq.s32.totalorder %s54, 0
      %s57 = sadd.s32 %s56, 1
      %s58 = scalar_select %p55, %s56, %s57
      %p61 = pneg %p55
      %p62 = scmp.eq.s32.totalorder %s20, 1
      %p63 = por %p61, %p62
      %p64 = scmp.ne.s32.totalorder %s56, %s59
      %p65 = scmp.eq.s32.totalorder %s20, 0
      %p66 = por %p64, %p65
      %p67 = scmp.ne.s32.totalorder %s56, %s59
      %p68 = scmp.eq.s32.totalorder %s25, 1
      %p69 = por %p67, %p68
      %p70 = scmp.ne.s32.totalorder %s59, %s60
      %p71 = scmp.eq.s32.totalorder %s25, 0
      %p72 = por %p70, %p71
      %p73 = scmp.ne.s32.totalorder %s59, %s60
      %p74 = scmp.eq.s32.totalorder %s26, 1
      %p75 = por %p73, %p74
      %p77 = scmp.ne.s32.totalorder %s60, %s76
      %p78 = scmp.eq.s32.totalorder %s26, 0
      %p79 = por %p77, %p78
      %s81 = sadd.s32 %s80, 1
      %p84 = scmp.eq.s32.totalorder %s20, 1
      %p85 = scmp.ne.s32.totalorder %s80, %s82
      %p86 = scmp.eq.s32.totalorder %s20, 0
      %p87 = por %p85, %p86
      %p88 = scmp.ne.s32.totalorder %s80, %s82
      %p89 = scmp.eq.s32.totalorder %s25, 1
      %p90 = por %p88, %p89
      %p91 = scmp.ne.s32.totalorder %s82, %s83
      %p92 = scmp.eq.s32.totalorder %s25, 0
      %p93 = por %p91, %p92
      %p94 = scmp.ne.s32.totalorder %s82, %s83
      %p95 = scmp.eq.s32.totalorder %s26, 1
      %p96 = por %p94, %p95
      %p98 = scmp.ne.s32.totalorder %s83, %s97
      %p99 = scmp.eq.s32.totalorder %s26, 0
      %p100 = por %p98, %p99
      %s102 = sadd.s32 %s101, 1
      %p105 = scmp.eq.s32.totalorder %s20, 1
      %p106 = scmp.ne.s32.totalorder %s101, %s103
      %p107 = scmp.eq.s32.totalorder %s20, 0
      %p108 = por %p106, %p107
      %p109 = scmp.ne.s32.totalorder %s101, %s103
      %p110 = scmp.eq.s32.totalorder %s25, 1
      %p111 = por %p109, %p110
      %p112 = scmp.ne.s32.totalorder %s103, %s104
      %p113 = scmp.eq.s32.totalorder %s25, 0
      %p114 = por %p112, %p113
      %p115 = scmp.ne.s32.totalorder %s103, %s104
      %p116 = scmp.eq.s32.totalorder %s26, 1
      %p117 = por %p115, %p116
      %p119 = scmp.ne.s32.totalorder %s104, %s118
      %p120 = scmp.eq.s32.totalorder %s26, 0
      %p121 = por %p119, %p120
      %s123 = sadd.s32 %s122, 1
      %p126 = scmp.eq.s32.totalorder %s20, 1
      %p127 = scmp.ne.s32.totalorder %s122, %s124
      %p128 = scmp.eq.s32.totalorder %s20, 0
      %p129 = por %p127, %p128
      %p130 = scmp.ne.s32.totalorder %s122, %s124
      %p131 = scmp.eq.s32.totalorder %s25, 1
      %p132 = por %p130, %p131
      %p133 = scmp.ne.s32.totalorder %s124, %s125
      %p134 = scmp.eq.s32.totalorder %s25, 0
      %p135 = por %p133, %p134
      %p136 = scmp.ne.s32.totalorder %s124, %s125
      %p137 = scmp.eq.s32.totalorder %s26, 1
      %p138 = por %p136, %p137
      %p140 = scmp.ne.s32.totalorder %s125, %s139
      %p141 = scmp.eq.s32.totalorder %s26, 0
      %p142 = por %p140, %p141
      %s144 = sadd.s32 %s143, 1
      %p147 = scmp.eq.s32.totalorder %s20, 1
      %p148 = scmp.ne.s32.totalorder %s143, %s145
      %p149 = scmp.eq.s32.totalorder %s20, 0
      %p150 = por %p148, %p149
      %p151 = scmp.ne.s32.totalorder %s143, %s145
      %p152 = scmp.eq.s32.totalorder %s25, 1
      %p153 = por %p151, %p152
      %p154 = scmp.ne.s32.totalorder %s145, %s146
      %p155 = scmp.eq.s32.totalorder %s25, 0
      %p156 = por %p154, %p155
      %p157 = scmp.ne.s32.totalorder %s145, %s146
      %p158 = scmp.eq.s32.totalorder %s26, 1
      %p159 = por %p157, %p158
      %p161 = scmp.ne.s32.totalorder %s146, %s160
      %p162 = scmp.eq.s32.totalorder %s26, 0
      %p163 = por %p161, %p162
      %s165 = sadd.s32 %s164, 1
      %p168 = scmp.eq.s32.totalorder %s20, 1
      %p169 = scmp.ne.s32.totalorder %s164, %s166
      %p170 = scmp.eq.s32.totalorder %s20, 0
      %p171 = por %p169, %p170
      %p172 = scmp.ne.s32.totalorder %s164, %s166
      %p173 = scmp.eq.s32.totalorder %s25, 1
      %p174 = por %p172, %p173
      %p175 = scmp.ne.s32.totalorder %s166, %s167
      %p176 = scmp.eq.s32.totalorder %s25, 0
      %p177 = por %p175, %p176
      %p178 = scmp.ne.s32.totalorder %s166, %s167
      %p179 = scmp.eq.s32.totalorder %s26, 1
      %p180 = por %p178, %p179
      %p182 = scmp.ne.s32.totalorder %s167, %s181
      %p183 = scmp.eq.s32.totalorder %s26, 0
      %p184 = por %p182, %p183
      %s186 = sadd.s32 %s185, 1
      %p189 = scmp.eq.s32.totalorder %s20, 1
      %p190 = scmp.ne.s32.totalorder %s185, %s187
      %p191 = scmp.eq.s32.totalorder %s20, 0
      %p192 = por %p190, %p191
      %p193 = scmp.ne.s32.totalorder %s185, %s187
      %p194 = scmp.eq.s32.totalorder %s25, 1
      %p195 = por %p193, %p194
      %p196 = scmp.ne.s32.totalorder %s187, %s188
      %p197 = scmp.eq.s32.totalorder %s25, 0
      %p198 = por %p196, %p197
      %p199 = scmp.ne.s32.totalorder %s187, %s188
      %p200 = scmp.eq.s32.totalorder %s26, 1
      %p201 = por %p199, %p200
      %p203 = scmp.ne.s32.totalorder %s188, %s202
      %p204 = scmp.eq.s32.totalorder %s26, 0
      %p205 = por %p203, %p204
      %s207 = sadd.s32 %s206, 1
      %p210 = scmp.eq.s32.totalorder %s20, 1
      %p211 = scmp.ne.s32.totalorder %s206, %s208
      %p212 = scmp.eq.s32.totalorder %s20, 0
      %p213 = por %p211, %p212
      %p214 = scmp.ne.s32.totalorder %s206, %s208
      %p215 = scmp.eq.s32.totalorder %s25, 1
      %p216 = por %p214, %p215
      %p217 = scmp.ne.s32.totalorder %s208, %s209
      %p218 = scmp.eq.s32.totalorder %s25, 0
      %p219 = por %p217, %p218
      %p220 = scmp.ne.s32.totalorder %s208, %s209
      %p221 = scmp.eq.s32.totalorder %s26, 1
      %p222 = por %p220, %p221
      %p224 = scmp.ne.s32.totalorder %s209, %s223
      %p225 = scmp.eq.s32.totalorder %s26, 0
      %p226 = por %p224, %p225
      %s228 = sadd.s32 %s227, 1
      %p231 = scmp.eq.s32.totalorder %s20, 1
      %p232 = scmp.ne.s32.totalorder %s227, %s229
      %p233 = scmp.eq.s32.totalorder %s20, 0
      %p234 = por %p232, %p233
      %p235 = scmp.ne.s32.totalorder %s227, %s229
      %p236 = scmp.eq.s32.totalorder %s25, 1
      %p237 = por %p235, %p236
      %p238 = scmp.ne.s32.totalorder %s229, %s230
      %p239 = scmp.eq.s32.totalorder %s25, 0
      %p240 = por %p238, %p239
      %p241 = scmp.ne.s32.totalorder %s229, %s230
      %p242 = scmp.eq.s32.totalorder %s26, 1
      %p243 = por %p241, %p242
      %p245 = scmp.ne.s32.totalorder %s230, %s244
      %p246 = scmp.eq.s32.totalorder %s26, 0
      %p247 = por %p245, %p246
      %s249 = sadd.s32 %s248, 1
      %p252 = scmp.eq.s32.totalorder %s20, 1
      %p253 = scmp.ne.s32.totalorder %s248, %s250
      %p254 = scmp.eq.s32.totalorder %s20, 0
      %p255 = por %p253, %p254
      %p256 = scmp.ne.s32.totalorder %s248, %s250
      %p257 = scmp.eq.s32.totalorder %s25, 1
      %p258 = por %p256, %p257
      %p259 = scmp.ne.s32.totalorder %s250, %s251
      %p260 = scmp.eq.s32.totalorder %s25, 0
      %p261 = por %p259, %p260
      %p262 = scmp.ne.s32.totalorder %s250, %s251
      %p263 = scmp.eq.s32.totalorder %s26, 1
      %p264 = por %p262, %p263
      %p266 = scmp.ne.s32.totalorder %s251, %s265
      %p267 = scmp.eq.s32.totalorder %s26, 0
      %p268 = por %p266, %p267
      %s269 = ssub.s32 %s20, %s27
      %p270 = scmp.eq.s32.totalorder %s269, 0
      %s272 = sadd.s32 %s271, 1
      %s273 = scalar_select %p270, %s271, %s272
      %p276 = pneg %p270
      %p277 = scmp.eq.s32.totalorder %s20, 1
      %p278 = por %p276, %p277
      %p279 = scmp.ne.s32.totalorder %s271, %s274
      %p280 = scmp.eq.s32.totalorder %s20, 0
      %p281 = por %p279, %p280
      %p282 = scmp.ne.s32.totalorder %s271, %s274
      %p283 = scmp.eq.s32.totalorder %s25, 1
      %p284 = por %p282, %p283
      %p285 = scmp.ne.s32.totalorder %s274, %s275
      %p286 = scmp.eq.s32.totalorder %s25, 0
      %p287 = por %p285, %p286
      %p288 = scmp.ne.s32.totalorder %s274, %s275
      %p289 = scmp.eq.s32.totalorder %s26, 1
      %p290 = por %p288, %p289
      %p292 = scmp.ne.s32.totalorder %s275, %s291
      %p293 = scmp.eq.s32.totalorder %s26, 0
      %p294 = por %p292, %p293
      %p295 = scmp.le.s32.totalorder 1, %s20
      %p296 = scmp.lt.s32.totalorder %s20, 3
      %p297 = pnand %p295, %p296
      %p298 = pneg %p297
      // Predicated region
      $region9: #{tpu_custom_call.1} parent=5 // pred_check
        _
      $region10: #{tpu_custom_call.1} parent=5 // pred_check_branch
        %300 = sbr.rel (%p297) target = $region12
      $region11: #{tpu_custom_call.1} parent=5 // pred_region
        %s301 = ssub.s32 %s20, 1
        // Predicated region
        $region13: #{tpu_custom_call.1} parent=11 // pred_check
          %p302 = pneg %p93
        $region14: #{tpu_custom_call.1} parent=11 // pred_check_branch
          %304 = sbr.rel (%p302) target = $region16
        $region15: #{tpu_custom_call.1} parent=11 // pred_region
          _
        $region16: #{tpu_custom_call.1} parent=11 // pred_fallthru
          _
        // Predicated region
        $region17: #{tpu_custom_call.1} parent=11 // pred_check
          %p305 = pneg %p114
        $region18: #{tpu_custom_call.1} parent=11 // pred_check_branch
          %307 = sbr.rel (%p305) target = $region20
        $region19: #{tpu_custom_call.1} parent=11 // pred_region
          _
        $region20: #{tpu_custom_call.1} parent=11 // pred_fallthru
          _
        // Predicated region
        $region21: #{tpu_custom_call.1} parent=11 // pred_check
          %p308 = pneg %p135
        $region22: #{tpu_custom_call.1} parent=11 // pred_check_branch
          %310 = sbr.rel (%p308) target = $region24
        $region23: #{tpu_custom_call.1} parent=11 // pred_region
          _
        $region24: #{tpu_custom_call.1} parent=11 // pred_fallthru
          _
        // Predicated region
        $region25: #{tpu_custom_call.1} parent=11 // pred_check
          %p311 = pneg %p156
        $region26: #{tpu_custom_call.1} parent=11 // pred_check_branch
          %313 = sbr.rel (%p311) target = $region28
        $region27: #{tpu_custom_call.1} parent=11 // pred_region
          _
        $region28: #{tpu_custom_call.1} parent=11 // pred_fallthru
          _
        // Predicated region
        $region29: #{tpu_custom_call.1} parent=11 // pred_check
          %p314 = pneg %p177
        $region30: #{tpu_custom_call.1} parent=11 // pred_check_branch
          %316 = sbr.rel (%p314) target = $region32
        $region31: #{tpu_custom_call.1} parent=11 // pred_region
          _
        $region32: #{tpu_custom_call.1} parent=11 // pred_fallthru
          _
        // Predicated region
        $region33: #{tpu_custom_call.1} parent=11 // pred_check
          %p317 = pneg %p198
        $region34: #{tpu_custom_call.1} parent=11 // pred_check_branch
          %319 = sbr.rel (%p317) target = $region36
        $region35: #{tpu_custom_call.1} parent=11 // pred_region
          _
        $region36: #{tpu_custom_call.1} parent=11 // pred_fallthru
          _
        // Predicated region
        $region37: #{tpu_custom_call.1} parent=11 // pred_check
          %p320 = pneg %p219
        $region38: #{tpu_custom_call.1} parent=11 // pred_check_branch
          %322 = sbr.rel (%p320) target = $region40
        $region39: #{tpu_custom_call.1} parent=11 // pred_region
          _
        $region40: #{tpu_custom_call.1} parent=11 // pred_fallthru
          _
        // Predicated region
        $region41: #{tpu_custom_call.1} parent=11 // pred_check
          %p323 = pneg %p240
        $region42: #{tpu_custom_call.1} parent=11 // pred_check_branch
          %325 = sbr.rel (%p323) target = $region44
        $region43: #{tpu_custom_call.1} parent=11 // pred_region
          _
        $region44: #{tpu_custom_call.1} parent=11 // pred_fallthru
          _
        // Predicated region
        $region45: #{tpu_custom_call.1} parent=11 // pred_check
          %p326 = pneg %p261
        $region46: #{tpu_custom_call.1} parent=11 // pred_check_branch
          %328 = sbr.rel (%p326) target = $region48
        $region47: #{tpu_custom_call.1} parent=11 // pred_region
          _
        $region48: #{tpu_custom_call.1} parent=11 // pred_fallthru
          _
      $region12: #{tpu_custom_call.1} parent=5 // pred_fallthru
        _
      %p329 = scmp.lt.s32.totalorder %s20, 2
      // Predicated region
      $region49: #{tpu_custom_call.1} parent=5 // pred_check
        %p330 = pneg %p329
      $region50: #{tpu_custom_call.1} parent=5 // pred_check_branch
        %332 = sbr.rel (%p330) target = $region52
      $region51: #{tpu_custom_call.1} parent=5 // pred_region
        // Predicated region
        $region53: #{tpu_custom_call.1} parent=51 // pred_check
          %p333 = pneg %p40
        $region54: #{tpu_custom_call.1} parent=51 // pred_check_branch
          %335 = sbr.rel (%p333) target = $region56
        $region55: #{tpu_custom_call.1} parent=51 // pred_region
          %s336 = smul.u32 4, %s20
          %p337 = scmp.lt.s32.totalorder %s336, 7
          %s338 = scalar_select %p337, %s336, 7
          %s339 = smul.addr %s338, 2
          %s340 = scalar_lea.vmem %s0, %s339
          %s341 = smul.u32 4, %s20
        $region56: #{tpu_custom_call.1} parent=51 // pred_fallthru
          _
        // Predicated region
        $region57: #{tpu_custom_call.1} parent=51 // pred_check
          %p342 = pneg %p66
        $region58: #{tpu_custom_call.1} parent=51 // pred_check_branch
          %344 = sbr.rel (%p342) target = $region60
        $region59: #{tpu_custom_call.1} parent=51 // pred_region
          %s345 = smul.u32 4, %s20
          %p346 = scmp.lt.s32.totalorder %s345, 7
          %s347 = scalar_select %p346, %s345, 7
          %s348 = smul.addr %s347, 2
          %s349 = scalar_lea.vmem %s1, %s348
          %s350 = smul.u32 4, %s20
        $region60: #{tpu_custom_call.1} parent=51 // pred_fallthru
          _
      $region52: #{tpu_custom_call.1} parent=5 // pred_fallthru
        _
      %p351 = scmp.le.s32.totalorder 1, %s20
      %p352 = scmp.lt.s32.totalorder %s20, 3
      %p353 = pnand %p351, %p352
      %p354 = pneg %p353
      // Predicated region
      $region61: #{tpu_custom_call.1} parent=5 // pred_check
        _
      $region62: #{tpu_custom_call.1} parent=5 // pred_check_branch
        %356 = sbr.rel (%p353) target = $region64
      $region63: #{tpu_custom_call.1} parent=5 // pred_region
        %s357 = ssub.s32 %s20, 1
        %s358 = smul.u32 4, %s25
        %p359 = scmp.lt.s32.totalorder %s358, 7
        %s360 = scalar_select %p359, %s358, 7
        %s361 = smul.addr %s360, 2
        %s362 = scalar_lea.vmem %s0, %s361
        %p363 = pneg %p46
        %p364 = pneg %p43
        %s365 = smul.u32 4, %s25
        %p366 = scmp.lt.s32.totalorder %s365, 7
        %s367 = scalar_select %p366, %s365, 7
        %s368 = smul.addr %s367, 2
        %s369 = scalar_lea.vmem %s1, %s368
        %p370 = pneg %p72
        %p371 = pneg %p69
        %p372 = pneg %p93
        %p373 = pneg %p90
        %p374 = pneg %p114
        %p375 = pneg %p111
        %p376 = pneg %p135
        %p377 = pneg %p132
        %p378 = pneg %p156
        %p379 = pneg %p153
        %p380 = pneg %p177
        %p381 = pneg %p174
        %p382 = pneg %p198
        %p383 = pneg %p195
        %p384 = pneg %p219
        %p385 = pneg %p216
        %p386 = pneg %p240
        %p387 = pneg %p237
        %p388 = pneg %p261
        %p389 = pneg %p258
        %p390 = pneg %p287
        %p391 = pneg %p284
        %s392 = sand.u32 %s274, 1
        %s393 = scalar_lea.sflag [#allocation3], %s392
        %s394 = sand.u32 %s274, 1
        %s395 = smul.addr %s394, 4
        %s396 = scalar_lea.vmem [#allocation2], %s395
        %s397 = smul.u32 4, %s25
        %p398 = scmp.lt.s32.totalorder %s397, 7
        %s399 = scalar_select %p398, %s397, 7
        %s400 = smul.addr %s399, 2
        %s401 = scalar_lea.vmem %s0, %s400
        %s402 = smul.u32 4, %s25
        %s403 = smul.u32 4, %s25
        %p404 = scmp.lt.s32.totalorder %s403, 7
        %s405 = scalar_select %p404, %s403, 7
        %s406 = smul.addr %s405, 2
        %s407 = scalar_lea.vmem %s1, %s406
        %s408 = smul.u32 4, %s25
        %s409 = smul.u32 4, %s25
        %v410 = vld [vmem:[%s401] sm:$0xff]
        %v411 = vld [vmem:[%s407] sm:$0xff]
        %v412 = vld [vmem:[%s2] sm:$0xff]
        %v413 = vld [vmem:[%s2 + $0x8] sm:$0xff]
        %v414 = vld [vmem:[%s2 + $0x10] sm:$0xff]
        %v415 = vld [vmem:[%s2 + $0x18] sm:$0xff]
        %417 = vset.pattern.permute.xlu0 0
        %418 = vperm.xlu0 %417, %v412
        %v419 = vpop.permute.xlu0 %418
        %422 = vset.pattern.permute.xlu0 0
        %423 = vperm.xlu0 %422, %v413
        %v424 = vpop.permute.xlu0 %423
        %427 = vset.pattern.permute.xlu0 0
        %428 = vperm.xlu0 %427, %v414
        %v429 = vpop.permute.xlu0 %428
        %432 = vset.pattern.permute.xlu0 0
        %433 = vperm.xlu0 %432, %v415
        %v434 = vpop.permute.xlu0 %433
        %v437 = vlaneseq
        %v438 = vshrl.u32 %v437, 7
        %v439 = vsub.s32 0, %v438
        %v440 = vrot.slane %v410, %v439
        %v441 = vlaneseq
        %v442 = vshrl.u32 %v441, 7
        %v443 = vsub.s32 2, %v442
        %v444 = vrot.slane %v410, %v443
        %v445 = vlaneseq
        %v446 = vshrl.u32 %v445, 7
        %v447 = vsub.s32 4, %v446
        %v448 = vrot.slane %v410, %v447
        %v449 = vlaneseq
        %v450 = vshrl.u32 %v449, 7
        %v451 = vsub.s32 6, %v450
        %v452 = vrot.slane %v410, %v451
        %v457 = vlaneseq
        %v458 = vshrl.u32 %v457, 7
        %v459 = vsub.s32 0, %v458
        %v460 = vrot.slane %v440, %v459
        %v461 = vlaneseq
        %v462 = vshrl.u32 %v461, 7
        %v463 = vsub.s32 0, %v462
        %v464 = vrot.slane %v444, %v463
        %v465 = vlaneseq
        %v466 = vshrl.u32 %v465, 7
        %v467 = vsub.s32 0, %v466
        %v468 = vrot.slane %v448, %v467
        %v469 = vlaneseq
        %v470 = vshrl.u32 %v469, 7
        %v471 = vsub.s32 0, %v470
        %v472 = vrot.slane %v452, %v471
        %v473 = vmul.f32 %v419, %v460
        %v474 = vmul.f32 %v419, %v464
        %v475 = vmul.f32 %v419, %v468
        %v476 = vmul.f32 %v419, %v472
        %v477 = vmul.f32 %v424, %v460
        %v478 = vmul.f32 %v424, %v464
        %v479 = vmul.f32 %v424, %v468
        %v480 = vmul.f32 %v424, %v472
        %v481 = vmul.f32 %v429, %v460
        %v482 = vmul.f32 %v429, %v464
        %v483 = vmul.f32 %v429, %v468
        %v484 = vmul.f32 %v429, %v472
        %v485 = vmul.f32 %v434, %v460
        %v486 = vmul.f32 %v434, %v464
        %v487 = vmul.f32 %v434, %v468
        %v488 = vmul.f32 %v434, %v472
        %489 = vset.pattern.permute.xlu0 1
        %490 = vperm.xlu0 %489, %v412
        %v491 = vpop.permute.xlu0 %490
        %493 = vset.pattern.permute.xlu0 1
        %494 = vperm.xlu0 %493, %v413
        %v495 = vpop.permute.xlu0 %494
        %497 = vset.pattern.permute.xlu0 1
        %498 = vperm.xlu0 %497, %v414
        %v499 = vpop.permute.xlu0 %498
        %501 = vset.pattern.permute.xlu0 1
        %502 = vperm.xlu0 %501, %v415
        %v503 = vpop.permute.xlu0 %502
        %v505 = vlaneseq
        %v506 = vshrl.u32 %v505, 7
        %v507 = vsub.s32 1, %v506
        %v508 = vrot.slane %v410, %v507
        %v509 = vlaneseq
        %v510 = vshrl.u32 %v509, 7
        %v511 = vsub.s32 3, %v510
        %v512 = vrot.slane %v410, %v511
        %v513 = vlaneseq
        %v514 = vshrl.u32 %v513, 7
        %v515 = vsub.s32 5, %v514
        %v516 = vrot.slane %v410, %v515
        %v517 = vlaneseq
        %v518 = vshrl.u32 %v517, 7
        %v519 = vsub.s32 7, %v518
        %v520 = vrot.slane %v410, %v519
        %v525 = vlaneseq
        %v526 = vshrl.u32 %v525, 7
        %v527 = vsub.s32 1, %v526
        %v528 = vrot.slane %v508, %v527
        %v529 = vlaneseq
        %v530 = vshrl.u32 %v529, 7
        %v531 = vsub.s32 1, %v530
        %v532 = vrot.slane %v512, %v531
        %v533 = vlaneseq
        %v534 = vshrl.u32 %v533, 7
        %v535 = vsub.s32 1, %v534
        %v536 = vrot.slane %v516, %v535
        %v537 = vlaneseq
        %v538 = vshrl.u32 %v537, 7
        %v539 = vsub.s32 1, %v538
        %v540 = vrot.slane %v520, %v539
        %v541 = vmul.f32 %v491, %v528
        %v542 = vmul.f32 %v491, %v532
        %v543 = vmul.f32 %v491, %v536
        %v544 = vmul.f32 %v491, %v540
        %v545 = vmul.f32 %v495, %v528
        %v546 = vmul.f32 %v495, %v532
        %v547 = vmul.f32 %v495, %v536
        %v548 = vmul.f32 %v495, %v540
        %v549 = vmul.f32 %v499, %v528
        %v550 = vmul.f32 %v499, %v532
        %v551 = vmul.f32 %v499, %v536
        %v552 = vmul.f32 %v499, %v540
        %v553 = vmul.f32 %v503, %v528
        %v554 = vmul.f32 %v503, %v532
        %v555 = vmul.f32 %v503, %v536
        %v556 = vmul.f32 %v503, %v540
        %v557 = vadd.f32 %v473, %v541
        %v558 = vadd.f32 %v474, %v542
        %v559 = vadd.f32 %v475, %v543
        %v560 = vadd.f32 %v476, %v544
        %v561 = vadd.f32 %v477, %v545
        %v562 = vadd.f32 %v478, %v546
        %v563 = vadd.f32 %v479, %v547
        %v564 = vadd.f32 %v480, %v548
        %v565 = vadd.f32 %v481, %v549
        %v566 = vadd.f32 %v482, %v550
        %v567 = vadd.f32 %v483, %v551
        %v568 = vadd.f32 %v484, %v552
        %v569 = vadd.f32 %v485, %v553
        %v570 = vadd.f32 %v486, %v554
        %v571 = vadd.f32 %v487, %v555
        %v572 = vadd.f32 %v488, %v556
        %v573 = vld [vmem:[%s3] sm:$0xff]
        %v574 = vld [vmem:[%s3 + $0x8] sm:$0xff]
        %v575 = vld [vmem:[%s3 + $0x10] sm:$0xff]
        %v576 = vld [vmem:[%s3 + $0x18] sm:$0xff]
        %578 = vset.pattern.permute.xlu0 0
        %579 = vperm.xlu0 %578, %v573
        %v580 = vpop.permute.xlu0 %579
        %583 = vset.pattern.permute.xlu0 0
        %584 = vperm.xlu0 %583, %v574
        %v585 = vpop.permute.xlu0 %584
        %588 = vset.pattern.permute.xlu0 0
        %589 = vperm.xlu0 %588, %v575
        %v590 = vpop.permute.xlu0 %589
        %593 = vset.pattern.permute.xlu0 0
        %594 = vperm.xlu0 %593, %v576
        %v595 = vpop.permute.xlu0 %594
        %v597 = vadd.f32 %v557, %v580
        %v598 = vadd.f32 %v558, %v580
        %v599 = vadd.f32 %v559, %v580
        %v600 = vadd.f32 %v560, %v580
        %v601 = vadd.f32 %v561, %v585
        %v602 = vadd.f32 %v562, %v585
        %v603 = vadd.f32 %v563, %v585
        %v604 = vadd.f32 %v564, %v585
        %v605 = vadd.f32 %v565, %v590
        %v606 = vadd.f32 %v566, %v590
        %v607 = vadd.f32 %v567, %v590
        %v608 = vadd.f32 %v568, %v590
        %v609 = vadd.f32 %v569, %v595
        %v610 = vadd.f32 %v570, %v595
        %v611 = vadd.f32 %v571, %v595
        %v612 = vadd.f32 %v572, %v595
        %v613 = vtanh.pop %v597
        %v614 = vtanh.pop %v598
        %v615 = vtanh.pop %v599
        %v616 = vtanh.pop %v600
        %v617 = vtanh.pop %v601
        %v618 = vtanh.pop %v602
        %v619 = vtanh.pop %v603
        %v620 = vtanh.pop %v604
        %v621 = vtanh.pop %v605
        %v622 = vtanh.pop %v606
        %v623 = vtanh.pop %v607
        %v624 = vtanh.pop %v608
        %v625 = vtanh.pop %v609
        %v626 = vtanh.pop %v610
        %v627 = vtanh.pop %v611
        %v628 = vtanh.pop %v612
        %v629 = vld [vmem:[%s4] sm:$0xff]
        %v630 = vld [vmem:[%s4 + $0x8] sm:$0xff]
        %v631 = vld [vmem:[%s4 + $0x10] sm:$0xff]
        %v632 = vld [vmem:[%s4 + $0x18] sm:$0xff]
        %v633 = vld [vmem:[%s5] sm:$0xff]
        %v634 = vld [vmem:[%s5 + $0x8] sm:$0xff]
        %v635 = vld [vmem:[%s5 + $0x10] sm:$0xff]
        %v636 = vld [vmem:[%s5 + $0x18] sm:$0xff]
        %638 = vset.pattern.permute.xlu0 0
        %639 = vperm.xlu0 %638, %v633
        %v640 = vpop.permute.xlu0 %639
        %643 = vset.pattern.permute.xlu0 0
        %644 = vperm.xlu0 %643, %v634
        %v645 = vpop.permute.xlu0 %644
        %648 = vset.pattern.permute.xlu0 0
        %649 = vperm.xlu0 %648, %v635
        %v650 = vpop.permute.xlu0 %649
        %653 = vset.pattern.permute.xlu0 0
        %654 = vperm.xlu0 %653, %v636
        %v655 = vpop.permute.xlu0 %654
        %vm657 = vcmask 261120
        %v659 = vsel %vm657, %v629, 0
        %v662 = vsel %vm657, %v630, 0
        %v665 = vsel %vm657, %v631, 0
        %v668 = vsel %vm657, %v632, 0
        %670 = vmatprep.subr.mxu0 0.0
        %671 = vmatpush1.msra.mxu0 0.0
        %672 = vmatprep.subr.mxu0 0.0
        %673 = vmatpush1.msra.mxu0 0.0
        %674 = vmatprep.subr.mxu0 0.0
        %675 = vmatpush1.msra.mxu0 0.0
        %676 = vmatprep.subr.mxu0 0.0
        %677 = vmatpush1.msra.mxu0 0.0
        %678 = vmatprep.subr.mxu0 0.0
        %679 = vmatpush1.msra.mxu0 0.0
        %680 = vmatprep.subr.mxu0 0.0
        %681 = vmatpush1.msra.mxu0 0.0
        %682 = vmatprep.subr.mxu0 0.0
        %683 = vmatpush1.msra.mxu0 0.0
        %684 = vmatprep.subr.mxu0 0.0
        %685 = vmatpush1.msra.mxu0 0.0
        %686 = vmatprep.subr.mxu0 0.0
        %687 = vmatpush1.msra.mxu0 0.0
        %688 = vmatprep.subr.mxu0 0.0
        %689 = vmatpush1.msra.mxu0 0.0
        %690 = vmatprep.subr.mxu0 0.0
        %691 = vmatpush1.msra.mxu0 0.0
        %692 = vmatprep.subr.mxu0 0.0
        %693 = vmatpush1.msra.mxu0 0.0
        %694 = vmatprep.subr.mxu0 %v626
        %695 = vmatpush1.msra.mxu0 %v625
        %696 = vmatprep.subr.mxu0 %v622
        %697 = vmatpush1.msra.mxu0 %v621
        %698 = vmatprep.subr.mxu0 %v618
        %699 = vmatpush1.msra.mxu0 %v617
        %700 = vmatprep.subr.mxu0 %v614
        %701 = vmatpush1.msra.mxu0 %v613
        %702 = vmatprep.subr.mxu0 0.0
        %703 = vmatpush2.msra.mxu0 0.0
        %704 = vmatprep.subr.mxu0 0.0
        %705 = vmatpush2.msra.mxu0 0.0
        %706 = vmatprep.subr.mxu0 0.0
        %707 = vmatpush2.msra.mxu0 0.0
        %708 = vmatprep.subr.mxu0 0.0
        %709 = vmatpush2.msra.mxu0 0.0
        %710 = vmatprep.subr.mxu0 0.0
        %711 = vmatpush2.msra.mxu0 0.0
        %712 = vmatprep.subr.mxu0 0.0
        %713 = vmatpush2.msra.mxu0 0.0
        %714 = vmatprep.subr.mxu0 0.0
        %715 = vmatpush2.msra.mxu0 0.0
        %716 = vmatprep.subr.mxu0 0.0
        %717 = vmatpush2.msra.mxu0 0.0
        %718 = vmatprep.subr.mxu0 0.0
        %719 = vmatpush2.msra.mxu0 0.0
        %720 = vmatprep.subr.mxu0 0.0
        %721 = vmatpush2.msra.mxu0 0.0
        %722 = vmatprep.subr.mxu0 0.0
        %723 = vmatpush2.msra.mxu0 0.0
        %724 = vmatprep.subr.mxu0 0.0
        %725 = vmatpush2.msra.mxu0 0.0
        %726 = vmatprep.subr.mxu0 0.0
        %727 = vmatpush2.msra.mxu0 0.0
        %728 = vmatprep.subr.mxu0 0.0
        %729 = vmatpush2.msra.mxu0 0.0
        %730 = vmatprep.subr.mxu0 0.0
        %731 = vmatpush2.msra.mxu0 0.0
        %732 = vmatprep.subr.mxu0 0.0
        %733 = vmatpush2.msra.mxu0 0.0
        %734 = vmatprep.mubr.f32.mxu0 0.0
        %735 = vmatmul.mubr.f32.gmra.mxu0 %v659
        %v736 = vpop.f32.mrf.mxu0
        %v737 = vadd.f32 %v640, %v736
        %v738 = vpop.f32.mrf.mxu0
        %v739 = vadd.f32 %v640, %v738
        %740 = vmatprep.mubr.f32.mxu0 0.0
        %741 = vmatmul.mubr.f32.gmra.mxu0 %v662
        %v742 = vpop.f32.mrf.mxu0
        %v743 = vadd.f32 %v645, %v742
        %v744 = vpop.f32.mrf.mxu0
        %v745 = vadd.f32 %v645, %v744
        %746 = vmatprep.mubr.f32.mxu0 0.0
        %747 = vmatmul.mubr.f32.gmra.mxu0 %v665
        %v748 = vpop.f32.mrf.mxu0
        %v749 = vadd.f32 %v650, %v748
        %v750 = vpop.f32.mrf.mxu0
        %v751 = vadd.f32 %v650, %v750
        %752 = vmatprep.mubr.f32.mxu0 0.0
        %753 = vmatmul.mubr.f32.gmra.mxu0 %v668
        %v754 = vpop.f32.mrf.mxu0
        %v755 = vadd.f32 %v655, %v754
        %v756 = vpop.f32.mrf.mxu0
        %v757 = vadd.f32 %v655, %v756
        %758 = vdwg.mxu0
        %759 = vmatprep.subr.mxu0 0.0
        %760 = vmatpush1.msra.mxu0 0.0
        %761 = vmatprep.subr.mxu0 0.0
        %762 = vmatpush1.msra.mxu0 0.0
        %763 = vmatprep.subr.mxu0 0.0
        %764 = vmatpush1.msra.mxu0 0.0
        %765 = vmatprep.subr.mxu0 0.0
        %766 = vmatpush1.msra.mxu0 0.0
        %767 = vmatprep.subr.mxu0 0.0
        %768 = vmatpush1.msra.mxu0 0.0
        %769 = vmatprep.subr.mxu0 0.0
        %770 = vmatpush1.msra.mxu0 0.0
        %771 = vmatprep.subr.mxu0 0.0
        %772 = vmatpush1.msra.mxu0 0.0
        %773 = vmatprep.subr.mxu0 0.0
        %774 = vmatpush1.msra.mxu0 0.0
        %775 = vmatprep.subr.mxu0 0.0
        %776 = vmatpush1.msra.mxu0 0.0
        %777 = vmatprep.subr.mxu0 0.0
        %778 = vmatpush1.msra.mxu0 0.0
        %779 = vmatprep.subr.mxu0 0.0
        %780 = vmatpush1.msra.mxu0 0.0
        %781 = vmatprep.subr.mxu0 0.0
        %782 = vmatpush1.msra.mxu0 0.0
        %783 = vmatprep.subr.mxu0 %v628
        %784 = vmatpush1.msra.mxu0 %v627
        %785 = vmatprep.subr.mxu0 %v624
        %786 = vmatpush1.msra.mxu0 %v623
        %787 = vmatprep.subr.mxu0 %v620
        %788 = vmatpush1.msra.mxu0 %v619
        %789 = vmatprep.subr.mxu0 %v616
        %790 = vmatpush1.msra.mxu0 %v615
        %791 = vmatprep.subr.mxu0 0.0
        %792 = vmatpush2.msra.mxu0 0.0
        %793 = vmatprep.subr.mxu0 0.0
        %794 = vmatpush2.msra.mxu0 0.0
        %795 = vmatprep.subr.mxu0 0.0
        %796 = vmatpush2.msra.mxu0 0.0
        %797 = vmatprep.subr.mxu0 0.0
        %798 = vmatpush2.msra.mxu0 0.0
        %799 = vmatprep.subr.mxu0 0.0
        %800 = vmatpush2.msra.mxu0 0.0
        %801 = vmatprep.subr.mxu0 0.0
        %802 = vmatpush2.msra.mxu0 0.0
        %803 = vmatprep.subr.mxu0 0.0
        %804 = vmatpush2.msra.mxu0 0.0
        %805 = vmatprep.subr.mxu0 0.0
        %806 = vmatpush2.msra.mxu0 0.0
        %807 = vmatprep.subr.mxu0 0.0
        %808 = vmatpush2.msra.mxu0 0.0
        %809 = vmatprep.subr.mxu0 0.0
        %810 = vmatpush2.msra.mxu0 0.0
        %811 = vmatprep.subr.mxu0 0.0
        %812 = vmatpush2.msra.mxu0 0.0
        %813 = vmatprep.subr.mxu0 0.0
        %814 = vmatpush2.msra.mxu0 0.0
        %815 = vmatprep.subr.mxu0 0.0
        %816 = vmatpush2.msra.mxu0 0.0
        %817 = vmatprep.subr.mxu0 0.0
        %818 = vmatpush2.msra.mxu0 0.0
        %819 = vmatprep.subr.mxu0 0.0
        %820 = vmatpush2.msra.mxu0 0.0
        %821 = vmatprep.subr.mxu0 0.0
        %822 = vmatpush2.msra.mxu0 0.0
        %823 = vmatprep.mubr.f32.mxu0 0.0
        %824 = vmatmul.mubr.f32.gmra.mxu0 %v659
        %v825 = vpop.f32.mrf.mxu0
        %v826 = vadd.f32 %v640, %v825
        %v827 = vpop.f32.mrf.mxu0
        %v828 = vadd.f32 %v640, %v827
        %829 = vmatprep.mubr.f32.mxu0 0.0
        %830 = vmatmul.mubr.f32.gmra.mxu0 %v662
        %v831 = vpop.f32.mrf.mxu0
        %v832 = vadd.f32 %v645, %v831
        %v833 = vpop.f32.mrf.mxu0
        %v834 = vadd.f32 %v645, %v833
        %835 = vmatprep.mubr.f32.mxu0 0.0
        %836 = vmatmul.mubr.f32.gmra.mxu0 %v665
        %v837 = vpop.f32.mrf.mxu0
        %v838 = vadd.f32 %v650, %v837
        %v839 = vpop.f32.mrf.mxu0
        %v840 = vadd.f32 %v650, %v839
        %841 = vmatprep.mubr.f32.mxu0 0.0
        %842 = vmatmul.mubr.f32.gmra.mxu0 %v668
        %v843 = vpop.f32.mrf.mxu0
        %v844 = vadd.f32 %v655, %v843
        %v845 = vpop.f32.mrf.mxu0
        %v846 = vadd.f32 %v655, %v845
        %847 = vdwg.mxu0
        %v848 = vtanh.pop %v737
        %v849 = vtanh.pop %v739
        %v850 = vtanh.pop %v826
        %v851 = vtanh.pop %v828
        %v852 = vtanh.pop %v743
        %v853 = vtanh.pop %v745
        %v854 = vtanh.pop %v832
        %v855 = vtanh.pop %v834
        %v856 = vtanh.pop %v749
        %v857 = vtanh.pop %v751
        %v858 = vtanh.pop %v838
        %v859 = vtanh.pop %v840
        %v860 = vtanh.pop %v755
        %v861 = vtanh.pop %v757
        %v862 = vtanh.pop %v844
        %v863 = vtanh.pop %v846
        %v864 = vadd.f32 %v613, %v848
        %v865 = vadd.f32 %v614, %v849
        %v866 = vadd.f32 %v615, %v850
        %v867 = vadd.f32 %v616, %v851
        %v868 = vadd.f32 %v617, %v852
        %v869 = vadd.f32 %v618, %v853
        %v870 = vadd.f32 %v619, %v854
        %v871 = vadd.f32 %v620, %v855
        %v872 = vadd.f32 %v621, %v856
        %v873 = vadd.f32 %v622, %v857
        %v874 = vadd.f32 %v623, %v858
        %v875 = vadd.f32 %v624, %v859
        %v876 = vadd.f32 %v625, %v860
        %v877 = vadd.f32 %v626, %v861
        %v878 = vadd.f32 %v627, %v862
        %v879 = vadd.f32 %v628, %v863
        %s880 = scalar_lea.vmem %s4, 32
        %v881 = vld [vmem:[%s880] sm:$0xff]
        %v882 = vld [vmem:[%s880 + $0x8] sm:$0xff]
        %v883 = vld [vmem:[%s880 + $0x10] sm:$0xff]
        %v884 = vld [vmem:[%s880 + $0x18] sm:$0xff]
        %s885 = scalar_lea.vmem %s5, 32
        %v886 = vld [vmem:[%s885] sm:$0xff]
        %v887 = vld [vmem:[%s885 + $0x8] sm:$0xff]
        %v888 = vld [vmem:[%s885 + $0x10] sm:$0xff]
        %v889 = vld [vmem:[%s885 + $0x18] sm:$0xff]
        %891 = vset.pattern.permute.xlu0 0
        %892 = vperm.xlu0 %891, %v886
        %v893 = vpop.permute.xlu0 %892
        %896 = vset.pattern.permute.xlu0 0
        %897 = vperm.xlu0 %896, %v887
        %v898 = vpop.permute.xlu0 %897
        %901 = vset.pattern.permute.xlu0 0
        %902 = vperm.xlu0 %901, %v888
        %v903 = vpop.permute.xlu0 %902
        %906 = vset.pattern.permute.xlu0 0
        %907 = vperm.xlu0 %906, %v889
        %v908 = vpop.permute.xlu0 %907
        %v911 = vsel %vm657, %v881, 0
        %v914 = vsel %vm657, %v882, 0
        %v917 = vsel %vm657, %v883, 0
        %v920 = vsel %vm657, %v884, 0
        %922 = vmatprep.subr.mxu0 0.0
        %923 = vmatpush1.msra.mxu0 0.0
        %924 = vmatprep.subr.mxu0 0.0
        %925 = vmatpush1.msra.mxu0 0.0
        %926 = vmatprep.subr.mxu0 0.0
        %927 = vmatpush1.msra.mxu0 0.0
        %928 = vmatprep.subr.mxu0 0.0
        %929 = vmatpush1.msra.mxu0 0.0
        %930 = vmatprep.subr.mxu0 0.0
        %931 = vmatpush1.msra.mxu0 0.0
        %932 = vmatprep.subr.mxu0 0.0
        %933 = vmatpush1.msra.mxu0 0.0
        %934 = vmatprep.subr.mxu0 0.0
        %935 = vmatpush1.msra.mxu0 0.0
        %936 = vmatprep.subr.mxu0 0.0
        %937 = vmatpush1.msra.mxu0 0.0
        %938 = vmatprep.subr.mxu0 0.0
        %939 = vmatpush1.msra.mxu0 0.0
        %940 = vmatprep.subr.mxu0 0.0
        %941 = vmatpush1.msra.mxu0 0.0
        %942 = vmatprep.subr.mxu0 0.0
        %943 = vmatpush1.msra.mxu0 0.0
        %944 = vmatprep.subr.mxu0 0.0
        %945 = vmatpush1.msra.mxu0 0.0
        %946 = vmatprep.subr.mxu0 %v877
        %947 = vmatpush1.msra.mxu0 %v876
        %948 = vmatprep.subr.mxu0 %v873
        %949 = vmatpush1.msra.mxu0 %v872
        %950 = vmatprep.subr.mxu0 %v869
        %951 = vmatpush1.msra.mxu0 %v868
        %952 = vmatprep.subr.mxu0 %v865
        %953 = vmatpush1.msra.mxu0 %v864
        %954 = vmatprep.subr.mxu0 0.0
        %955 = vmatpush2.msra.mxu0 0.0
        %956 = vmatprep.subr.mxu0 0.0
        %957 = vmatpush2.msra.mxu0 0.0
        %958 = vmatprep.subr.mxu0 0.0
        %959 = vmatpush2.msra.mxu0 0.0
        %960 = vmatprep.subr.mxu0 0.0
        %961 = vmatpush2.msra.mxu0 0.0
        %962 = vmatprep.subr.mxu0 0.0
        %963 = vmatpush2.msra.mxu0 0.0
        %964 = vmatprep.subr.mxu0 0.0
        %965 = vmatpush2.msra.mxu0 0.0
        %966 = vmatprep.subr.mxu0 0.0
        %967 = vmatpush2.msra.mxu0 0.0
        %968 = vmatprep.subr.mxu0 0.0
        %969 = vmatpush2.msra.mxu0 0.0
        %970 = vmatprep.subr.mxu0 0.0
        %971 = vmatpush2.msra.mxu0 0.0
        %972 = vmatprep.subr.mxu0 0.0
        %973 = vmatpush2.msra.mxu0 0.0
        %974 = vmatprep.subr.mxu0 0.0
        %975 = vmatpush2.msra.mxu0 0.0
        %976 = vmatprep.subr.mxu0 0.0
        %977 = vmatpush2.msra.mxu0 0.0
        %978 = vmatprep.subr.mxu0 0.0
        %979 = vmatpush2.msra.mxu0 0.0
        %980 = vmatprep.subr.mxu0 0.0
        %981 = vmatpush2.msra.mxu0 0.0
        %982 = vmatprep.subr.mxu0 0.0
        %983 = vmatpush2.msra.mxu0 0.0
        %984 = vmatprep.subr.mxu0 0.0
        %985 = vmatpush2.msra.mxu0 0.0
        %986 = vmatprep.mubr.f32.mxu0 0.0
        %987 = vmatmul.mubr.f32.gmra.mxu0 %v911
        %v988 = vpop.f32.mrf.mxu0
        %v989 = vadd.f32 %v893, %v988
        %v990 = vpop.f32.mrf.mxu0
        %v991 = vadd.f32 %v893, %v990
        %992 = vmatprep.mubr.f32.mxu0 0.0
        %993 = vmatmul.mubr.f32.gmra.mxu0 %v914
        %v994 = vpop.f32.mrf.mxu0
        %v995 = vadd.f32 %v898, %v994
        %v996 = vpop.f32.mrf.mxu0
        %v997 = vadd.f32 %v898, %v996
        %998 = vmatprep.mubr.f32.mxu0 0.0
        %999 = vmatmul.mubr.f32.gmra.mxu0 %v917
        %v1000 = vpop.f32.mrf.mxu0
        %v1001 = vadd.f32 %v903, %v1000
        %v1002 = vpop.f32.mrf.mxu0
        %v1003 = vadd.f32 %v903, %v1002
        %1004 = vmatprep.mubr.f32.mxu0 0.0
        %1005 = vmatmul.mubr.f32.gmra.mxu0 %v920
        %v1006 = vpop.f32.mrf.mxu0
        %v1007 = vadd.f32 %v908, %v1006
        %v1008 = vpop.f32.mrf.mxu0
        %v1009 = vadd.f32 %v908, %v1008
        %1010 = vdwg.mxu0
        %1011 = vmatprep.subr.mxu0 0.0
        %1012 = vmatpush1.msra.mxu0 0.0
        %1013 = vmatprep.subr.mxu0 0.0
        %1014 = vmatpush1.msra.mxu0 0.0
        %1015 = vmatprep.subr.mxu0 0.0
        %1016 = vmatpush1.msra.mxu0 0.0
        %1017 = vmatprep.subr.mxu0 0.0
        %1018 = vmatpush1.msra.mxu0 0.0
        %1019 = vmatprep.subr.mxu0 0.0
        %1020 = vmatpush1.msra.mxu0 0.0
        %1021 = vmatprep.subr.mxu0 0.0
        %1022 = vmatpush1.msra.mxu0 0.0
        %1023 = vmatprep.subr.mxu0 0.0
        %1024 = vmatpush1.msra.mxu0 0.0
        %1025 = vmatprep.subr.mxu0 0.0
        %1026 = vmatpush1.msra.mxu0 0.0
        %1027 = vmatprep.subr.mxu0 0.0
        %1028 = vmatpush1.msra.mxu0 0.0
        %1029 = vmatprep.subr.mxu0 0.0
        %1030 = vmatpush1.msra.mxu0 0.0
        %1031 = vmatprep.subr.mxu0 0.0
        %1032 = vmatpush1.msra.mxu0 0.0
        %1033 = vmatprep.subr.mxu0 0.0
        %1034 = vmatpush1.msra.mxu0 0.0
        %1035 = vmatprep.subr.mxu0 %v879
        %1036 = vmatpush1.msra.mxu0 %v878
        %1037 = vmatprep.subr.mxu0 %v875
        %1038 = vmatpush1.msra.mxu0 %v874
        %1039 = vmatprep.subr.mxu0 %v871
        %1040 = vmatpush1.msra.mxu0 %v870
        %1041 = vmatprep.subr.mxu0 %v867
        %1042 = vmatpush1.msra.mxu0 %v866
        %1043 = vmatprep.subr.mxu0 0.0
        %1044 = vmatpush2.msra.mxu0 0.0
        %1045 = vmatprep.subr.mxu0 0.0
        %1046 = vmatpush2.msra.mxu0 0.0
        %1047 = vmatprep.subr.mxu0 0.0
        %1048 = vmatpush2.msra.mxu0 0.0
        %1049 = vmatprep.subr.mxu0 0.0
        %1050 = vmatpush2.msra.mxu0 0.0
        %1051 = vmatprep.subr.mxu0 0.0
        %1052 = vmatpush2.msra.mxu0 0.0
        %1053 = vmatprep.subr.mxu0 0.0
        %1054 = vmatpush2.msra.mxu0 0.0
        %1055 = vmatprep.subr.mxu0 0.0
        %1056 = vmatpush2.msra.mxu0 0.0
        %1057 = vmatprep.subr.mxu0 0.0
        %1058 = vmatpush2.msra.mxu0 0.0
        %1059 = vmatprep.subr.mxu0 0.0
        %1060 = vmatpush2.msra.mxu0 0.0
        %1061 = vmatprep.subr.mxu0 0.0
        %1062 = vmatpush2.msra.mxu0 0.0
        %1063 = vmatprep.subr.mxu0 0.0
        %1064 = vmatpush2.msra.mxu0 0.0
        %1065 = vmatprep.subr.mxu0 0.0
        %1066 = vmatpush2.msra.mxu0 0.0
        %1067 = vmatprep.subr.mxu0 0.0
        %1068 = vmatpush2.msra.mxu0 0.0
        %1069 = vmatprep.subr.mxu0 0.0
        %1070 = vmatpush2.msra.mxu0 0.0
        %1071 = vmatprep.subr.mxu0 0.0
        %1072 = vmatpush2.msra.mxu0 0.0
        %1073 = vmatprep.subr.mxu0 0.0
        %1074 = vmatpush2.msra.mxu0 0.0
        %1075 = vmatprep.mubr.f32.mxu0 0.0
        %1076 = vmatmul.mubr.f32.gmra.mxu0 %v911
        %v1077 = vpop.f32.mrf.mxu0
        %v1078 = vadd.f32 %v893, %v1077
        %v1079 = vpop.f32.mrf.mxu0
        %v1080 = vadd.f32 %v893, %v1079
        %1081 = vmatprep.mubr.f32.mxu0 0.0
        %1082 = vmatmul.mubr.f32.gmra.mxu0 %v914
        %v1083 = vpop.f32.mrf.mxu0
        %v1084 = vadd.f32 %v898, %v1083
        %v1085 = vpop.f32.mrf.mxu0
        %v1086 = vadd.f32 %v898, %v1085
        %1087 = vmatprep.mubr.f32.mxu0 0.0
        %1088 = vmatmul.mubr.f32.gmra.mxu0 %v917
        %v1089 = vpop.f32.mrf.mxu0
        %v1090 = vadd.f32 %v903, %v1089
        %v1091 = vpop.f32.mrf.mxu0
        %v1092 = vadd.f32 %v903, %v1091
        %1093 = vmatprep.mubr.f32.mxu0 0.0
        %1094 = vmatmul.mubr.f32.gmra.mxu0 %v920
        %v1095 = vpop.f32.mrf.mxu0
        %v1096 = vadd.f32 %v908, %v1095
        %v1097 = vpop.f32.mrf.mxu0
        %v1098 = vadd.f32 %v908, %v1097
        %1099 = vdwg.mxu0
        %v1100 = vtanh.pop %v989
        %v1101 = vtanh.pop %v991
        %v1102 = vtanh.pop %v1078
        %v1103 = vtanh.pop %v1080
        %v1104 = vtanh.pop %v995
        %v1105 = vtanh.pop %v997
        %v1106 = vtanh.pop %v1084
        %v1107 = vtanh.pop %v1086
        %v1108 = vtanh.pop %v1001
        %v1109 = vtanh.pop %v1003
        %v1110 = vtanh.pop %v1090
        %v1111 = vtanh.pop %v1092
        %v1112 = vtanh.pop %v1007
        %v1113 = vtanh.pop %v1009
        %v1114 = vtanh.pop %v1096
        %v1115 = vtanh.pop %v1098
        %v1116 = vadd.f32 %v864, %v1100
        %v1117 = vadd.f32 %v865, %v1101
        %v1118 = vadd.f32 %v866, %v1102
        %v1119 = vadd.f32 %v867, %v1103
        %v1120 = vadd.f32 %v868, %v1104
        %v1121 = vadd.f32 %v869, %v1105
        %v1122 = vadd.f32 %v870, %v1106
        %v1123 = vadd.f32 %v871, %v1107
        %v1124 = vadd.f32 %v872, %v1108
        %v1125 = vadd.f32 %v873, %v1109
        %v1126 = vadd.f32 %v874, %v1110
        %v1127 = vadd.f32 %v875, %v1111
        %v1128 = vadd.f32 %v876, %v1112
        %v1129 = vadd.f32 %v877, %v1113
        %v1130 = vadd.f32 %v878, %v1114
        %v1131 = vadd.f32 %v879, %v1115
        %v1132 = vld [vmem:[%s6] sm:$0xff]
        %v1133 = vld [vmem:[%s7] sm:$0xff]
        %1135 = vset.pattern.permute.xlu0 0
        %1136 = vperm.xlu0 %1135, %v1133
        %v1137 = vpop.permute.xlu0 %1136
        %v1140 = vsel %vm657, %v1132, 0
        %1142 = vmatprep.subr.mxu0 0.0
        %1143 = vmatpush1.msra.mxu0 0.0
        %1144 = vmatprep.subr.mxu0 0.0
        %1145 = vmatpush1.msra.mxu0 0.0
        %1146 = vmatprep.subr.mxu0 0.0
        %1147 = vmatpush1.msra.mxu0 0.0
        %1148 = vmatprep.subr.mxu0 0.0
        %1149 = vmatpush1.msra.mxu0 0.0
        %1150 = vmatprep.subr.mxu0 0.0
        %1151 = vmatpush1.msra.mxu0 0.0
        %1152 = vmatprep.subr.mxu0 0.0
        %1153 = vmatpush1.msra.mxu0 0.0
        %1154 = vmatprep.subr.mxu0 0.0
        %1155 = vmatpush1.msra.mxu0 0.0
        %1156 = vmatprep.subr.mxu0 0.0
        %1157 = vmatpush1.msra.mxu0 0.0
        %1158 = vmatprep.subr.mxu0 0.0
        %1159 = vmatpush1.msra.mxu0 0.0
        %1160 = vmatprep.subr.mxu0 0.0
        %1161 = vmatpush1.msra.mxu0 0.0
        %1162 = vmatprep.subr.mxu0 0.0
        %1163 = vmatpush1.msra.mxu0 0.0
        %1164 = vmatprep.subr.mxu0 0.0
        %1165 = vmatpush1.msra.mxu0 0.0
        %1166 = vmatprep.subr.mxu0 %v1129
        %1167 = vmatpush1.msra.mxu0 %v1128
        %1168 = vmatprep.subr.mxu0 %v1125
        %1169 = vmatpush1.msra.mxu0 %v1124
        %1170 = vmatprep.subr.mxu0 %v1121
        %1171 = vmatpush1.msra.mxu0 %v1120
        %1172 = vmatprep.subr.mxu0 %v1117
        %1173 = vmatpush1.msra.mxu0 %v1116
        %1174 = vmatprep.subr.mxu0 0.0
        %1175 = vmatpush2.msra.mxu0 0.0
        %1176 = vmatprep.subr.mxu0 0.0
        %1177 = vmatpush2.msra.mxu0 0.0
        %1178 = vmatprep.subr.mxu0 0.0
        %1179 = vmatpush2.msra.mxu0 0.0
        %1180 = vmatprep.subr.mxu0 0.0
        %1181 = vmatpush2.msra.mxu0 0.0
        %1182 = vmatprep.subr.mxu0 0.0
        %1183 = vmatpush2.msra.mxu0 0.0
        %1184 = vmatprep.subr.mxu0 0.0
        %1185 = vmatpush2.msra.mxu0 0.0
        %1186 = vmatprep.subr.mxu0 0.0
        %1187 = vmatpush2.msra.mxu0 0.0
        %1188 = vmatprep.subr.mxu0 0.0
        %1189 = vmatpush2.msra.mxu0 0.0
        %1190 = vmatprep.subr.mxu0 0.0
        %1191 = vmatpush2.msra.mxu0 0.0
        %1192 = vmatprep.subr.mxu0 0.0
        %1193 = vmatpush2.msra.mxu0 0.0
        %1194 = vmatprep.subr.mxu0 0.0
        %1195 = vmatpush2.msra.mxu0 0.0
        %1196 = vmatprep.subr.mxu0 0.0
        %1197 = vmatpush2.msra.mxu0 0.0
        %1198 = vmatprep.subr.mxu0 0.0
        %1199 = vmatpush2.msra.mxu0 0.0
        %1200 = vmatprep.subr.mxu0 0.0
        %1201 = vmatpush2.msra.mxu0 0.0
        %1202 = vmatprep.subr.mxu0 0.0
        %1203 = vmatpush2.msra.mxu0 0.0
        %1204 = vmatprep.subr.mxu0 0.0
        %1205 = vmatpush2.msra.mxu0 0.0
        %1206 = vmatprep.mubr.f32.mxu0 0.0
        %1207 = vmatmul.mubr.f32.gmra.mxu0 %v1140
        %v1208 = vpop.f32.mrf.mxu0
        %v1209 = vadd.f32 %v1137, %v1208
        %v1210 = vpop.f32.mrf.mxu0
        %v1211 = vadd.f32 %v1137, %v1210
        %1212 = vdwg.mxu0
        %1213 = vmatprep.subr.mxu0 0.0
        %1214 = vmatpush1.msra.mxu0 0.0
        %1215 = vmatprep.subr.mxu0 0.0
        %1216 = vmatpush1.msra.mxu0 0.0
        %1217 = vmatprep.subr.mxu0 0.0
        %1218 = vmatpush1.msra.mxu0 0.0
        %1219 = vmatprep.subr.mxu0 0.0
        %1220 = vmatpush1.msra.mxu0 0.0
        %1221 = vmatprep.subr.mxu0 0.0
        %1222 = vmatpush1.msra.mxu0 0.0
        %1223 = vmatprep.subr.mxu0 0.0
        %1224 = vmatpush1.msra.mxu0 0.0
        %1225 = vmatprep.subr.mxu0 0.0
        %1226 = vmatpush1.msra.mxu0 0.0
        %1227 = vmatprep.subr.mxu0 0.0
        %1228 = vmatpush1.msra.mxu0 0.0
        %1229 = vmatprep.subr.mxu0 0.0
        %1230 = vmatpush1.msra.mxu0 0.0
        %1231 = vmatprep.subr.mxu0 0.0
        %1232 = vmatpush1.msra.mxu0 0.0
        %1233 = vmatprep.subr.mxu0 0.0
        %1234 = vmatpush1.msra.mxu0 0.0
        %1235 = vmatprep.subr.mxu0 0.0
        %1236 = vmatpush1.msra.mxu0 0.0
        %1237 = vmatprep.subr.mxu0 %v1131
        %1238 = vmatpush1.msra.mxu0 %v1130
        %1239 = vmatprep.subr.mxu0 %v1127
        %1240 = vmatpush1.msra.mxu0 %v1126
        %1241 = vmatprep.subr.mxu0 %v1123
        %1242 = vmatpush1.msra.mxu0 %v1122
        %1243 = vmatprep.subr.mxu0 %v1119
        %1244 = vmatpush1.msra.mxu0 %v1118
        %1245 = vmatprep.subr.mxu0 0.0
        %1246 = vmatpush2.msra.mxu0 0.0
        %1247 = vmatprep.subr.mxu0 0.0
        %1248 = vmatpush2.msra.mxu0 0.0
        %1249 = vmatprep.subr.mxu0 0.0
        %1250 = vmatpush2.msra.mxu0 0.0
        %1251 = vmatprep.subr.mxu0 0.0
        %1252 = vmatpush2.msra.mxu0 0.0
        %1253 = vmatprep.subr.mxu0 0.0
        %1254 = vmatpush2.msra.mxu0 0.0
        %1255 = vmatprep.subr.mxu0 0.0
        %1256 = vmatpush2.msra.mxu0 0.0
        %1257 = vmatprep.subr.mxu0 0.0
        %1258 = vmatpush2.msra.mxu0 0.0
        %1259 = vmatprep.subr.mxu0 0.0
        %1260 = vmatpush2.msra.mxu0 0.0
        %1261 = vmatprep.subr.mxu0 0.0
        %1262 = vmatpush2.msra.mxu0 0.0
        %1263 = vmatprep.subr.mxu0 0.0
        %1264 = vmatpush2.msra.mxu0 0.0
        %1265 = vmatprep.subr.mxu0 0.0
        %1266 = vmatpush2.msra.mxu0 0.0
        %1267 = vmatprep.subr.mxu0 0.0
        %1268 = vmatpush2.msra.mxu0 0.0
        %1269 = vmatprep.subr.mxu0 0.0
        %1270 = vmatpush2.msra.mxu0 0.0
        %1271 = vmatprep.subr.mxu0 0.0
        %1272 = vmatpush2.msra.mxu0 0.0
        %1273 = vmatprep.subr.mxu0 0.0
        %1274 = vmatpush2.msra.mxu0 0.0
        %1275 = vmatprep.subr.mxu0 0.0
        %1276 = vmatpush2.msra.mxu0 0.0
        %1277 = vmatprep.mubr.f32.mxu0 0.0
        %1278 = vmatmul.mubr.f32.gmra.mxu0 %v1140
        %v1279 = vpop.f32.mrf.mxu0
        %v1280 = vadd.f32 %v1137, %v1279
        %v1281 = vpop.f32.mrf.mxu0
        %v1282 = vadd.f32 %v1137, %v1281
        %1283 = vdwg.mxu0
        %v1284 = vtanh.pop %v1209
        %v1285 = vtanh.pop %v1211
        %v1286 = vtanh.pop %v1280
        %v1287 = vtanh.pop %v1282
        %v1288 = vld [vmem:[%s8] sm:$0xff]
        %v1289 = vld [vmem:[%s8 + $0x8] sm:$0xff]
        %v1290 = vld [vmem:[%s8 + $0x10] sm:$0xff]
        %v1291 = vld [vmem:[%s8 + $0x18] sm:$0xff]
        %v1292 = vld [vmem:[%s8 + $0x20] sm:$0xff]
        %v1293 = vld [vmem:[%s8 + $0x28] sm:$0xff]
        %v1294 = vld [vmem:[%s8 + $0x30] sm:$0xff]
        %v1295 = vld [vmem:[%s8 + $0x38] sm:$0xff]
        %v1296 = vld [vmem:[%s8 + $0x40] sm:$0xff]
        %v1297 = vld [vmem:[%s8 + $0x48] sm:$0xff]
        %v1298 = vld [vmem:[%s8 + $0x50] sm:$0xff]
        %v1299 = vld [vmem:[%s8 + $0x58] sm:$0xff]
        %v1300 = vld [vmem:[%s8 + $0x60] sm:$0xff]
        %v1301 = vld [vmem:[%s8 + $0x68] sm:$0xff]
        %v1302 = vld [vmem:[%s8 + $0x70] sm:$0xff]
        %v1303 = vld [vmem:[%s8 + $0x78] sm:$0xff]
        %v1304 = vld [vmem:[%s8 + $0x80] sm:$0xff]
        %v1305 = vld [vmem:[%s8 + $0x88] sm:$0xff]
        %v1306 = vld [vmem:[%s8 + $0x90] sm:$0xff]
        %v1307 = vld [vmem:[%s8 + $0x98] sm:$0xff]
        %v1308 = vld [vmem:[%s8 + $0xa0] sm:$0xff]
        %v1309 = vld [vmem:[%s8 + $0xa8] sm:$0xff]
        %v1310 = vld [vmem:[%s8 + $0xb0] sm:$0xff]
        %v1311 = vld [vmem:[%s8 + $0xb8] sm:$0xff]
        %v1312 = vld [vmem:[%s8 + $0xc0] sm:$0xff]
        %v1313 = vld [vmem:[%s9] sm:$0xff]
        %v1314 = vld [vmem:[%s9 + $0x8] sm:$0xff]
        %v1315 = vld [vmem:[%s9 + $0x10] sm:$0xff]
        %v1316 = vld [vmem:[%s9 + $0x18] sm:$0xff]
        %v1317 = vld [vmem:[%s9 + $0x20] sm:$0xff]
        %v1318 = vld [vmem:[%s9 + $0x28] sm:$0xff]
        %v1319 = vld [vmem:[%s9 + $0x30] sm:$0xff]
        %v1320 = vld [vmem:[%s9 + $0x38] sm:$0xff]
        %v1321 = vld [vmem:[%s9 + $0x40] sm:$0xff]
        %v1322 = vld [vmem:[%s9 + $0x48] sm:$0xff]
        %v1323 = vld [vmem:[%s9 + $0x50] sm:$0xff]
        %v1324 = vld [vmem:[%s9 + $0x58] sm:$0xff]
        %v1325 = vld [vmem:[%s9 + $0x60] sm:$0xff]
        %v1326 = vld [vmem:[%s9 + $0x68] sm:$0xff]
        %v1327 = vld [vmem:[%s9 + $0x70] sm:$0xff]
        %v1328 = vld [vmem:[%s9 + $0x78] sm:$0xff]
        %v1329 = vld [vmem:[%s9 + $0x80] sm:$0xff]
        %v1330 = vld [vmem:[%s9 + $0x88] sm:$0xff]
        %v1331 = vld [vmem:[%s9 + $0x90] sm:$0xff]
        %v1332 = vld [vmem:[%s9 + $0x98] sm:$0xff]
        %v1333 = vld [vmem:[%s9 + $0xa0] sm:$0xff]
        %v1334 = vld [vmem:[%s9 + $0xa8] sm:$0xff]
        %v1335 = vld [vmem:[%s9 + $0xb0] sm:$0xff]
        %v1336 = vld [vmem:[%s9 + $0xb8] sm:$0xff]
        %v1337 = vld [vmem:[%s9 + $0xc0] sm:$0xff]
        %1339 = vset.pattern.permute.xlu0 0
        %1340 = vperm.xlu0 %1339, %v1313
        %v1341 = vpop.permute.xlu0 %1340
        %1344 = vset.pattern.permute.xlu0 0
        %1345 = vperm.xlu0 %1344, %v1314
        %v1346 = vpop.permute.xlu0 %1345
        %1349 = vset.pattern.permute.xlu0 0
        %1350 = vperm.xlu0 %1349, %v1315
        %v1351 = vpop.permute.xlu0 %1350
        %1354 = vset.pattern.permute.xlu0 0
        %1355 = vperm.xlu0 %1354, %v1316
        %v1356 = vpop.permute.xlu0 %1355
        %1359 = vset.pattern.permute.xlu0 0
        %1360 = vperm.xlu0 %1359, %v1317
        %v1361 = vpop.permute.xlu0 %1360
        %1364 = vset.pattern.permute.xlu0 0
        %1365 = vperm.xlu0 %1364, %v1318
        %v1366 = vpop.permute.xlu0 %1365
        %1369 = vset.pattern.permute.xlu0 0
        %1370 = vperm.xlu0 %1369, %v1319
        %v1371 = vpop.permute.xlu0 %1370
        %1374 = vset.pattern.permute.xlu0 0
        %1375 = vperm.xlu0 %1374, %v1320
        %v1376 = vpop.permute.xlu0 %1375
        %1379 = vset.pattern.permute.xlu0 0
        %1380 = vperm.xlu0 %1379, %v1321
        %v1381 = vpop.permute.xlu0 %1380
        %1384 = vset.pattern.permute.xlu0 0
        %1385 = vperm.xlu0 %1384, %v1322
        %v1386 = vpop.permute.xlu0 %1385
        %1389 = vset.pattern.permute.xlu0 0
        %1390 = vperm.xlu0 %1389, %v1323
        %v1391 = vpop.permute.xlu0 %1390
        %1394 = vset.pattern.permute.xlu0 0
        %1395 = vperm.xlu0 %1394, %v1324
        %v1396 = vpop.permute.xlu0 %1395
        %1399 = vset.pattern.permute.xlu0 0
        %1400 = vperm.xlu0 %1399, %v1325
        %v1401 = vpop.permute.xlu0 %1400
        %1404 = vset.pattern.permute.xlu0 0
        %1405 = vperm.xlu0 %1404, %v1326
        %v1406 = vpop.permute.xlu0 %1405
        %1409 = vset.pattern.permute.xlu0 0
        %1410 = vperm.xlu0 %1409, %v1327
        %v1411 = vpop.permute.xlu0 %1410
        %1414 = vset.pattern.permute.xlu0 0
        %1415 = vperm.xlu0 %1414, %v1328
        %v1416 = vpop.permute.xlu0 %1415
        %1419 = vset.pattern.permute.xlu0 0
        %1420 = vperm.xlu0 %1419, %v1329
        %v1421 = vpop.permute.xlu0 %1420
        %1424 = vset.pattern.permute.xlu0 0
        %1425 = vperm.xlu0 %1424, %v1330
        %v1426 = vpop.permute.xlu0 %1425
        %1429 = vset.pattern.permute.xlu0 0
        %1430 = vperm.xlu0 %1429, %v1331
        %v1431 = vpop.permute.xlu0 %1430
        %1434 = vset.pattern.permute.xlu0 0
        %1435 = vperm.xlu0 %1434, %v1332
        %v1436 = vpop.permute.xlu0 %1435
        %1439 = vset.pattern.permute.xlu0 0
        %1440 = vperm.xlu0 %1439, %v1333
        %v1441 = vpop.permute.xlu0 %1440
        %1444 = vset.pattern.permute.xlu0 0
        %1445 = vperm.xlu0 %1444, %v1334
        %v1446 = vpop.permute.xlu0 %1445
        %1449 = vset.pattern.permute.xlu0 0
        %1450 = vperm.xlu0 %1449, %v1335
        %v1451 = vpop.permute.xlu0 %1450
        %1454 = vset.pattern.permute.xlu0 0
        %1455 = vperm.xlu0 %1454, %v1336
        %v1456 = vpop.permute.xlu0 %1455
        %1459 = vset.pattern.permute.xlu0 0
        %1460 = vperm.xlu0 %1459, %v1337
        %v1461 = vpop.permute.xlu0 %1460
        %vm1462 = vcmask 64512
        %v1464 = vsel %vm1462, %v1288, 0
        %v1467 = vsel %vm1462, %v1289, 0
        %v1470 = vsel %vm1462, %v1290, 0
        %v1473 = vsel %vm1462, %v1291, 0
        %v1476 = vsel %vm1462, %v1292, 0
        %v1479 = vsel %vm1462, %v1293, 0
        %v1482 = vsel %vm1462, %v1294, 0
        %v1485 = vsel %vm1462, %v1295, 0
        %v1488 = vsel %vm1462, %v1296, 0
        %v1491 = vsel %vm1462, %v1297, 0
        %v1494 = vsel %vm1462, %v1298, 0
        %v1497 = vsel %vm1462, %v1299, 0
        %v1500 = vsel %vm1462, %v1300, 0
        %v1503 = vsel %vm1462, %v1301, 0
        %v1506 = vsel %vm1462, %v1302, 0
        %v1509 = vsel %vm1462, %v1303, 0
        %v1512 = vsel %vm1462, %v1304, 0
        %v1515 = vsel %vm1462, %v1305, 0
        %v1518 = vsel %vm1462, %v1306, 0
        %v1521 = vsel %vm1462, %v1307, 0
        %v1524 = vsel %vm1462, %v1308, 0
        %v1527 = vsel %vm1462, %v1309, 0
        %v1530 = vsel %vm1462, %v1310, 0
        %v1533 = vsel %vm1462, %v1311, 0
        %v1536 = vsel %vm1462, %v1312, 0
        %1538 = vmatprep.subr.mxu0 0.0
        %1539 = vmatpush1.msra.mxu0 0.0
        %1540 = vmatprep.subr.mxu0 0.0
        %1541 = vmatpush1.msra.mxu0 0.0
        %1542 = vmatprep.subr.mxu0 0.0
        %1543 = vmatpush1.msra.mxu0 0.0
        %1544 = vmatprep.subr.mxu0 0.0
        %1545 = vmatpush1.msra.mxu0 0.0
        %1546 = vmatprep.subr.mxu0 0.0
        %1547 = vmatpush1.msra.mxu0 0.0
        %1548 = vmatprep.subr.mxu0 0.0
        %1549 = vmatpush1.msra.mxu0 0.0
        %1550 = vmatprep.subr.mxu0 0.0
        %1551 = vmatpush1.msra.mxu0 0.0
        %1552 = vmatprep.subr.mxu0 0.0
        %1553 = vmatpush1.msra.mxu0 0.0
        %1554 = vmatprep.subr.mxu0 0.0
        %1555 = vmatpush1.msra.mxu0 0.0
        %1556 = vmatprep.subr.mxu0 0.0
        %1557 = vmatpush1.msra.mxu0 0.0
        %1558 = vmatprep.subr.mxu0 0.0
        %1559 = vmatpush1.msra.mxu0 0.0
        %1560 = vmatprep.subr.mxu0 0.0
        %1561 = vmatpush1.msra.mxu0 0.0
        %1562 = vmatprep.subr.mxu0 0.0
        %1563 = vmatpush1.msra.mxu0 0.0
        %1564 = vmatprep.subr.mxu0 0.0
        %1565 = vmatpush1.msra.mxu0 0.0
        %1566 = vmatprep.subr.mxu0 0.0
        %1567 = vmatpush1.msra.mxu0 0.0
        %1568 = vmatprep.subr.mxu0 %v1285
        %1569 = vmatpush1.msra.mxu0 %v1284
        %1570 = vmatprep.subr.mxu0 0.0
        %1571 = vmatpush2.msra.mxu0 0.0
        %1572 = vmatprep.subr.mxu0 0.0
        %1573 = vmatpush2.msra.mxu0 0.0
        %1574 = vmatprep.subr.mxu0 0.0
        %1575 = vmatpush2.msra.mxu0 0.0
        %1576 = vmatprep.subr.mxu0 0.0
        %1577 = vmatpush2.msra.mxu0 0.0
        %1578 = vmatprep.subr.mxu0 0.0
        %1579 = vmatpush2.msra.mxu0 0.0
        %1580 = vmatprep.subr.mxu0 0.0
        %1581 = vmatpush2.msra.mxu0 0.0
        %1582 = vmatprep.subr.mxu0 0.0
        %1583 = vmatpush2.msra.mxu0 0.0
        %1584 = vmatprep.subr.mxu0 0.0
        %1585 = vmatpush2.msra.mxu0 0.0
        %1586 = vmatprep.subr.mxu0 0.0
        %1587 = vmatpush2.msra.mxu0 0.0
        %1588 = vmatprep.subr.mxu0 0.0
        %1589 = vmatpush2.msra.mxu0 0.0
        %1590 = vmatprep.subr.mxu0 0.0
        %1591 = vmatpush2.msra.mxu0 0.0
        %1592 = vmatprep.subr.mxu0 0.0
        %1593 = vmatpush2.msra.mxu0 0.0
        %1594 = vmatprep.subr.mxu0 0.0
        %1595 = vmatpush2.msra.mxu0 0.0
        %1596 = vmatprep.subr.mxu0 0.0
        %1597 = vmatpush2.msra.mxu0 0.0
        %1598 = vmatprep.subr.mxu0 0.0
        %1599 = vmatpush2.msra.mxu0 0.0
        %1600 = vmatprep.subr.mxu0 0.0
        %1601 = vmatpush2.msra.mxu0 0.0
        %1602 = vmatprep.mubr.f32.mxu0 0.0
        %1603 = vmatmul.mubr.f32.gmra.mxu0 %v1464
        %v1604 = vpop.f32.mrf.mxu0
        %v1605 = vadd.f32 %v1341, %v1604
        %v1606 = vpop.f32.mrf.mxu0
        %v1607 = vadd.f32 %v1341, %v1606
        %1608 = vmatprep.mubr.f32.mxu0 0.0
        %1609 = vmatmul.mubr.f32.gmra.mxu0 %v1467
        %v1610 = vpop.f32.mrf.mxu0
        %v1611 = vadd.f32 %v1346, %v1610
        %v1612 = vpop.f32.mrf.mxu0
        %v1613 = vadd.f32 %v1346, %v1612
        %1614 = vmatprep.mubr.f32.mxu0 0.0
        %1615 = vmatmul.mubr.f32.gmra.mxu0 %v1470
        %v1616 = vpop.f32.mrf.mxu0
        %v1617 = vadd.f32 %v1351, %v1616
        %v1618 = vpop.f32.mrf.mxu0
        %v1619 = vadd.f32 %v1351, %v1618
        %1620 = vmatprep.mubr.f32.mxu0 0.0
        %1621 = vmatmul.mubr.f32.gmra.mxu0 %v1473
        %v1622 = vpop.f32.mrf.mxu0
        %v1623 = vadd.f32 %v1356, %v1622
        %v1624 = vpop.f32.mrf.mxu0
        %v1625 = vadd.f32 %v1356, %v1624
        %1626 = vmatprep.mubr.f32.mxu0 0.0
        %1627 = vmatmul.mubr.f32.gmra.mxu0 %v1476
        %v1628 = vpop.f32.mrf.mxu0
        %v1629 = vadd.f32 %v1361, %v1628
        %v1630 = vpop.f32.mrf.mxu0
        %v1631 = vadd.f32 %v1361, %v1630
        %1632 = vmatprep.mubr.f32.mxu0 0.0
        %1633 = vmatmul.mubr.f32.gmra.mxu0 %v1479
        %v1634 = vpop.f32.mrf.mxu0
        %v1635 = vadd.f32 %v1366, %v1634
        %v1636 = vpop.f32.mrf.mxu0
        %v1637 = vadd.f32 %v1366, %v1636
        %1638 = vmatprep.mubr.f32.mxu0 0.0
        %1639 = vmatmul.mubr.f32.gmra.mxu0 %v1482
        %v1640 = vpop.f32.mrf.mxu0
        %v1641 = vadd.f32 %v1371, %v1640
        %v1642 = vpop.f32.mrf.mxu0
        %v1643 = vadd.f32 %v1371, %v1642
        %1644 = vmatprep.mubr.f32.mxu0 0.0
        %1645 = vmatmul.mubr.f32.gmra.mxu0 %v1485
        %v1646 = vpop.f32.mrf.mxu0
        %v1647 = vadd.f32 %v1376, %v1646
        %v1648 = vpop.f32.mrf.mxu0
        %v1649 = vadd.f32 %v1376, %v1648
        %1650 = vmatprep.mubr.f32.mxu0 0.0
        %1651 = vmatmul.mubr.f32.gmra.mxu0 %v1488
        %v1652 = vpop.f32.mrf.mxu0
        %v1653 = vadd.f32 %v1381, %v1652
        %v1654 = vpop.f32.mrf.mxu0
        %v1655 = vadd.f32 %v1381, %v1654
        %1656 = vmatprep.mubr.f32.mxu0 0.0
        %1657 = vmatmul.mubr.f32.gmra.mxu0 %v1491
        %v1658 = vpop.f32.mrf.mxu0
        %v1659 = vadd.f32 %v1386, %v1658
        %v1660 = vpop.f32.mrf.mxu0
        %v1661 = vadd.f32 %v1386, %v1660
        %1662 = vmatprep.mubr.f32.mxu0 0.0
        %1663 = vmatmul.mubr.f32.gmra.mxu0 %v1494
        %v1664 = vpop.f32.mrf.mxu0
        %v1665 = vadd.f32 %v1391, %v1664
        %v1666 = vpop.f32.mrf.mxu0
        %v1667 = vadd.f32 %v1391, %v1666
        %1668 = vmatprep.mubr.f32.mxu0 0.0
        %1669 = vmatmul.mubr.f32.gmra.mxu0 %v1497
        %v1670 = vpop.f32.mrf.mxu0
        %v1671 = vadd.f32 %v1396, %v1670
        %v1672 = vpop.f32.mrf.mxu0
        %v1673 = vadd.f32 %v1396, %v1672
        %1674 = vmatprep.mubr.f32.mxu0 0.0
        %1675 = vmatmul.mubr.f32.gmra.mxu0 %v1500
        %v1676 = vpop.f32.mrf.mxu0
        %v1677 = vadd.f32 %v1401, %v1676
        %v1678 = vpop.f32.mrf.mxu0
        %v1679 = vadd.f32 %v1401, %v1678
        %1680 = vmatprep.mubr.f32.mxu0 0.0
        %1681 = vmatmul.mubr.f32.gmra.mxu0 %v1503
        %v1682 = vpop.f32.mrf.mxu0
        %v1683 = vadd.f32 %v1406, %v1682
        %v1684 = vpop.f32.mrf.mxu0
        %v1685 = vadd.f32 %v1406, %v1684
        %1686 = vmatprep.mubr.f32.mxu0 0.0
        %1687 = vmatmul.mubr.f32.gmra.mxu0 %v1506
        %v1688 = vpop.f32.mrf.mxu0
        %v1689 = vadd.f32 %v1411, %v1688
        %v1690 = vpop.f32.mrf.mxu0
        %v1691 = vadd.f32 %v1411, %v1690
        %1692 = vmatprep.mubr.f32.mxu0 0.0
        %1693 = vmatmul.mubr.f32.gmra.mxu0 %v1509
        %v1694 = vpop.f32.mrf.mxu0
        %v1695 = vadd.f32 %v1416, %v1694
        %v1696 = vpop.f32.mrf.mxu0
        %v1697 = vadd.f32 %v1416, %v1696
        %1698 = vmatprep.mubr.f32.mxu0 0.0
        %1699 = vmatmul.mubr.f32.gmra.mxu0 %v1512
        %v1700 = vpop.f32.mrf.mxu0
        %v1701 = vadd.f32 %v1421, %v1700
        %v1702 = vpop.f32.mrf.mxu0
        %v1703 = vadd.f32 %v1421, %v1702
        %1704 = vmatprep.mubr.f32.mxu0 0.0
        %1705 = vmatmul.mubr.f32.gmra.mxu0 %v1515
        %v1706 = vpop.f32.mrf.mxu0
        %v1707 = vadd.f32 %v1426, %v1706
        %v1708 = vpop.f32.mrf.mxu0
        %v1709 = vadd.f32 %v1426, %v1708
        %1710 = vmatprep.mubr.f32.mxu0 0.0
        %1711 = vmatmul.mubr.f32.gmra.mxu0 %v1518
        %v1712 = vpop.f32.mrf.mxu0
        %v1713 = vadd.f32 %v1431, %v1712
        %v1714 = vpop.f32.mrf.mxu0
        %v1715 = vadd.f32 %v1431, %v1714
        %1716 = vmatprep.mubr.f32.mxu0 0.0
        %1717 = vmatmul.mubr.f32.gmra.mxu0 %v1521
        %v1718 = vpop.f32.mrf.mxu0
        %v1719 = vadd.f32 %v1436, %v1718
        %v1720 = vpop.f32.mrf.mxu0
        %v1721 = vadd.f32 %v1436, %v1720
        %1722 = vmatprep.mubr.f32.mxu0 0.0
        %1723 = vmatmul.mubr.f32.gmra.mxu0 %v1524
        %v1724 = vpop.f32.mrf.mxu0
        %v1725 = vadd.f32 %v1441, %v1724
        %v1726 = vpop.f32.mrf.mxu0
        %v1727 = vadd.f32 %v1441, %v1726
        %1728 = vmatprep.mubr.f32.mxu0 0.0
        %1729 = vmatmul.mubr.f32.gmra.mxu0 %v1527
        %v1730 = vpop.f32.mrf.mxu0
        %v1731 = vadd.f32 %v1446, %v1730
        %v1732 = vpop.f32.mrf.mxu0
        %v1733 = vadd.f32 %v1446, %v1732
        %1734 = vmatprep.mubr.f32.mxu0 0.0
        %1735 = vmatmul.mubr.f32.gmra.mxu0 %v1530
        %v1736 = vpop.f32.mrf.mxu0
        %v1737 = vadd.f32 %v1451, %v1736
        %v1738 = vpop.f32.mrf.mxu0
        %v1739 = vadd.f32 %v1451, %v1738
        %1740 = vmatprep.mubr.f32.mxu0 0.0
        %1741 = vmatmul.mubr.f32.gmra.mxu0 %v1533
        %v1742 = vpop.f32.mrf.mxu0
        %v1743 = vadd.f32 %v1456, %v1742
        %v1744 = vpop.f32.mrf.mxu0
        %v1745 = vadd.f32 %v1456, %v1744
        %1746 = vmatprep.mubr.f32.mxu0 0.0
        %1747 = vmatmul.mubr.f32.gmra.mxu0 %v1536
        %v1748 = vpop.f32.mrf.mxu0
        %v1749 = vpop.f32.mrf.mxu0
        %1750 = vdwg.mxu0
        %1751 = vmatprep.subr.mxu0 0.0
        %1752 = vmatpush1.msra.mxu0 0.0
        %1753 = vmatprep.subr.mxu0 0.0
        %1754 = vmatpush1.msra.mxu0 0.0
        %1755 = vmatprep.subr.mxu0 0.0
        %1756 = vmatpush1.msra.mxu0 0.0
        %1757 = vmatprep.subr.mxu0 0.0
        %1758 = vmatpush1.msra.mxu0 0.0
        %1759 = vmatprep.subr.mxu0 0.0
        %1760 = vmatpush1.msra.mxu0 0.0
        %1761 = vmatprep.subr.mxu0 0.0
        %1762 = vmatpush1.msra.mxu0 0.0
        %1763 = vmatprep.subr.mxu0 0.0
        %1764 = vmatpush1.msra.mxu0 0.0
        %1765 = vmatprep.subr.mxu0 0.0
        %1766 = vmatpush1.msra.mxu0 0.0
        %1767 = vmatprep.subr.mxu0 0.0
        %1768 = vmatpush1.msra.mxu0 0.0
        %1769 = vmatprep.subr.mxu0 0.0
        %1770 = vmatpush1.msra.mxu0 0.0
        %1771 = vmatprep.subr.mxu0 0.0
        %1772 = vmatpush1.msra.mxu0 0.0
        %1773 = vmatprep.subr.mxu0 0.0
        %1774 = vmatpush1.msra.mxu0 0.0
        %1775 = vmatprep.subr.mxu0 0.0
        %1776 = vmatpush1.msra.mxu0 0.0
        %1777 = vmatprep.subr.mxu0 0.0
        %1778 = vmatpush1.msra.mxu0 0.0
        %1779 = vmatprep.subr.mxu0 0.0
        %1780 = vmatpush1.msra.mxu0 0.0
        %1781 = vmatprep.subr.mxu0 %v1287
        %1782 = vmatpush1.msra.mxu0 %v1286
        %1783 = vmatprep.subr.mxu0 0.0
        %1784 = vmatpush2.msra.mxu0 0.0
        %1785 = vmatprep.subr.mxu0 0.0
        %1786 = vmatpush2.msra.mxu0 0.0
        %1787 = vmatprep.subr.mxu0 0.0
        %1788 = vmatpush2.msra.mxu0 0.0
        %1789 = vmatprep.subr.mxu0 0.0
        %1790 = vmatpush2.msra.mxu0 0.0
        %1791 = vmatprep.subr.mxu0 0.0
        %1792 = vmatpush2.msra.mxu0 0.0
        %1793 = vmatprep.subr.mxu0 0.0
        %1794 = vmatpush2.msra.mxu0 0.0
        %1795 = vmatprep.subr.mxu0 0.0
        %1796 = vmatpush2.msra.mxu0 0.0
        %1797 = vmatprep.subr.mxu0 0.0
        %1798 = vmatpush2.msra.mxu0 0.0
        %1799 = vmatprep.subr.mxu0 0.0
        %1800 = vmatpush2.msra.mxu0 0.0
        %1801 = vmatprep.subr.mxu0 0.0
        %1802 = vmatpush2.msra.mxu0 0.0
        %1803 = vmatprep.subr.mxu0 0.0
        %1804 = vmatpush2.msra.mxu0 0.0
        %1805 = vmatprep.subr.mxu0 0.0
        %1806 = vmatpush2.msra.mxu0 0.0
        %1807 = vmatprep.subr.mxu0 0.0
        %1808 = vmatpush2.msra.mxu0 0.0
        %1809 = vmatprep.subr.mxu0 0.0
        %1810 = vmatpush2.msra.mxu0 0.0
        %1811 = vmatprep.subr.mxu0 0.0
        %1812 = vmatpush2.msra.mxu0 0.0
        %1813 = vmatprep.subr.mxu0 0.0
        %1814 = vmatpush2.msra.mxu0 0.0
        %1815 = vmatprep.mubr.f32.mxu0 0.0
        %1816 = vmatmul.mubr.f32.gmra.mxu0 %v1464
        %v1817 = vpop.f32.mrf.mxu0
        %v1818 = vadd.f32 %v1341, %v1817
        %v1819 = vpop.f32.mrf.mxu0
        %v1820 = vadd.f32 %v1341, %v1819
        %1821 = vmatprep.mubr.f32.mxu0 0.0
        %1822 = vmatmul.mubr.f32.gmra.mxu0 %v1467
        %v1823 = vpop.f32.mrf.mxu0
        %v1824 = vadd.f32 %v1346, %v1823
        %v1825 = vpop.f32.mrf.mxu0
        %v1826 = vadd.f32 %v1346, %v1825
        %1827 = vmatprep.mubr.f32.mxu0 0.0
        %1828 = vmatmul.mubr.f32.gmra.mxu0 %v1470
        %v1829 = vpop.f32.mrf.mxu0
        %v1830 = vadd.f32 %v1351, %v1829
        %v1831 = vpop.f32.mrf.mxu0
        %v1832 = vadd.f32 %v1351, %v1831
        %1833 = vmatprep.mubr.f32.mxu0 0.0
        %1834 = vmatmul.mubr.f32.gmra.mxu0 %v1473
        %v1835 = vpop.f32.mrf.mxu0
        %v1836 = vadd.f32 %v1356, %v1835
        %v1837 = vpop.f32.mrf.mxu0
        %v1838 = vadd.f32 %v1356, %v1837
        %1839 = vmatprep.mubr.f32.mxu0 0.0
        %1840 = vmatmul.mubr.f32.gmra.mxu0 %v1476
        %v1841 = vpop.f32.mrf.mxu0
        %v1842 = vadd.f32 %v1361, %v1841
        %v1843 = vpop.f32.mrf.mxu0
        %v1844 = vadd.f32 %v1361, %v1843
        %1845 = vmatprep.mubr.f32.mxu0 0.0
        %1846 = vmatmul.mubr.f32.gmra.mxu0 %v1479
        %v1847 = vpop.f32.mrf.mxu0
        %v1848 = vadd.f32 %v1366, %v1847
        %v1849 = vpop.f32.mrf.mxu0
        %v1850 = vadd.f32 %v1366, %v1849
        %1851 = vmatprep.mubr.f32.mxu0 0.0
        %1852 = vmatmul.mubr.f32.gmra.mxu0 %v1482
        %v1853 = vpop.f32.mrf.mxu0
        %v1854 = vadd.f32 %v1371, %v1853
        %v1855 = vpop.f32.mrf.mxu0
        %v1856 = vadd.f32 %v1371, %v1855
        %1857 = vmatprep.mubr.f32.mxu0 0.0
        %1858 = vmatmul.mubr.f32.gmra.mxu0 %v1485
        %v1859 = vpop.f32.mrf.mxu0
        %v1860 = vadd.f32 %v1376, %v1859
        %v1861 = vpop.f32.mrf.mxu0
        %v1862 = vadd.f32 %v1376, %v1861
        %1863 = vmatprep.mubr.f32.mxu0 0.0
        %1864 = vmatmul.mubr.f32.gmra.mxu0 %v1488
        %v1865 = vpop.f32.mrf.mxu0
        %v1866 = vadd.f32 %v1381, %v1865
        %v1867 = vpop.f32.mrf.mxu0
        %v1868 = vadd.f32 %v1381, %v1867
        %1869 = vmatprep.mubr.f32.mxu0 0.0
        %1870 = vmatmul.mubr.f32.gmra.mxu0 %v1491
        %v1871 = vpop.f32.mrf.mxu0
        %v1872 = vadd.f32 %v1386, %v1871
        %v1873 = vpop.f32.mrf.mxu0
        %v1874 = vadd.f32 %v1386, %v1873
        %1875 = vmatprep.mubr.f32.mxu0 0.0
        %1876 = vmatmul.mubr.f32.gmra.mxu0 %v1494
        %v1877 = vpop.f32.mrf.mxu0
        %v1878 = vadd.f32 %v1391, %v1877
        %v1879 = vpop.f32.mrf.mxu0
        %v1880 = vadd.f32 %v1391, %v1879
        %1881 = vmatprep.mubr.f32.mxu0 0.0
        %1882 = vmatmul.mubr.f32.gmra.mxu0 %v1497
        %v1883 = vpop.f32.mrf.mxu0
        %v1884 = vadd.f32 %v1396, %v1883
        %v1885 = vpop.f32.mrf.mxu0
        %v1886 = vadd.f32 %v1396, %v1885
        %1887 = vmatprep.mubr.f32.mxu0 0.0
        %1888 = vmatmul.mubr.f32.gmra.mxu0 %v1500
        %v1889 = vpop.f32.mrf.mxu0
        %v1890 = vadd.f32 %v1401, %v1889
        %v1891 = vpop.f32.mrf.mxu0
        %v1892 = vadd.f32 %v1401, %v1891
        %1893 = vmatprep.mubr.f32.mxu0 0.0
        %1894 = vmatmul.mubr.f32.gmra.mxu0 %v1503
        %v1895 = vpop.f32.mrf.mxu0
        %v1896 = vadd.f32 %v1406, %v1895
        %v1897 = vpop.f32.mrf.mxu0
        %v1898 = vadd.f32 %v1406, %v1897
        %1899 = vmatprep.mubr.f32.mxu0 0.0
        %1900 = vmatmul.mubr.f32.gmra.mxu0 %v1506
        %v1901 = vpop.f32.mrf.mxu0
        %v1902 = vadd.f32 %v1411, %v1901
        %v1903 = vpop.f32.mrf.mxu0
        %v1904 = vadd.f32 %v1411, %v1903
        %1905 = vmatprep.mubr.f32.mxu0 0.0
        %1906 = vmatmul.mubr.f32.gmra.mxu0 %v1509
        %v1907 = vpop.f32.mrf.mxu0
        %v1908 = vadd.f32 %v1416, %v1907
        %v1909 = vpop.f32.mrf.mxu0
        %v1910 = vadd.f32 %v1416, %v1909
        %1911 = vmatprep.mubr.f32.mxu0 0.0
        %1912 = vmatmul.mubr.f32.gmra.mxu0 %v1512
        %v1913 = vpop.f32.mrf.mxu0
        %v1914 = vadd.f32 %v1421, %v1913
        %v1915 = vpop.f32.mrf.mxu0
        %v1916 = vadd.f32 %v1421, %v1915
        %1917 = vmatprep.mubr.f32.mxu0 0.0
        %1918 = vmatmul.mubr.f32.gmra.mxu0 %v1515
        %v1919 = vpop.f32.mrf.mxu0
        %v1920 = vadd.f32 %v1426, %v1919
        %v1921 = vpop.f32.mrf.mxu0
        %v1922 = vadd.f32 %v1426, %v1921
        %1923 = vmatprep.mubr.f32.mxu0 0.0
        %1924 = vmatmul.mubr.f32.gmra.mxu0 %v1518
        %v1925 = vpop.f32.mrf.mxu0
        %v1926 = vadd.f32 %v1431, %v1925
        %v1927 = vpop.f32.mrf.mxu0
        %v1928 = vadd.f32 %v1431, %v1927
        %1929 = vmatprep.mubr.f32.mxu0 0.0
        %1930 = vmatmul.mubr.f32.gmra.mxu0 %v1521
        %v1931 = vpop.f32.mrf.mxu0
        %v1932 = vadd.f32 %v1436, %v1931
        %v1933 = vpop.f32.mrf.mxu0
        %v1934 = vadd.f32 %v1436, %v1933
        %1935 = vmatprep.mubr.f32.mxu0 0.0
        %1936 = vmatmul.mubr.f32.gmra.mxu0 %v1524
        %v1937 = vpop.f32.mrf.mxu0
        %v1938 = vadd.f32 %v1441, %v1937
        %v1939 = vpop.f32.mrf.mxu0
        %v1940 = vadd.f32 %v1441, %v1939
        %1941 = vmatprep.mubr.f32.mxu0 0.0
        %1942 = vmatmul.mubr.f32.gmra.mxu0 %v1527
        %v1943 = vpop.f32.mrf.mxu0
        %v1944 = vadd.f32 %v1446, %v1943
        %v1945 = vpop.f32.mrf.mxu0
        %v1946 = vadd.f32 %v1446, %v1945
        %1947 = vmatprep.mubr.f32.mxu0 0.0
        %1948 = vmatmul.mubr.f32.gmra.mxu0 %v1530
        %v1949 = vpop.f32.mrf.mxu0
        %v1950 = vadd.f32 %v1451, %v1949
        %v1951 = vpop.f32.mrf.mxu0
        %v1952 = vadd.f32 %v1451, %v1951
        %1953 = vmatprep.mubr.f32.mxu0 0.0
        %1954 = vmatmul.mubr.f32.gmra.mxu0 %v1533
        %v1955 = vpop.f32.mrf.mxu0
        %v1956 = vadd.f32 %v1456, %v1955
        %v1957 = vpop.f32.mrf.mxu0
        %v1958 = vadd.f32 %v1456, %v1957
        %1959 = vmatprep.mubr.f32.mxu0 0.0
        %1960 = vmatmul.mubr.f32.gmra.mxu0 %v1536
        %v1961 = vpop.f32.mrf.mxu0
        %v1962 = vpop.f32.mrf.mxu0
        %1963 = vdwg.mxu0
        %v1965 = vlaneseq
        %v1966 = vshrl.u32 %v1965, 7
        %v1967 = vsub.s32 0, %v1966
        %v1968 = vrot.slane %v411, %v1967
        %v1969 = vlaneseq
        %v1970 = vshrl.u32 %v1969, 7
        %v1971 = vsub.s32 2, %v1970
        %v1972 = vrot.slane %v411, %v1971
        %v1973 = vlaneseq
        %v1974 = vshrl.u32 %v1973, 7
        %v1975 = vsub.s32 4, %v1974
        %v1976 = vrot.slane %v411, %v1975
        %v1977 = vlaneseq
        %v1978 = vshrl.u32 %v1977, 7
        %v1979 = vsub.s32 6, %v1978
        %v1980 = vrot.slane %v411, %v1979
        %v1985 = vlaneseq
        %v1986 = vshrl.u32 %v1985, 7
        %v1987 = vsub.s32 0, %v1986
        %v1988 = vrot.slane %v1968, %v1987
        %v1989 = vlaneseq
        %v1990 = vshrl.u32 %v1989, 7
        %v1991 = vsub.s32 0, %v1990
        %v1992 = vrot.slane %v1972, %v1991
        %v1993 = vlaneseq
        %v1994 = vshrl.u32 %v1993, 7
        %v1995 = vsub.s32 0, %v1994
        %v1996 = vrot.slane %v1976, %v1995
        %v1997 = vlaneseq
        %v1998 = vshrl.u32 %v1997, 7
        %v1999 = vsub.s32 0, %v1998
        %v2000 = vrot.slane %v1980, %v1999
        %v2001 = vmul.f32 %v1988, %v1605
        %v2002 = vmul.f32 %v1992, %v1607
        %v2003 = vmul.f32 %v1996, %v1818
        %v2004 = vmul.f32 %v2000, %v1820
        %v2005 = vmul.f32 %v1988, %v1611
        %v2006 = vmul.f32 %v1992, %v1613
        %v2007 = vmul.f32 %v1996, %v1824
        %v2008 = vmul.f32 %v2000, %v1826
        %v2009 = vmul.f32 %v1988, %v1617
        %v2010 = vmul.f32 %v1992, %v1619
        %v2011 = vmul.f32 %v1996, %v1830
        %v2012 = vmul.f32 %v2000, %v1832
        %v2013 = vmul.f32 %v1988, %v1623
        %v2014 = vmul.f32 %v1992, %v1625
        %v2015 = vmul.f32 %v1996, %v1836
        %v2016 = vmul.f32 %v2000, %v1838
        %v2017 = vadd.f32 %v1677, %v2001
        %v2018 = vadd.f32 %v1679, %v2002
        %v2019 = vadd.f32 %v1890, %v2003
        %v2020 = vadd.f32 %v1892, %v2004
        %v2021 = vadd.f32 %v1683, %v2005
        %v2022 = vadd.f32 %v1685, %v2006
        %v2023 = vadd.f32 %v1896, %v2007
        %v2024 = vadd.f32 %v1898, %v2008
        %v2025 = vadd.f32 %v1689, %v2009
        %v2026 = vadd.f32 %v1691, %v2010
        %v2027 = vadd.f32 %v1902, %v2011
        %v2028 = vadd.f32 %v1904, %v2012
        %v2029 = vadd.f32 %v1695, %v2013
        %v2030 = vadd.f32 %v1697, %v2014
        %v2031 = vadd.f32 %v1908, %v2015
        %v2032 = vadd.f32 %v1910, %v2016
        %v2033 = vlaneseq
        %v2034 = vshrl.u32 %v2033, 7
        %v2035 = vsub.s32 1, %v2034
        %v2036 = vrot.slane %v411, %v2035
        %v2037 = vlaneseq
        %v2038 = vshrl.u32 %v2037, 7
        %v2039 = vsub.s32 3, %v2038
        %v2040 = vrot.slane %v411, %v2039
        %v2041 = vlaneseq
        %v2042 = vshrl.u32 %v2041, 7
        %v2043 = vsub.s32 5, %v2042
        %v2044 = vrot.slane %v411, %v2043
        %v2045 = vlaneseq
        %v2046 = vshrl.u32 %v2045, 7
        %v2047 = vsub.s32 7, %v2046
        %v2048 = vrot.slane %v411, %v2047
        %v2053 = vlaneseq
        %v2054 = vshrl.u32 %v2053, 7
        %v2055 = vsub.s32 1, %v2054
        %v2056 = vrot.slane %v2036, %v2055
        %v2057 = vlaneseq
        %v2058 = vshrl.u32 %v2057, 7
        %v2059 = vsub.s32 1, %v2058
        %v2060 = vrot.slane %v2040, %v2059
        %v2061 = vlaneseq
        %v2062 = vshrl.u32 %v2061, 7
        %v2063 = vsub.s32 1, %v2062
        %v2064 = vrot.slane %v2044, %v2063
        %v2065 = vlaneseq
        %v2066 = vshrl.u32 %v2065, 7
        %v2067 = vsub.s32 1, %v2066
        %v2068 = vrot.slane %v2048, %v2067
        %v2069 = vmul.f32 %v2056, %v1629
        %v2070 = vmul.f32 %v2060, %v1631
        %v2071 = vmul.f32 %v2064, %v1842
        %v2072 = vmul.f32 %v2068, %v1844
        %v2073 = vmul.f32 %v2056, %v1635
        %v2074 = vmul.f32 %v2060, %v1637
        %v2075 = vmul.f32 %v2064, %v1848
        %v2076 = vmul.f32 %v2068, %v1850
        %v2077 = vmul.f32 %v2056, %v1641
        %v2078 = vmul.f32 %v2060, %v1643
        %v2079 = vmul.f32 %v2064, %v1854
        %v2080 = vmul.f32 %v2068, %v1856
        %v2081 = vmul.f32 %v2056, %v1647
        %v2082 = vmul.f32 %v2060, %v1649
        %v2083 = vmul.f32 %v2064, %v1860
        %v2084 = vmul.f32 %v2068, %v1862
        %v2085 = vadd.f32 %v2017, %v2069
        %v2086 = vadd.f32 %v2018, %v2070
        %v2087 = vadd.f32 %v2019, %v2071
        %v2088 = vadd.f32 %v2020, %v2072
        %v2089 = vadd.f32 %v2021, %v2073
        %v2090 = vadd.f32 %v2022, %v2074
        %v2091 = vadd.f32 %v2023, %v2075
        %v2092 = vadd.f32 %v2024, %v2076
        %v2093 = vadd.f32 %v2025, %v2077
        %v2094 = vadd.f32 %v2026, %v2078
        %v2095 = vadd.f32 %v2027, %v2079
        %v2096 = vadd.f32 %v2028, %v2080
        %v2097 = vadd.f32 %v2029, %v2081
        %v2098 = vadd.f32 %v2030, %v2082
        %v2099 = vadd.f32 %v2031, %v2083
        %v2100 = vadd.f32 %v2032, %v2084
        %v2101 = vtanh.pop %v2085
        %v2102 = vtanh.pop %v2086
        %v2103 = vtanh.pop %v2087
        %v2104 = vtanh.pop %v2088
        %v2105 = vtanh.pop %v2089
        %v2106 = vtanh.pop %v2090
        %v2107 = vtanh.pop %v2091
        %v2108 = vtanh.pop %v2092
        %v2109 = vtanh.pop %v2093
        %v2110 = vtanh.pop %v2094
        %v2111 = vtanh.pop %v2095
        %v2112 = vtanh.pop %v2096
        %v2113 = vtanh.pop %v2097
        %v2114 = vtanh.pop %v2098
        %v2115 = vtanh.pop %v2099
        %v2116 = vtanh.pop %v2100
        %v2117 = vld [vmem:[%s10] sm:$0xff]
        %v2118 = vld [vmem:[%s10 + $0x8] sm:$0xff]
        %v2119 = vld [vmem:[%s10 + $0x10] sm:$0xff]
        %v2120 = vld [vmem:[%s10 + $0x18] sm:$0xff]
        %v2121 = vld [vmem:[%s10 + $0x20] sm:$0xff]
        %v2122 = vld [vmem:[%s10 + $0x28] sm:$0xff]
        %v2123 = vld [vmem:[%s10 + $0x30] sm:$0xff]
        %v2124 = vld [vmem:[%s10 + $0x38] sm:$0xff]
        %v2125 = vld [vmem:[%s10 + $0x40] sm:$0xff]
        %v2126 = vld [vmem:[%s10 + $0x48] sm:$0xff]
        %v2127 = vld [vmem:[%s10 + $0x50] sm:$0xff]
        %v2128 = vld [vmem:[%s10 + $0x58] sm:$0xff]
        %v2129 = vld [vmem:[%s10 + $0x60] sm:$0xff]
        %v2130 = vld [vmem:[%s10 + $0x68] sm:$0xff]
        %v2131 = vld [vmem:[%s10 + $0x70] sm:$0xff]
        %v2132 = vld [vmem:[%s10 + $0x78] sm:$0xff]
        %v2133 = vld [vmem:[%s10 + $0x80] sm:$0xff]
        %v2134 = vld [vmem:[%s10 + $0x88] sm:$0xff]
        %v2135 = vld [vmem:[%s10 + $0x90] sm:$0xff]
        %v2136 = vld [vmem:[%s10 + $0x98] sm:$0xff]
        %v2137 = vld [vmem:[%s10 + $0xa0] sm:$0xff]
        %v2138 = vld [vmem:[%s10 + $0xa8] sm:$0xff]
        %v2139 = vld [vmem:[%s10 + $0xb0] sm:$0xff]
        %v2140 = vld [vmem:[%s10 + $0xb8] sm:$0xff]
        %v2141 = vld [vmem:[%s10 + $0xc0] sm:$0xff]
        %v2142 = vld [vmem:[%s10 + $0xc8] sm:$0xff]
        %v2143 = vld [vmem:[%s10 + $0xd0] sm:$0xff]
        %v2144 = vld [vmem:[%s10 + $0xd8] sm:$0xff]
        %v2145 = vld [vmem:[%s10 + $0xe0] sm:$0xff]
        %v2146 = vld [vmem:[%s10 + $0xe8] sm:$0xff]
        %v2147 = vld [vmem:[%s10 + $0xf0] sm:$0xff]
        %v2148 = vld [vmem:[%s10 + $0xf8] sm:$0xff]
        %v2149 = vld [vmem:[%s10 + $0x100] sm:$0xff]
        %v2150 = vld [vmem:[%s10 + $0x108] sm:$0xff]
        %v2151 = vld [vmem:[%s10 + $0x110] sm:$0xff]
        %v2152 = vld [vmem:[%s10 + $0x118] sm:$0xff]
        %v2154 = vsel %vm657, %v2117, 0
        %v2157 = vsel %vm657, %v2118, 0
        %v2160 = vsel %vm657, %v2119, 0
        %v2163 = vsel %vm657, %v2120, 0
        %v2166 = vsel %vm657, %v2121, 0
        %v2169 = vsel %vm657, %v2122, 0
        %v2172 = vsel %vm657, %v2123, 0
        %v2175 = vsel %vm657, %v2124, 0
        %v2178 = vsel %vm657, %v2125, 0
        %v2181 = vsel %vm657, %v2126, 0
        %v2184 = vsel %vm657, %v2127, 0
        %v2187 = vsel %vm657, %v2128, 0
        %v2190 = vsel %vm657, %v2129, 0
        %v2193 = vsel %vm657, %v2130, 0
        %v2196 = vsel %vm657, %v2131, 0
        %v2199 = vsel %vm657, %v2132, 0
        %v2202 = vsel %vm657, %v2133, 0
        %v2205 = vsel %vm657, %v2134, 0
        %v2208 = vsel %vm657, %v2135, 0
        %v2211 = vsel %vm657, %v2136, 0
        %v2214 = vsel %vm657, %v2137, 0
        %v2217 = vsel %vm657, %v2138, 0
        %v2220 = vsel %vm657, %v2139, 0
        %v2223 = vsel %vm657, %v2140, 0
        %v2226 = vsel %vm657, %v2141, 0
        %v2229 = vsel %vm657, %v2142, 0
        %v2232 = vsel %vm657, %v2143, 0
        %v2235 = vsel %vm657, %v2144, 0
        %v2238 = vsel %vm657, %v2145, 0
        %v2241 = vsel %vm657, %v2146, 0
        %v2244 = vsel %vm657, %v2147, 0
        %v2247 = vsel %vm657, %v2148, 0
        %v2250 = vsel %vm657, %v2149, 0
        %v2253 = vsel %vm657, %v2150, 0
        %v2256 = vsel %vm657, %v2151, 0
        %v2259 = vsel %vm657, %v2152, 0
        %2261 = vmatprep.subr.mxu0 0.0
        %2262 = vmatpush1.msra.mxu0 0.0
        %2263 = vmatprep.subr.mxu0 0.0
        %2264 = vmatpush1.msra.mxu0 0.0
        %2265 = vmatprep.subr.mxu0 0.0
        %2266 = vmatpush1.msra.mxu0 0.0
        %2267 = vmatprep.subr.mxu0 0.0
        %2268 = vmatpush1.msra.mxu0 0.0
        %2269 = vmatprep.subr.mxu0 0.0
        %2270 = vmatpush1.msra.mxu0 0.0
        %2271 = vmatprep.subr.mxu0 0.0
        %2272 = vmatpush1.msra.mxu0 0.0
        %2273 = vmatprep.subr.mxu0 0.0
        %2274 = vmatpush1.msra.mxu0 0.0
        %2275 = vmatprep.subr.mxu0 0.0
        %2276 = vmatpush1.msra.mxu0 0.0
        %2277 = vmatprep.subr.mxu0 0.0
        %2278 = vmatpush1.msra.mxu0 0.0
        %2279 = vmatprep.subr.mxu0 0.0
        %2280 = vmatpush1.msra.mxu0 0.0
        %2281 = vmatprep.subr.mxu0 0.0
        %2282 = vmatpush1.msra.mxu0 0.0
        %2283 = vmatprep.subr.mxu0 0.0
        %2284 = vmatpush1.msra.mxu0 0.0
        %2285 = vmatprep.subr.mxu0 %v2114
        %2286 = vmatpush1.msra.mxu0 %v2113
        %2287 = vmatprep.subr.mxu0 %v2110
        %2288 = vmatpush1.msra.mxu0 %v2109
        %2289 = vmatprep.subr.mxu0 %v2106
        %2290 = vmatpush1.msra.mxu0 %v2105
        %2291 = vmatprep.subr.mxu0 %v2102
        %2292 = vmatpush1.msra.mxu0 %v2101
        %2293 = vmatprep.subr.mxu0 0.0
        %2294 = vmatpush2.msra.mxu0 0.0
        %2295 = vmatprep.subr.mxu0 0.0
        %2296 = vmatpush2.msra.mxu0 0.0
        %2297 = vmatprep.subr.mxu0 0.0
        %2298 = vmatpush2.msra.mxu0 0.0
        %2299 = vmatprep.subr.mxu0 0.0
        %2300 = vmatpush2.msra.mxu0 0.0
        %2301 = vmatprep.subr.mxu0 0.0
        %2302 = vmatpush2.msra.mxu0 0.0
        %2303 = vmatprep.subr.mxu0 0.0
        %2304 = vmatpush2.msra.mxu0 0.0
        %2305 = vmatprep.subr.mxu0 0.0
        %2306 = vmatpush2.msra.mxu0 0.0
        %2307 = vmatprep.subr.mxu0 0.0
        %2308 = vmatpush2.msra.mxu0 0.0
        %2309 = vmatprep.subr.mxu0 0.0
        %2310 = vmatpush2.msra.mxu0 0.0
        %2311 = vmatprep.subr.mxu0 0.0
        %2312 = vmatpush2.msra.mxu0 0.0
        %2313 = vmatprep.subr.mxu0 0.0
        %2314 = vmatpush2.msra.mxu0 0.0
        %2315 = vmatprep.subr.mxu0 0.0
        %2316 = vmatpush2.msra.mxu0 0.0
        %2317 = vmatprep.subr.mxu0 0.0
        %2318 = vmatpush2.msra.mxu0 0.0
        %2319 = vmatprep.subr.mxu0 0.0
        %2320 = vmatpush2.msra.mxu0 0.0
        %2321 = vmatprep.subr.mxu0 0.0
        %2322 = vmatpush2.msra.mxu0 0.0
        %2323 = vmatprep.subr.mxu0 0.0
        %2324 = vmatpush2.msra.mxu0 0.0
        %2325 = vmatprep.mubr.f32.mxu0 0.0
        %2326 = vmatmul.mubr.f32.gmra.mxu0 %v2154
        %v2327 = vpop.f32.mrf.mxu0
        %v2328 = vadd.f32 0.0, %v2327
        %v2329 = vpop.f32.mrf.mxu0
        %v2330 = vadd.f32 0.0, %v2329
        %2331 = vmatprep.mubr.f32.mxu0 0.0
        %2332 = vmatmul.mubr.f32.gmra.mxu0 %v2157
        %v2333 = vpop.f32.mrf.mxu0
        %v2334 = vadd.f32 0.0, %v2333
        %v2335 = vpop.f32.mrf.mxu0
        %v2336 = vadd.f32 0.0, %v2335
        %2337 = vmatprep.mubr.f32.mxu0 0.0
        %2338 = vmatmul.mubr.f32.gmra.mxu0 %v2160
        %v2339 = vpop.f32.mrf.mxu0
        %v2340 = vadd.f32 0.0, %v2339
        %v2341 = vpop.f32.mrf.mxu0
        %v2342 = vadd.f32 0.0, %v2341
        %2343 = vmatprep.mubr.f32.mxu0 0.0
        %2344 = vmatmul.mubr.f32.gmra.mxu0 %v2163
        %v2345 = vpop.f32.mrf.mxu0
        %v2346 = vadd.f32 0.0, %v2345
        %v2347 = vpop.f32.mrf.mxu0
        %v2348 = vadd.f32 0.0, %v2347
        %2349 = vmatprep.mubr.f32.mxu0 0.0
        %2350 = vmatmul.mubr.f32.gmra.mxu0 %v2166
        %v2351 = vpop.f32.mrf.mxu0
        %v2352 = vadd.f32 0.0, %v2351
        %v2353 = vpop.f32.mrf.mxu0
        %v2354 = vadd.f32 0.0, %v2353
        %2355 = vmatprep.mubr.f32.mxu0 0.0
        %2356 = vmatmul.mubr.f32.gmra.mxu0 %v2169
        %v2357 = vpop.f32.mrf.mxu0
        %v2358 = vadd.f32 0.0, %v2357
        %v2359 = vpop.f32.mrf.mxu0
        %v2360 = vadd.f32 0.0, %v2359
        %2361 = vmatprep.mubr.f32.mxu0 0.0
        %2362 = vmatmul.mubr.f32.gmra.mxu0 %v2172
        %v2363 = vpop.f32.mrf.mxu0
        %v2364 = vadd.f32 0.0, %v2363
        %v2365 = vpop.f32.mrf.mxu0
        %v2366 = vadd.f32 0.0, %v2365
        %2367 = vmatprep.mubr.f32.mxu0 0.0
        %2368 = vmatmul.mubr.f32.gmra.mxu0 %v2175
        %v2369 = vpop.f32.mrf.mxu0
        %v2370 = vadd.f32 0.0, %v2369
        %v2371 = vpop.f32.mrf.mxu0
        %v2372 = vadd.f32 0.0, %v2371
        %2373 = vmatprep.mubr.f32.mxu0 0.0
        %2374 = vmatmul.mubr.f32.gmra.mxu0 %v2178
        %v2375 = vpop.f32.mrf.mxu0
        %v2376 = vadd.f32 0.0, %v2375
        %v2377 = vpop.f32.mrf.mxu0
        %v2378 = vadd.f32 0.0, %v2377
        %2379 = vmatprep.mubr.f32.mxu0 0.0
        %2380 = vmatmul.mubr.f32.gmra.mxu0 %v2181
        %v2381 = vpop.f32.mrf.mxu0
        %v2382 = vadd.f32 0.0, %v2381
        %v2383 = vpop.f32.mrf.mxu0
        %v2384 = vadd.f32 0.0, %v2383
        %2385 = vmatprep.mubr.f32.mxu0 0.0
        %2386 = vmatmul.mubr.f32.gmra.mxu0 %v2184
        %v2387 = vpop.f32.mrf.mxu0
        %v2388 = vadd.f32 0.0, %v2387
        %v2389 = vpop.f32.mrf.mxu0
        %v2390 = vadd.f32 0.0, %v2389
        %2391 = vmatprep.mubr.f32.mxu0 0.0
        %2392 = vmatmul.mubr.f32.gmra.mxu0 %v2187
        %v2393 = vpop.f32.mrf.mxu0
        %v2394 = vadd.f32 0.0, %v2393
        %v2395 = vpop.f32.mrf.mxu0
        %v2396 = vadd.f32 0.0, %v2395
        %2397 = vmatprep.mubr.f32.mxu0 0.0
        %2398 = vmatmul.mubr.f32.gmra.mxu0 %v2190
        %v2399 = vpop.f32.mrf.mxu0
        %v2400 = vadd.f32 0.0, %v2399
        %v2401 = vpop.f32.mrf.mxu0
        %v2402 = vadd.f32 0.0, %v2401
        %2403 = vmatprep.mubr.f32.mxu0 0.0
        %2404 = vmatmul.mubr.f32.gmra.mxu0 %v2193
        %v2405 = vpop.f32.mrf.mxu0
        %v2406 = vadd.f32 0.0, %v2405
        %v2407 = vpop.f32.mrf.mxu0
        %v2408 = vadd.f32 0.0, %v2407
        %2409 = vmatprep.mubr.f32.mxu0 0.0
        %2410 = vmatmul.mubr.f32.gmra.mxu0 %v2196
        %v2411 = vpop.f32.mrf.mxu0
        %v2412 = vadd.f32 0.0, %v2411
        %v2413 = vpop.f32.mrf.mxu0
        %v2414 = vadd.f32 0.0, %v2413
        %2415 = vmatprep.mubr.f32.mxu0 0.0
        %2416 = vmatmul.mubr.f32.gmra.mxu0 %v2199
        %v2417 = vpop.f32.mrf.mxu0
        %v2418 = vadd.f32 0.0, %v2417
        %v2419 = vpop.f32.mrf.mxu0
        %v2420 = vadd.f32 0.0, %v2419
        %2421 = vmatprep.mubr.f32.mxu0 0.0
        %2422 = vmatmul.mubr.f32.gmra.mxu0 %v2202
        %v2423 = vpop.f32.mrf.mxu0
        %v2424 = vadd.f32 0.0, %v2423
        %v2425 = vpop.f32.mrf.mxu0
        %v2426 = vadd.f32 0.0, %v2425
        %2427 = vmatprep.mubr.f32.mxu0 0.0
        %2428 = vmatmul.mubr.f32.gmra.mxu0 %v2205
        %v2429 = vpop.f32.mrf.mxu0
        %v2430 = vadd.f32 0.0, %v2429
        %v2431 = vpop.f32.mrf.mxu0
        %v2432 = vadd.f32 0.0, %v2431
        %2433 = vmatprep.mubr.f32.mxu0 0.0
        %2434 = vmatmul.mubr.f32.gmra.mxu0 %v2208
        %v2435 = vpop.f32.mrf.mxu0
        %v2436 = vadd.f32 0.0, %v2435
        %v2437 = vpop.f32.mrf.mxu0
        %v2438 = vadd.f32 0.0, %v2437
        %2439 = vmatprep.mubr.f32.mxu0 0.0
        %2440 = vmatmul.mubr.f32.gmra.mxu0 %v2211
        %v2441 = vpop.f32.mrf.mxu0
        %v2442 = vadd.f32 0.0, %v2441
        %v2443 = vpop.f32.mrf.mxu0
        %v2444 = vadd.f32 0.0, %v2443
        %2445 = vmatprep.mubr.f32.mxu0 0.0
        %2446 = vmatmul.mubr.f32.gmra.mxu0 %v2214
        %v2447 = vpop.f32.mrf.mxu0
        %v2448 = vadd.f32 0.0, %v2447
        %v2449 = vpop.f32.mrf.mxu0
        %v2450 = vadd.f32 0.0, %v2449
        %2451 = vmatprep.mubr.f32.mxu0 0.0
        %2452 = vmatmul.mubr.f32.gmra.mxu0 %v2217
        %v2453 = vpop.f32.mrf.mxu0
        %v2454 = vadd.f32 0.0, %v2453
        %v2455 = vpop.f32.mrf.mxu0
        %v2456 = vadd.f32 0.0, %v2455
        %2457 = vmatprep.mubr.f32.mxu0 0.0
        %2458 = vmatmul.mubr.f32.gmra.mxu0 %v2220
        %v2459 = vpop.f32.mrf.mxu0
        %v2460 = vadd.f32 0.0, %v2459
        %v2461 = vpop.f32.mrf.mxu0
        %v2462 = vadd.f32 0.0, %v2461
        %2463 = vmatprep.mubr.f32.mxu0 0.0
        %2464 = vmatmul.mubr.f32.gmra.mxu0 %v2223
        %v2465 = vpop.f32.mrf.mxu0
        %v2466 = vadd.f32 0.0, %v2465
        %v2467 = vpop.f32.mrf.mxu0
        %v2468 = vadd.f32 0.0, %v2467
        %2469 = vmatprep.mubr.f32.mxu0 0.0
        %2470 = vmatmul.mubr.f32.gmra.mxu0 %v2226
        %v2471 = vpop.f32.mrf.mxu0
        %v2472 = vadd.f32 0.0, %v2471
        %v2473 = vpop.f32.mrf.mxu0
        %v2474 = vadd.f32 0.0, %v2473
        %2475 = vmatprep.mubr.f32.mxu0 0.0
        %2476 = vmatmul.mubr.f32.gmra.mxu0 %v2229
        %v2477 = vpop.f32.mrf.mxu0
        %v2478 = vadd.f32 0.0, %v2477
        %v2479 = vpop.f32.mrf.mxu0
        %v2480 = vadd.f32 0.0, %v2479
        %2481 = vmatprep.mubr.f32.mxu0 0.0
        %2482 = vmatmul.mubr.f32.gmra.mxu0 %v2232
        %v2483 = vpop.f32.mrf.mxu0
        %v2484 = vadd.f32 0.0, %v2483
        %v2485 = vpop.f32.mrf.mxu0
        %v2486 = vadd.f32 0.0, %v2485
        %2487 = vmatprep.mubr.f32.mxu0 0.0
        %2488 = vmatmul.mubr.f32.gmra.mxu0 %v2235
        %v2489 = vpop.f32.mrf.mxu0
        %v2490 = vadd.f32 0.0, %v2489
        %v2491 = vpop.f32.mrf.mxu0
        %v2492 = vadd.f32 0.0, %v2491
        %2493 = vmatprep.mubr.f32.mxu0 0.0
        %2494 = vmatmul.mubr.f32.gmra.mxu0 %v2238
        %v2495 = vpop.f32.mrf.mxu0
        %v2496 = vadd.f32 0.0, %v2495
        %v2497 = vpop.f32.mrf.mxu0
        %v2498 = vadd.f32 0.0, %v2497
        %2499 = vmatprep.mubr.f32.mxu0 0.0
        %2500 = vmatmul.mubr.f32.gmra.mxu0 %v2241
        %v2501 = vpop.f32.mrf.mxu0
        %v2502 = vadd.f32 0.0, %v2501
        %v2503 = vpop.f32.mrf.mxu0
        %v2504 = vadd.f32 0.0, %v2503
        %2505 = vmatprep.mubr.f32.mxu0 0.0
        %2506 = vmatmul.mubr.f32.gmra.mxu0 %v2244
        %v2507 = vpop.f32.mrf.mxu0
        %v2508 = vadd.f32 0.0, %v2507
        %v2509 = vpop.f32.mrf.mxu0
        %v2510 = vadd.f32 0.0, %v2509
        %2511 = vmatprep.mubr.f32.mxu0 0.0
        %2512 = vmatmul.mubr.f32.gmra.mxu0 %v2247
        %v2513 = vpop.f32.mrf.mxu0
        %v2514 = vadd.f32 0.0, %v2513
        %v2515 = vpop.f32.mrf.mxu0
        %v2516 = vadd.f32 0.0, %v2515
        %2517 = vmatprep.mubr.f32.mxu0 0.0
        %2518 = vmatmul.mubr.f32.gmra.mxu0 %v2250
        %v2519 = vpop.f32.mrf.mxu0
        %v2520 = vadd.f32 0.0, %v2519
        %v2521 = vpop.f32.mrf.mxu0
        %v2522 = vadd.f32 0.0, %v2521
        %2523 = vmatprep.mubr.f32.mxu0 0.0
        %2524 = vmatmul.mubr.f32.gmra.mxu0 %v2253
        %v2525 = vpop.f32.mrf.mxu0
        %v2526 = vadd.f32 0.0, %v2525
        %v2527 = vpop.f32.mrf.mxu0
        %v2528 = vadd.f32 0.0, %v2527
        %2529 = vmatprep.mubr.f32.mxu0 0.0
        %2530 = vmatmul.mubr.f32.gmra.mxu0 %v2256
        %v2531 = vpop.f32.mrf.mxu0
        %v2532 = vadd.f32 0.0, %v2531
        %v2533 = vpop.f32.mrf.mxu0
        %v2534 = vadd.f32 0.0, %v2533
        %2535 = vmatprep.mubr.f32.mxu0 0.0
        %2536 = vmatmul.mubr.f32.gmra.mxu0 %v2259
        %v2537 = vpop.f32.mrf.mxu0
        %v2538 = vadd.f32 0.0, %v2537
        %v2539 = vpop.f32.mrf.mxu0
        %v2540 = vadd.f32 0.0, %v2539
        %2541 = vdwg.mxu0
        %2542 = vmatprep.subr.mxu0 0.0
        %2543 = vmatpush1.msra.mxu0 0.0
        %2544 = vmatprep.subr.mxu0 0.0
        %2545 = vmatpush1.msra.mxu0 0.0
        %2546 = vmatprep.subr.mxu0 0.0
        %2547 = vmatpush1.msra.mxu0 0.0
        %2548 = vmatprep.subr.mxu0 0.0
        %2549 = vmatpush1.msra.mxu0 0.0
        %2550 = vmatprep.subr.mxu0 0.0
        %2551 = vmatpush1.msra.mxu0 0.0
        %2552 = vmatprep.subr.mxu0 0.0
        %2553 = vmatpush1.msra.mxu0 0.0
        %2554 = vmatprep.subr.mxu0 0.0
        %2555 = vmatpush1.msra.mxu0 0.0
        %2556 = vmatprep.subr.mxu0 0.0
        %2557 = vmatpush1.msra.mxu0 0.0
        %2558 = vmatprep.subr.mxu0 0.0
        %2559 = vmatpush1.msra.mxu0 0.0
        %2560 = vmatprep.subr.mxu0 0.0
        %2561 = vmatpush1.msra.mxu0 0.0
        %2562 = vmatprep.subr.mxu0 0.0
        %2563 = vmatpush1.msra.mxu0 0.0
        %2564 = vmatprep.subr.mxu0 0.0
        %2565 = vmatpush1.msra.mxu0 0.0
        %2566 = vmatprep.subr.mxu0 %v2116
        %2567 = vmatpush1.msra.mxu0 %v2115
        %2568 = vmatprep.subr.mxu0 %v2112
        %2569 = vmatpush1.msra.mxu0 %v2111
        %2570 = vmatprep.subr.mxu0 %v2108
        %2571 = vmatpush1.msra.mxu0 %v2107
        %2572 = vmatprep.subr.mxu0 %v2104
        %2573 = vmatpush1.msra.mxu0 %v2103
        %2574 = vmatprep.subr.mxu0 0.0
        %2575 = vmatpush2.msra.mxu0 0.0
        %2576 = vmatprep.subr.mxu0 0.0
        %2577 = vmatpush2.msra.mxu0 0.0
        %2578 = vmatprep.subr.mxu0 0.0
        %2579 = vmatpush2.msra.mxu0 0.0
        %2580 = vmatprep.subr.mxu0 0.0
        %2581 = vmatpush2.msra.mxu0 0.0
        %2582 = vmatprep.subr.mxu0 0.0
        %2583 = vmatpush2.msra.mxu0 0.0
        %2584 = vmatprep.subr.mxu0 0.0
        %2585 = vmatpush2.msra.mxu0 0.0
        %2586 = vmatprep.subr.mxu0 0.0
        %2587 = vmatpush2.msra.mxu0 0.0
        %2588 = vmatprep.subr.mxu0 0.0
        %2589 = vmatpush2.msra.mxu0 0.0
        %2590 = vmatprep.subr.mxu0 0.0
        %2591 = vmatpush2.msra.mxu0 0.0
        %2592 = vmatprep.subr.mxu0 0.0
        %2593 = vmatpush2.msra.mxu0 0.0
        %2594 = vmatprep.subr.mxu0 0.0
        %2595 = vmatpush2.msra.mxu0 0.0
        %2596 = vmatprep.subr.mxu0 0.0
        %2597 = vmatpush2.msra.mxu0 0.0
        %2598 = vmatprep.subr.mxu0 0.0
        %2599 = vmatpush2.msra.mxu0 0.0
        %2600 = vmatprep.subr.mxu0 0.0
        %2601 = vmatpush2.msra.mxu0 0.0
        %2602 = vmatprep.subr.mxu0 0.0
        %2603 = vmatpush2.msra.mxu0 0.0
        %2604 = vmatprep.subr.mxu0 0.0
        %2605 = vmatpush2.msra.mxu0 0.0
        %2606 = vmatprep.mubr.f32.mxu0 0.0
        %2607 = vmatmul.mubr.f32.gmra.mxu0 %v2154
        %v2608 = vpop.f32.mrf.mxu0
        %v2609 = vadd.f32 0.0, %v2608
        %v2610 = vpop.f32.mrf.mxu0
        %v2611 = vadd.f32 0.0, %v2610
        %2612 = vmatprep.mubr.f32.mxu0 0.0
        %2613 = vmatmul.mubr.f32.gmra.mxu0 %v2157
        %v2614 = vpop.f32.mrf.mxu0
        %v2615 = vadd.f32 0.0, %v2614
        %v2616 = vpop.f32.mrf.mxu0
        %v2617 = vadd.f32 0.0, %v2616
        %2618 = vmatprep.mubr.f32.mxu0 0.0
        %2619 = vmatmul.mubr.f32.gmra.mxu0 %v2160
        %v2620 = vpop.f32.mrf.mxu0
        %v2621 = vadd.f32 0.0, %v2620
        %v2622 = vpop.f32.mrf.mxu0
        %v2623 = vadd.f32 0.0, %v2622
        %2624 = vmatprep.mubr.f32.mxu0 0.0
        %2625 = vmatmul.mubr.f32.gmra.mxu0 %v2163
        %v2626 = vpop.f32.mrf.mxu0
        %v2627 = vadd.f32 0.0, %v2626
        %v2628 = vpop.f32.mrf.mxu0
        %v2629 = vadd.f32 0.0, %v2628
        %2630 = vmatprep.mubr.f32.mxu0 0.0
        %2631 = vmatmul.mubr.f32.gmra.mxu0 %v2166
        %v2632 = vpop.f32.mrf.mxu0
        %v2633 = vadd.f32 0.0, %v2632
        %v2634 = vpop.f32.mrf.mxu0
        %v2635 = vadd.f32 0.0, %v2634
        %2636 = vmatprep.mubr.f32.mxu0 0.0
        %2637 = vmatmul.mubr.f32.gmra.mxu0 %v2169
        %v2638 = vpop.f32.mrf.mxu0
        %v2639 = vadd.f32 0.0, %v2638
        %v2640 = vpop.f32.mrf.mxu0
        %v2641 = vadd.f32 0.0, %v2640
        %2642 = vmatprep.mubr.f32.mxu0 0.0
        %2643 = vmatmul.mubr.f32.gmra.mxu0 %v2172
        %v2644 = vpop.f32.mrf.mxu0
        %v2645 = vadd.f32 0.0, %v2644
        %v2646 = vpop.f32.mrf.mxu0
        %v2647 = vadd.f32 0.0, %v2646
        %2648 = vmatprep.mubr.f32.mxu0 0.0
        %2649 = vmatmul.mubr.f32.gmra.mxu0 %v2175
        %v2650 = vpop.f32.mrf.mxu0
        %v2651 = vadd.f32 0.0, %v2650
        %v2652 = vpop.f32.mrf.mxu0
        %v2653 = vadd.f32 0.0, %v2652
        %2654 = vmatprep.mubr.f32.mxu0 0.0
        %2655 = vmatmul.mubr.f32.gmra.mxu0 %v2178
        %v2656 = vpop.f32.mrf.mxu0
        %v2657 = vadd.f32 0.0, %v2656
        %v2658 = vpop.f32.mrf.mxu0
        %v2659 = vadd.f32 0.0, %v2658
        %2660 = vmatprep.mubr.f32.mxu0 0.0
        %2661 = vmatmul.mubr.f32.gmra.mxu0 %v2181
        %v2662 = vpop.f32.mrf.mxu0
        %v2663 = vadd.f32 0.0, %v2662
        %v2664 = vpop.f32.mrf.mxu0
        %v2665 = vadd.f32 0.0, %v2664
        %2666 = vmatprep.mubr.f32.mxu0 0.0
        %2667 = vmatmul.mubr.f32.gmra.mxu0 %v2184
        %v2668 = vpop.f32.mrf.mxu0
        %v2669 = vadd.f32 0.0, %v2668
        %v2670 = vpop.f32.mrf.mxu0
        %v2671 = vadd.f32 0.0, %v2670
        %2672 = vmatprep.mubr.f32.mxu0 0.0
        %2673 = vmatmul.mubr.f32.gmra.mxu0 %v2187
        %v2674 = vpop.f32.mrf.mxu0
        %v2675 = vadd.f32 0.0, %v2674
        %v2676 = vpop.f32.mrf.mxu0
        %v2677 = vadd.f32 0.0, %v2676
        %2678 = vmatprep.mubr.f32.mxu0 0.0
        %2679 = vmatmul.mubr.f32.gmra.mxu0 %v2190
        %v2680 = vpop.f32.mrf.mxu0
        %v2681 = vadd.f32 0.0, %v2680
        %v2682 = vpop.f32.mrf.mxu0
        %v2683 = vadd.f32 0.0, %v2682
        %2684 = vmatprep.mubr.f32.mxu0 0.0
        %2685 = vmatmul.mubr.f32.gmra.mxu0 %v2193
        %v2686 = vpop.f32.mrf.mxu0
        %v2687 = vadd.f32 0.0, %v2686
        %v2688 = vpop.f32.mrf.mxu0
        %v2689 = vadd.f32 0.0, %v2688
        %2690 = vmatprep.mubr.f32.mxu0 0.0
        %2691 = vmatmul.mubr.f32.gmra.mxu0 %v2196
        %v2692 = vpop.f32.mrf.mxu0
        %v2693 = vadd.f32 0.0, %v2692
        %v2694 = vpop.f32.mrf.mxu0
        %v2695 = vadd.f32 0.0, %v2694
        %2696 = vmatprep.mubr.f32.mxu0 0.0
        %2697 = vmatmul.mubr.f32.gmra.mxu0 %v2199
        %v2698 = vpop.f32.mrf.mxu0
        %v2699 = vadd.f32 0.0, %v2698
        %v2700 = vpop.f32.mrf.mxu0
        %v2701 = vadd.f32 0.0, %v2700
        %2702 = vmatprep.mubr.f32.mxu0 0.0
        %2703 = vmatmul.mubr.f32.gmra.mxu0 %v2202
        %v2704 = vpop.f32.mrf.mxu0
        %v2705 = vadd.f32 0.0, %v2704
        %v2706 = vpop.f32.mrf.mxu0
        %v2707 = vadd.f32 0.0, %v2706
        %2708 = vmatprep.mubr.f32.mxu0 0.0
        %2709 = vmatmul.mubr.f32.gmra.mxu0 %v2205
        %v2710 = vpop.f32.mrf.mxu0
        %v2711 = vadd.f32 0.0, %v2710
        %v2712 = vpop.f32.mrf.mxu0
        %v2713 = vadd.f32 0.0, %v2712
        %2714 = vmatprep.mubr.f32.mxu0 0.0
        %2715 = vmatmul.mubr.f32.gmra.mxu0 %v2208
        %v2716 = vpop.f32.mrf.mxu0
        %v2717 = vadd.f32 0.0, %v2716
        %v2718 = vpop.f32.mrf.mxu0
        %v2719 = vadd.f32 0.0, %v2718
        %2720 = vmatprep.mubr.f32.mxu0 0.0
        %2721 = vmatmul.mubr.f32.gmra.mxu0 %v2211
        %v2722 = vpop.f32.mrf.mxu0
        %v2723 = vadd.f32 0.0, %v2722
        %v2724 = vpop.f32.mrf.mxu0
        %v2725 = vadd.f32 0.0, %v2724
        %2726 = vmatprep.mubr.f32.mxu0 0.0
        %2727 = vmatmul.mubr.f32.gmra.mxu0 %v2214
        %v2728 = vpop.f32.mrf.mxu0
        %v2729 = vadd.f32 0.0, %v2728
        %v2730 = vpop.f32.mrf.mxu0
        %v2731 = vadd.f32 0.0, %v2730
        %2732 = vmatprep.mubr.f32.mxu0 0.0
        %2733 = vmatmul.mubr.f32.gmra.mxu0 %v2217
        %v2734 = vpop.f32.mrf.mxu0
        %v2735 = vadd.f32 0.0, %v2734
        %v2736 = vpop.f32.mrf.mxu0
        %v2737 = vadd.f32 0.0, %v2736
        %2738 = vmatprep.mubr.f32.mxu0 0.0
        %2739 = vmatmul.mubr.f32.gmra.mxu0 %v2220
        %v2740 = vpop.f32.mrf.mxu0
        %v2741 = vadd.f32 0.0, %v2740
        %v2742 = vpop.f32.mrf.mxu0
        %v2743 = vadd.f32 0.0, %v2742
        %2744 = vmatprep.mubr.f32.mxu0 0.0
        %2745 = vmatmul.mubr.f32.gmra.mxu0 %v2223
        %v2746 = vpop.f32.mrf.mxu0
        %v2747 = vadd.f32 0.0, %v2746
        %v2748 = vpop.f32.mrf.mxu0
        %v2749 = vadd.f32 0.0, %v2748
        %2750 = vmatprep.mubr.f32.mxu0 0.0
        %2751 = vmatmul.mubr.f32.gmra.mxu0 %v2226
        %v2752 = vpop.f32.mrf.mxu0
        %v2753 = vadd.f32 0.0, %v2752
        %v2754 = vpop.f32.mrf.mxu0
        %v2755 = vadd.f32 0.0, %v2754
        %2756 = vmatprep.mubr.f32.mxu0 0.0
        %2757 = vmatmul.mubr.f32.gmra.mxu0 %v2229
        %v2758 = vpop.f32.mrf.mxu0
        %v2759 = vadd.f32 0.0, %v2758
        %v2760 = vpop.f32.mrf.mxu0
        %v2761 = vadd.f32 0.0, %v2760
        %2762 = vmatprep.mubr.f32.mxu0 0.0
        %2763 = vmatmul.mubr.f32.gmra.mxu0 %v2232
        %v2764 = vpop.f32.mrf.mxu0
        %v2765 = vadd.f32 0.0, %v2764
        %v2766 = vpop.f32.mrf.mxu0
        %v2767 = vadd.f32 0.0, %v2766
        %2768 = vmatprep.mubr.f32.mxu0 0.0
        %2769 = vmatmul.mubr.f32.gmra.mxu0 %v2235
        %v2770 = vpop.f32.mrf.mxu0
        %v2771 = vadd.f32 0.0, %v2770
        %v2772 = vpop.f32.mrf.mxu0
        %v2773 = vadd.f32 0.0, %v2772
        %2774 = vmatprep.mubr.f32.mxu0 0.0
        %2775 = vmatmul.mubr.f32.gmra.mxu0 %v2238
        %v2776 = vpop.f32.mrf.mxu0
        %v2777 = vadd.f32 0.0, %v2776
        %v2778 = vpop.f32.mrf.mxu0
        %v2779 = vadd.f32 0.0, %v2778
        %2780 = vmatprep.mubr.f32.mxu0 0.0
        %2781 = vmatmul.mubr.f32.gmra.mxu0 %v2241
        %v2782 = vpop.f32.mrf.mxu0
        %v2783 = vadd.f32 0.0, %v2782
        %v2784 = vpop.f32.mrf.mxu0
        %v2785 = vadd.f32 0.0, %v2784
        %2786 = vmatprep.mubr.f32.mxu0 0.0
        %2787 = vmatmul.mubr.f32.gmra.mxu0 %v2244
        %v2788 = vpop.f32.mrf.mxu0
        %v2789 = vadd.f32 0.0, %v2788
        %v2790 = vpop.f32.mrf.mxu0
        %v2791 = vadd.f32 0.0, %v2790
        %2792 = vmatprep.mubr.f32.mxu0 0.0
        %2793 = vmatmul.mubr.f32.gmra.mxu0 %v2247
        %v2794 = vpop.f32.mrf.mxu0
        %v2795 = vadd.f32 0.0, %v2794
        %v2796 = vpop.f32.mrf.mxu0
        %v2797 = vadd.f32 0.0, %v2796
        %2798 = vmatprep.mubr.f32.mxu0 0.0
        %2799 = vmatmul.mubr.f32.gmra.mxu0 %v2250
        %v2800 = vpop.f32.mrf.mxu0
        %v2801 = vadd.f32 0.0, %v2800
        %v2802 = vpop.f32.mrf.mxu0
        %v2803 = vadd.f32 0.0, %v2802
        %2804 = vmatprep.mubr.f32.mxu0 0.0
        %2805 = vmatmul.mubr.f32.gmra.mxu0 %v2253
        %v2806 = vpop.f32.mrf.mxu0
        %v2807 = vadd.f32 0.0, %v2806
        %v2808 = vpop.f32.mrf.mxu0
        %v2809 = vadd.f32 0.0, %v2808
        %2810 = vmatprep.mubr.f32.mxu0 0.0
        %2811 = vmatmul.mubr.f32.gmra.mxu0 %v2256
        %v2812 = vpop.f32.mrf.mxu0
        %v2813 = vadd.f32 0.0, %v2812
        %v2814 = vpop.f32.mrf.mxu0
        %v2815 = vadd.f32 0.0, %v2814
        %2816 = vmatprep.mubr.f32.mxu0 0.0
        %2817 = vmatmul.mubr.f32.gmra.mxu0 %v2259
        %v2818 = vpop.f32.mrf.mxu0
        %v2819 = vadd.f32 0.0, %v2818
        %v2820 = vpop.f32.mrf.mxu0
        %v2821 = vadd.f32 0.0, %v2820
        %2822 = vdwg.mxu0
        %v2823 = vadd.f32 %v1701, %v2520
        %v2824 = vadd.f32 %v1703, %v2522
        %v2825 = vadd.f32 %v1914, %v2801
        %v2826 = vadd.f32 %v1916, %v2803
        %v2827 = vadd.f32 %v1707, %v2526
        %v2828 = vadd.f32 %v1709, %v2528
        %v2829 = vadd.f32 %v1920, %v2807
        %v2830 = vadd.f32 %v1922, %v2809
        %v2831 = vadd.f32 %v1713, %v2532
        %v2832 = vadd.f32 %v1715, %v2534
        %v2833 = vadd.f32 %v1926, %v2813
        %v2834 = vadd.f32 %v1928, %v2815
        %v2835 = vadd.f32 %v1719, %v2538
        %v2836 = vadd.f32 %v1721, %v2540
        %v2837 = vadd.f32 %v1932, %v2819
        %v2838 = vadd.f32 %v1934, %v2821
        %v2839 = vlaneseq
        %v2840 = vshrl.u32 %v2839, 7
        %v2841 = vsub.s32 0, %v2840
        %v2842 = vrot.slane %v1284, %v2841
        %v2843 = vlaneseq
        %v2844 = vshrl.u32 %v2843, 7
        %v2845 = vsub.s32 0, %v2844
        %v2846 = vrot.slane %v1285, %v2845
        %v2847 = vlaneseq
        %v2848 = vshrl.u32 %v2847, 7
        %v2849 = vsub.s32 0, %v2848
        %v2850 = vrot.slane %v1286, %v2849
        %v2851 = vlaneseq
        %v2852 = vshrl.u32 %v2851, 7
        %v2853 = vsub.s32 0, %v2852
        %v2854 = vrot.slane %v1287, %v2853
        %v2855 = vmul.f32 %v2842, %v2328
        %v2856 = vmul.f32 %v2846, %v2330
        %v2857 = vmul.f32 %v2850, %v2609
        %v2858 = vmul.f32 %v2854, %v2611
        %v2859 = vmul.f32 %v2842, %v2334
        %v2860 = vmul.f32 %v2846, %v2336
        %v2861 = vmul.f32 %v2850, %v2615
        %v2862 = vmul.f32 %v2854, %v2617
        %v2863 = vmul.f32 %v2842, %v2340
        %v2864 = vmul.f32 %v2846, %v2342
        %v2865 = vmul.f32 %v2850, %v2621
        %v2866 = vmul.f32 %v2854, %v2623
        %v2867 = vmul.f32 %v2842, %v2346
        %v2868 = vmul.f32 %v2846, %v2348
        %v2869 = vmul.f32 %v2850, %v2627
        %v2870 = vmul.f32 %v2854, %v2629
        %v2871 = vadd.f32 %v2823, %v2855
        %v2872 = vadd.f32 %v2824, %v2856
        %v2873 = vadd.f32 %v2825, %v2857
        %v2874 = vadd.f32 %v2826, %v2858
        %v2875 = vadd.f32 %v2827, %v2859
        %v2876 = vadd.f32 %v2828, %v2860
        %v2877 = vadd.f32 %v2829, %v2861
        %v2878 = vadd.f32 %v2830, %v2862
        %v2879 = vadd.f32 %v2831, %v2863
        %v2880 = vadd.f32 %v2832, %v2864
        %v2881 = vadd.f32 %v2833, %v2865
        %v2882 = vadd.f32 %v2834, %v2866
        %v2883 = vadd.f32 %v2835, %v2867
        %v2884 = vadd.f32 %v2836, %v2868
        %v2885 = vadd.f32 %v2837, %v2869
        %v2886 = vadd.f32 %v2838, %v2870
        %v2887 = vlaneseq
        %v2888 = vshrl.u32 %v2887, 7
        %v2889 = vsub.s32 1, %v2888
        %v2890 = vrot.slane %v1284, %v2889
        %v2891 = vlaneseq
        %v2892 = vshrl.u32 %v2891, 7
        %v2893 = vsub.s32 1, %v2892
        %v2894 = vrot.slane %v1285, %v2893
        %v2895 = vlaneseq
        %v2896 = vshrl.u32 %v2895, 7
        %v2897 = vsub.s32 1, %v2896
        %v2898 = vrot.slane %v1286, %v2897
        %v2899 = vlaneseq
        %v2900 = vshrl.u32 %v2899, 7
        %v2901 = vsub.s32 1, %v2900
        %v2902 = vrot.slane %v1287, %v2901
        %v2903 = vmul.f32 %v2890, %v2352
        %v2904 = vmul.f32 %v2894, %v2354
        %v2905 = vmul.f32 %v2898, %v2633
        %v2906 = vmul.f32 %v2902, %v2635
        %v2907 = vmul.f32 %v2890, %v2358
        %v2908 = vmul.f32 %v2894, %v2360
        %v2909 = vmul.f32 %v2898, %v2639
        %v2910 = vmul.f32 %v2902, %v2641
        %v2911 = vmul.f32 %v2890, %v2364
        %v2912 = vmul.f32 %v2894, %v2366
        %v2913 = vmul.f32 %v2898, %v2645
        %v2914 = vmul.f32 %v2902, %v2647
        %v2915 = vmul.f32 %v2890, %v2370
        %v2916 = vmul.f32 %v2894, %v2372
        %v2917 = vmul.f32 %v2898, %v2651
        %v2918 = vmul.f32 %v2902, %v2653
        %v2919 = vadd.f32 %v2871, %v2903
        %v2920 = vadd.f32 %v2872, %v2904
        %v2921 = vadd.f32 %v2873, %v2905
        %v2922 = vadd.f32 %v2874, %v2906
        %v2923 = vadd.f32 %v2875, %v2907
        %v2924 = vadd.f32 %v2876, %v2908
        %v2925 = vadd.f32 %v2877, %v2909
        %v2926 = vadd.f32 %v2878, %v2910
        %v2927 = vadd.f32 %v2879, %v2911
        %v2928 = vadd.f32 %v2880, %v2912
        %v2929 = vadd.f32 %v2881, %v2913
        %v2930 = vadd.f32 %v2882, %v2914
        %v2931 = vadd.f32 %v2883, %v2915
        %v2932 = vadd.f32 %v2884, %v2916
        %v2933 = vadd.f32 %v2885, %v2917
        %v2934 = vadd.f32 %v2886, %v2918
        %v2935 = vlaneseq
        %v2936 = vshrl.u32 %v2935, 7
        %v2937 = vsub.s32 2, %v2936
        %v2938 = vrot.slane %v1284, %v2937
        %v2939 = vlaneseq
        %v2940 = vshrl.u32 %v2939, 7
        %v2941 = vsub.s32 2, %v2940
        %v2942 = vrot.slane %v1285, %v2941
        %v2943 = vlaneseq
        %v2944 = vshrl.u32 %v2943, 7
        %v2945 = vsub.s32 2, %v2944
        %v2946 = vrot.slane %v1286, %v2945
        %v2947 = vlaneseq
        %v2948 = vshrl.u32 %v2947, 7
        %v2949 = vsub.s32 2, %v2948
        %v2950 = vrot.slane %v1287, %v2949
        %v2951 = vmul.f32 %v2938, %v2376
        %v2952 = vmul.f32 %v2942, %v2378
        %v2953 = vmul.f32 %v2946, %v2657
        %v2954 = vmul.f32 %v2950, %v2659
        %v2955 = vmul.f32 %v2938, %v2382
        %v2956 = vmul.f32 %v2942, %v2384
        %v2957 = vmul.f32 %v2946, %v2663
        %v2958 = vmul.f32 %v2950, %v2665
        %v2959 = vmul.f32 %v2938, %v2388
        %v2960 = vmul.f32 %v2942, %v2390
        %v2961 = vmul.f32 %v2946, %v2669
        %v2962 = vmul.f32 %v2950, %v2671
        %v2963 = vmul.f32 %v2938, %v2394
        %v2964 = vmul.f32 %v2942, %v2396
        %v2965 = vmul.f32 %v2946, %v2675
        %v2966 = vmul.f32 %v2950, %v2677
        %v2967 = vadd.f32 %v2919, %v2951
        %v2968 = vadd.f32 %v2920, %v2952
        %v2969 = vadd.f32 %v2921, %v2953
        %v2970 = vadd.f32 %v2922, %v2954
        %v2971 = vadd.f32 %v2923, %v2955
        %v2972 = vadd.f32 %v2924, %v2956
        %v2973 = vadd.f32 %v2925, %v2957
        %v2974 = vadd.f32 %v2926, %v2958
        %v2975 = vadd.f32 %v2927, %v2959
        %v2976 = vadd.f32 %v2928, %v2960
        %v2977 = vadd.f32 %v2929, %v2961
        %v2978 = vadd.f32 %v2930, %v2962
        %v2979 = vadd.f32 %v2931, %v2963
        %v2980 = vadd.f32 %v2932, %v2964
        %v2981 = vadd.f32 %v2933, %v2965
        %v2982 = vadd.f32 %v2934, %v2966
        %v2983 = vlaneseq
        %v2984 = vshrl.u32 %v2983, 7
        %v2985 = vsub.s32 3, %v2984
        %v2986 = vrot.slane %v1284, %v2985
        %v2987 = vlaneseq
        %v2988 = vshrl.u32 %v2987, 7
        %v2989 = vsub.s32 3, %v2988
        %v2990 = vrot.slane %v1285, %v2989
        %v2991 = vlaneseq
        %v2992 = vshrl.u32 %v2991, 7
        %v2993 = vsub.s32 3, %v2992
        %v2994 = vrot.slane %v1286, %v2993
        %v2995 = vlaneseq
        %v2996 = vshrl.u32 %v2995, 7
        %v2997 = vsub.s32 3, %v2996
        %v2998 = vrot.slane %v1287, %v2997
        %v2999 = vmul.f32 %v2986, %v2400
        %v3000 = vmul.f32 %v2990, %v2402
        %v3001 = vmul.f32 %v2994, %v2681
        %v3002 = vmul.f32 %v2998, %v2683
        %v3003 = vmul.f32 %v2986, %v2406
        %v3004 = vmul.f32 %v2990, %v2408
        %v3005 = vmul.f32 %v2994, %v2687
        %v3006 = vmul.f32 %v2998, %v2689
        %v3007 = vmul.f32 %v2986, %v2412
        %v3008 = vmul.f32 %v2990, %v2414
        %v3009 = vmul.f32 %v2994, %v2693
        %v3010 = vmul.f32 %v2998, %v2695
        %v3011 = vmul.f32 %v2986, %v2418
        %v3012 = vmul.f32 %v2990, %v2420
        %v3013 = vmul.f32 %v2994, %v2699
        %v3014 = vmul.f32 %v2998, %v2701
        %v3015 = vadd.f32 %v2967, %v2999
        %v3016 = vadd.f32 %v2968, %v3000
        %v3017 = vadd.f32 %v2969, %v3001
        %v3018 = vadd.f32 %v2970, %v3002
        %v3019 = vadd.f32 %v2971, %v3003
        %v3020 = vadd.f32 %v2972, %v3004
        %v3021 = vadd.f32 %v2973, %v3005
        %v3022 = vadd.f32 %v2974, %v3006
        %v3023 = vadd.f32 %v2975, %v3007
        %v3024 = vadd.f32 %v2976, %v3008
        %v3025 = vadd.f32 %v2977, %v3009
        %v3026 = vadd.f32 %v2978, %v3010
        %v3027 = vadd.f32 %v2979, %v3011
        %v3028 = vadd.f32 %v2980, %v3012
        %v3029 = vadd.f32 %v2981, %v3013
        %v3030 = vadd.f32 %v2982, %v3014
        %v3031 = vlaneseq
        %v3032 = vshrl.u32 %v3031, 7
        %v3033 = vsub.s32 4, %v3032
        %v3034 = vrot.slane %v1284, %v3033
        %v3035 = vlaneseq
        %v3036 = vshrl.u32 %v3035, 7
        %v3037 = vsub.s32 4, %v3036
        %v3038 = vrot.slane %v1285, %v3037
        %v3039 = vlaneseq
        %v3040 = vshrl.u32 %v3039, 7
        %v3041 = vsub.s32 4, %v3040
        %v3042 = vrot.slane %v1286, %v3041
        %v3043 = vlaneseq
        %v3044 = vshrl.u32 %v3043, 7
        %v3045 = vsub.s32 4, %v3044
        %v3046 = vrot.slane %v1287, %v3045
        %v3047 = vmul.f32 %v3034, %v2424
        %v3048 = vmul.f32 %v3038, %v2426
        %v3049 = vmul.f32 %v3042, %v2705
        %v3050 = vmul.f32 %v3046, %v2707
        %v3051 = vmul.f32 %v3034, %v2430
        %v3052 = vmul.f32 %v3038, %v2432
        %v3053 = vmul.f32 %v3042, %v2711
        %v3054 = vmul.f32 %v3046, %v2713
        %v3055 = vmul.f32 %v3034, %v2436
        %v3056 = vmul.f32 %v3038, %v2438
        %v3057 = vmul.f32 %v3042, %v2717
        %v3058 = vmul.f32 %v3046, %v2719
        %v3059 = vmul.f32 %v3034, %v2442
        %v3060 = vmul.f32 %v3038, %v2444
        %v3061 = vmul.f32 %v3042, %v2723
        %v3062 = vmul.f32 %v3046, %v2725
        %v3063 = vadd.f32 %v3015, %v3047
        %v3064 = vadd.f32 %v3016, %v3048
        %v3065 = vadd.f32 %v3017, %v3049
        %v3066 = vadd.f32 %v3018, %v3050
        %v3067 = vadd.f32 %v3019, %v3051
        %v3068 = vadd.f32 %v3020, %v3052
        %v3069 = vadd.f32 %v3021, %v3053
        %v3070 = vadd.f32 %v3022, %v3054
        %v3071 = vadd.f32 %v3023, %v3055
        %v3072 = vadd.f32 %v3024, %v3056
        %v3073 = vadd.f32 %v3025, %v3057
        %v3074 = vadd.f32 %v3026, %v3058
        %v3075 = vadd.f32 %v3027, %v3059
        %v3076 = vadd.f32 %v3028, %v3060
        %v3077 = vadd.f32 %v3029, %v3061
        %v3078 = vadd.f32 %v3030, %v3062
        %v3079 = vlaneseq
        %v3080 = vshrl.u32 %v3079, 7
        %v3081 = vsub.s32 5, %v3080
        %v3082 = vrot.slane %v1284, %v3081
        %v3083 = vlaneseq
        %v3084 = vshrl.u32 %v3083, 7
        %v3085 = vsub.s32 5, %v3084
        %v3086 = vrot.slane %v1285, %v3085
        %v3087 = vlaneseq
        %v3088 = vshrl.u32 %v3087, 7
        %v3089 = vsub.s32 5, %v3088
        %v3090 = vrot.slane %v1286, %v3089
        %v3091 = vlaneseq
        %v3092 = vshrl.u32 %v3091, 7
        %v3093 = vsub.s32 5, %v3092
        %v3094 = vrot.slane %v1287, %v3093
        %v3095 = vmul.f32 %v3082, %v2448
        %v3096 = vmul.f32 %v3086, %v2450
        %v3097 = vmul.f32 %v3090, %v2729
        %v3098 = vmul.f32 %v3094, %v2731
        %v3099 = vmul.f32 %v3082, %v2454
        %v3100 = vmul.f32 %v3086, %v2456
        %v3101 = vmul.f32 %v3090, %v2735
        %v3102 = vmul.f32 %v3094, %v2737
        %v3103 = vmul.f32 %v3082, %v2460
        %v3104 = vmul.f32 %v3086, %v2462
        %v3105 = vmul.f32 %v3090, %v2741
        %v3106 = vmul.f32 %v3094, %v2743
        %v3107 = vmul.f32 %v3082, %v2466
        %v3108 = vmul.f32 %v3086, %v2468
        %v3109 = vmul.f32 %v3090, %v2747
        %v3110 = vmul.f32 %v3094, %v2749
        %v3111 = vadd.f32 %v3063, %v3095
        %v3112 = vadd.f32 %v3064, %v3096
        %v3113 = vadd.f32 %v3065, %v3097
        %v3114 = vadd.f32 %v3066, %v3098
        %v3115 = vadd.f32 %v3067, %v3099
        %v3116 = vadd.f32 %v3068, %v3100
        %v3117 = vadd.f32 %v3069, %v3101
        %v3118 = vadd.f32 %v3070, %v3102
        %v3119 = vadd.f32 %v3071, %v3103
        %v3120 = vadd.f32 %v3072, %v3104
        %v3121 = vadd.f32 %v3073, %v3105
        %v3122 = vadd.f32 %v3074, %v3106
        %v3123 = vadd.f32 %v3075, %v3107
        %v3124 = vadd.f32 %v3076, %v3108
        %v3125 = vadd.f32 %v3077, %v3109
        %v3126 = vadd.f32 %v3078, %v3110
        %v3127 = vlaneseq
        %v3128 = vshrl.u32 %v3127, 7
        %v3129 = vsub.s32 6, %v3128
        %v3130 = vrot.slane %v1284, %v3129
        %v3131 = vlaneseq
        %v3132 = vshrl.u32 %v3131, 7
        %v3133 = vsub.s32 6, %v3132
        %v3134 = vrot.slane %v1285, %v3133
        %v3135 = vlaneseq
        %v3136 = vshrl.u32 %v3135, 7
        %v3137 = vsub.s32 6, %v3136
        %v3138 = vrot.slane %v1286, %v3137
        %v3139 = vlaneseq
        %v3140 = vshrl.u32 %v3139, 7
        %v3141 = vsub.s32 6, %v3140
        %v3142 = vrot.slane %v1287, %v3141
        %v3143 = vmul.f32 %v3130, %v2472
        %v3144 = vmul.f32 %v3134, %v2474
        %v3145 = vmul.f32 %v3138, %v2753
        %v3146 = vmul.f32 %v3142, %v2755
        %v3147 = vmul.f32 %v3130, %v2478
        %v3148 = vmul.f32 %v3134, %v2480
        %v3149 = vmul.f32 %v3138, %v2759
        %v3150 = vmul.f32 %v3142, %v2761
        %v3151 = vmul.f32 %v3130, %v2484
        %v3152 = vmul.f32 %v3134, %v2486
        %v3153 = vmul.f32 %v3138, %v2765
        %v3154 = vmul.f32 %v3142, %v2767
        %v3155 = vmul.f32 %v3130, %v2490
        %v3156 = vmul.f32 %v3134, %v2492
        %v3157 = vmul.f32 %v3138, %v2771
        %v3158 = vmul.f32 %v3142, %v2773
        %v3159 = vadd.f32 %v3111, %v3143
        %v3160 = vadd.f32 %v3112, %v3144
        %v3161 = vadd.f32 %v3113, %v3145
        %v3162 = vadd.f32 %v3114, %v3146
        %v3163 = vadd.f32 %v3115, %v3147
        %v3164 = vadd.f32 %v3116, %v3148
        %v3165 = vadd.f32 %v3117, %v3149
        %v3166 = vadd.f32 %v3118, %v3150
        %v3167 = vadd.f32 %v3119, %v3151
        %v3168 = vadd.f32 %v3120, %v3152
        %v3169 = vadd.f32 %v3121, %v3153
        %v3170 = vadd.f32 %v3122, %v3154
        %v3171 = vadd.f32 %v3123, %v3155
        %v3172 = vadd.f32 %v3124, %v3156
        %v3173 = vadd.f32 %v3125, %v3157
        %v3174 = vadd.f32 %v3126, %v3158
        %v3175 = vlaneseq
        %v3176 = vshrl.u32 %v3175, 7
        %v3177 = vsub.s32 7, %v3176
        %v3178 = vrot.slane %v1284, %v3177
        %v3179 = vlaneseq
        %v3180 = vshrl.u32 %v3179, 7
        %v3181 = vsub.s32 7, %v3180
        %v3182 = vrot.slane %v1285, %v3181
        %v3183 = vlaneseq
        %v3184 = vshrl.u32 %v3183, 7
        %v3185 = vsub.s32 7, %v3184
        %v3186 = vrot.slane %v1286, %v3185
        %v3187 = vlaneseq
        %v3188 = vshrl.u32 %v3187, 7
        %v3189 = vsub.s32 7, %v3188
        %v3190 = vrot.slane %v1287, %v3189
        %v3191 = vmul.f32 %v3178, %v2496
        %v3192 = vmul.f32 %v3182, %v2498
        %v3193 = vmul.f32 %v3186, %v2777
        %v3194 = vmul.f32 %v3190, %v2779
        %v3195 = vmul.f32 %v3178, %v2502
        %v3196 = vmul.f32 %v3182, %v2504
        %v3197 = vmul.f32 %v3186, %v2783
        %v3198 = vmul.f32 %v3190, %v2785
        %v3199 = vmul.f32 %v3178, %v2508
        %v3200 = vmul.f32 %v3182, %v2510
        %v3201 = vmul.f32 %v3186, %v2789
        %v3202 = vmul.f32 %v3190, %v2791
        %v3203 = vmul.f32 %v3178, %v2514
        %v3204 = vmul.f32 %v3182, %v2516
        %v3205 = vmul.f32 %v3186, %v2795
        %v3206 = vmul.f32 %v3190, %v2797
        %v3207 = vadd.f32 %v3159, %v3191
        %v3208 = vadd.f32 %v3160, %v3192
        %v3209 = vadd.f32 %v3161, %v3193
        %v3210 = vadd.f32 %v3162, %v3194
        %v3211 = vadd.f32 %v3163, %v3195
        %v3212 = vadd.f32 %v3164, %v3196
        %v3213 = vadd.f32 %v3165, %v3197
        %v3214 = vadd.f32 %v3166, %v3198
        %v3215 = vadd.f32 %v3167, %v3199
        %v3216 = vadd.f32 %v3168, %v3200
        %v3217 = vadd.f32 %v3169, %v3201
        %v3218 = vadd.f32 %v3170, %v3202
        %v3219 = vadd.f32 %v3171, %v3203
        %v3220 = vadd.f32 %v3172, %v3204
        %v3221 = vadd.f32 %v3173, %v3205
        %v3222 = vadd.f32 %v3174, %v3206
        %v3223 = vtanh.pop %v3207
        %v3224 = vtanh.pop %v3208
        %v3225 = vtanh.pop %v3209
        %v3226 = vtanh.pop %v3210
        %v3227 = vtanh.pop %v3211
        %v3228 = vtanh.pop %v3212
        %v3229 = vtanh.pop %v3213
        %v3230 = vtanh.pop %v3214
        %v3231 = vtanh.pop %v3215
        %v3232 = vtanh.pop %v3216
        %v3233 = vtanh.pop %v3217
        %v3234 = vtanh.pop %v3218
        %v3235 = vtanh.pop %v3219
        %v3236 = vtanh.pop %v3220
        %v3237 = vtanh.pop %v3221
        %v3238 = vtanh.pop %v3222
        %s3239 = scalar_lea.vmem %s10, 288
        %v3240 = vld [vmem:[%s3239] sm:$0xff]
        %v3241 = vld [vmem:[%s3239 + $0x8] sm:$0xff]
        %v3242 = vld [vmem:[%s3239 + $0x10] sm:$0xff]
        %v3243 = vld [vmem:[%s3239 + $0x18] sm:$0xff]
        %v3244 = vld [vmem:[%s3239 + $0x20] sm:$0xff]
        %v3245 = vld [vmem:[%s3239 + $0x28] sm:$0xff]
        %v3246 = vld [vmem:[%s3239 + $0x30] sm:$0xff]
        %v3247 = vld [vmem:[%s3239 + $0x38] sm:$0xff]
        %v3248 = vld [vmem:[%s3239 + $0x40] sm:$0xff]
        %v3249 = vld [vmem:[%s3239 + $0x48] sm:$0xff]
        %v3250 = vld [vmem:[%s3239 + $0x50] sm:$0xff]
        %v3251 = vld [vmem:[%s3239 + $0x58] sm:$0xff]
        %v3252 = vld [vmem:[%s3239 + $0x60] sm:$0xff]
        %v3253 = vld [vmem:[%s3239 + $0x68] sm:$0xff]
        %v3254 = vld [vmem:[%s3239 + $0x70] sm:$0xff]
        %v3255 = vld [vmem:[%s3239 + $0x78] sm:$0xff]
        %v3256 = vld [vmem:[%s3239 + $0x80] sm:$0xff]
        %v3257 = vld [vmem:[%s3239 + $0x88] sm:$0xff]
        %v3258 = vld [vmem:[%s3239 + $0x90] sm:$0xff]
        %v3259 = vld [vmem:[%s3239 + $0x98] sm:$0xff]
        %v3260 = vld [vmem:[%s3239 + $0xa0] sm:$0xff]
        %v3261 = vld [vmem:[%s3239 + $0xa8] sm:$0xff]
        %v3262 = vld [vmem:[%s3239 + $0xb0] sm:$0xff]
        %v3263 = vld [vmem:[%s3239 + $0xb8] sm:$0xff]
        %v3264 = vld [vmem:[%s3239 + $0xc0] sm:$0xff]
        %v3265 = vld [vmem:[%s3239 + $0xc8] sm:$0xff]
        %v3266 = vld [vmem:[%s3239 + $0xd0] sm:$0xff]
        %v3267 = vld [vmem:[%s3239 + $0xd8] sm:$0xff]
        %v3268 = vld [vmem:[%s3239 + $0xe0] sm:$0xff]
        %v3269 = vld [vmem:[%s3239 + $0xe8] sm:$0xff]
        %v3270 = vld [vmem:[%s3239 + $0xf0] sm:$0xff]
        %v3271 = vld [vmem:[%s3239 + $0xf8] sm:$0xff]
        %v3272 = vld [vmem:[%s3239 + $0x100] sm:$0xff]
        %v3273 = vld [vmem:[%s3239 + $0x108] sm:$0xff]
        %v3274 = vld [vmem:[%s3239 + $0x110] sm:$0xff]
        %v3275 = vld [vmem:[%s3239 + $0x118] sm:$0xff]
        %v3277 = vsel %vm657, %v3240, 0
        %v3280 = vsel %vm657, %v3241, 0
        %v3283 = vsel %vm657, %v3242, 0
        %v3286 = vsel %vm657, %v3243, 0
        %v3289 = vsel %vm657, %v3244, 0
        %v3292 = vsel %vm657, %v3245, 0
        %v3295 = vsel %vm657, %v3246, 0
        %v3298 = vsel %vm657, %v3247, 0
        %v3301 = vsel %vm657, %v3248, 0
        %v3304 = vsel %vm657, %v3249, 0
        %v3307 = vsel %vm657, %v3250, 0
        %v3310 = vsel %vm657, %v3251, 0
        %v3313 = vsel %vm657, %v3252, 0
        %v3316 = vsel %vm657, %v3253, 0
        %v3319 = vsel %vm657, %v3254, 0
        %v3322 = vsel %vm657, %v3255, 0
        %v3325 = vsel %vm657, %v3256, 0
        %v3328 = vsel %vm657, %v3257, 0
        %v3331 = vsel %vm657, %v3258, 0
        %v3334 = vsel %vm657, %v3259, 0
        %v3337 = vsel %vm657, %v3260, 0
        %v3340 = vsel %vm657, %v3261, 0
        %v3343 = vsel %vm657, %v3262, 0
        %v3346 = vsel %vm657, %v3263, 0
        %v3349 = vsel %vm657, %v3264, 0
        %v3352 = vsel %vm657, %v3265, 0
        %v3355 = vsel %vm657, %v3266, 0
        %v3358 = vsel %vm657, %v3267, 0
        %v3361 = vsel %vm657, %v3268, 0
        %v3364 = vsel %vm657, %v3269, 0
        %v3367 = vsel %vm657, %v3270, 0
        %v3370 = vsel %vm657, %v3271, 0
        %v3373 = vsel %vm657, %v3272, 0
        %v3376 = vsel %vm657, %v3273, 0
        %v3379 = vsel %vm657, %v3274, 0
        %v3382 = vsel %vm657, %v3275, 0
        %3384 = vmatprep.subr.mxu0 0.0
        %3385 = vmatpush1.msra.mxu0 0.0
        %3386 = vmatprep.subr.mxu0 0.0
        %3387 = vmatpush1.msra.mxu0 0.0
        %3388 = vmatprep.subr.mxu0 0.0
        %3389 = vmatpush1.msra.mxu0 0.0
        %3390 = vmatprep.subr.mxu0 0.0
        %3391 = vmatpush1.msra.mxu0 0.0
        %3392 = vmatprep.subr.mxu0 0.0
        %3393 = vmatpush1.msra.mxu0 0.0
        %3394 = vmatprep.subr.mxu0 0.0
        %3395 = vmatpush1.msra.mxu0 0.0
        %3396 = vmatprep.subr.mxu0 0.0
        %3397 = vmatpush1.msra.mxu0 0.0
        %3398 = vmatprep.subr.mxu0 0.0
        %3399 = vmatpush1.msra.mxu0 0.0
        %3400 = vmatprep.subr.mxu0 0.0
        %3401 = vmatpush1.msra.mxu0 0.0
        %3402 = vmatprep.subr.mxu0 0.0
        %3403 = vmatpush1.msra.mxu0 0.0
        %3404 = vmatprep.subr.mxu0 0.0
        %3405 = vmatpush1.msra.mxu0 0.0
        %3406 = vmatprep.subr.mxu0 0.0
        %3407 = vmatpush1.msra.mxu0 0.0
        %3408 = vmatprep.subr.mxu0 %v3236
        %3409 = vmatpush1.msra.mxu0 %v3235
        %3410 = vmatprep.subr.mxu0 %v3232
        %3411 = vmatpush1.msra.mxu0 %v3231
        %3412 = vmatprep.subr.mxu0 %v3228
        %3413 = vmatpush1.msra.mxu0 %v3227
        %3414 = vmatprep.subr.mxu0 %v3224
        %3415 = vmatpush1.msra.mxu0 %v3223
        %3416 = vmatprep.subr.mxu0 0.0
        %3417 = vmatpush2.msra.mxu0 0.0
        %3418 = vmatprep.subr.mxu0 0.0
        %3419 = vmatpush2.msra.mxu0 0.0
        %3420 = vmatprep.subr.mxu0 0.0
        %3421 = vmatpush2.msra.mxu0 0.0
        %3422 = vmatprep.subr.mxu0 0.0
        %3423 = vmatpush2.msra.mxu0 0.0
        %3424 = vmatprep.subr.mxu0 0.0
        %3425 = vmatpush2.msra.mxu0 0.0
        %3426 = vmatprep.subr.mxu0 0.0
        %3427 = vmatpush2.msra.mxu0 0.0
        %3428 = vmatprep.subr.mxu0 0.0
        %3429 = vmatpush2.msra.mxu0 0.0
        %3430 = vmatprep.subr.mxu0 0.0
        %3431 = vmatpush2.msra.mxu0 0.0
        %3432 = vmatprep.subr.mxu0 0.0
        %3433 = vmatpush2.msra.mxu0 0.0
        %3434 = vmatprep.subr.mxu0 0.0
        %3435 = vmatpush2.msra.mxu0 0.0
        %3436 = vmatprep.subr.mxu0 0.0
        %3437 = vmatpush2.msra.mxu0 0.0
        %3438 = vmatprep.subr.mxu0 0.0
        %3439 = vmatpush2.msra.mxu0 0.0
        %3440 = vmatprep.subr.mxu0 0.0
        %3441 = vmatpush2.msra.mxu0 0.0
        %3442 = vmatprep.subr.mxu0 0.0
        %3443 = vmatpush2.msra.mxu0 0.0
        %3444 = vmatprep.subr.mxu0 0.0
        %3445 = vmatpush2.msra.mxu0 0.0
        %3446 = vmatprep.subr.mxu0 0.0
        %3447 = vmatpush2.msra.mxu0 0.0
        %3448 = vmatprep.mubr.f32.mxu0 0.0
        %3449 = vmatmul.mubr.f32.gmra.mxu0 %v3277
        %v3450 = vpop.f32.mrf.mxu0
        %v3451 = vadd.f32 0.0, %v3450
        %v3452 = vpop.f32.mrf.mxu0
        %v3453 = vadd.f32 0.0, %v3452
        %3454 = vmatprep.mubr.f32.mxu0 0.0
        %3455 = vmatmul.mubr.f32.gmra.mxu0 %v3280
        %v3456 = vpop.f32.mrf.mxu0
        %v3457 = vadd.f32 0.0, %v3456
        %v3458 = vpop.f32.mrf.mxu0
        %v3459 = vadd.f32 0.0, %v3458
        %3460 = vmatprep.mubr.f32.mxu0 0.0
        %3461 = vmatmul.mubr.f32.gmra.mxu0 %v3283
        %v3462 = vpop.f32.mrf.mxu0
        %v3463 = vadd.f32 0.0, %v3462
        %v3464 = vpop.f32.mrf.mxu0
        %v3465 = vadd.f32 0.0, %v3464
        %3466 = vmatprep.mubr.f32.mxu0 0.0
        %3467 = vmatmul.mubr.f32.gmra.mxu0 %v3286
        %v3468 = vpop.f32.mrf.mxu0
        %v3469 = vadd.f32 0.0, %v3468
        %v3470 = vpop.f32.mrf.mxu0
        %v3471 = vadd.f32 0.0, %v3470
        %3472 = vmatprep.mubr.f32.mxu0 0.0
        %3473 = vmatmul.mubr.f32.gmra.mxu0 %v3289
        %v3474 = vpop.f32.mrf.mxu0
        %v3475 = vadd.f32 0.0, %v3474
        %v3476 = vpop.f32.mrf.mxu0
        %v3477 = vadd.f32 0.0, %v3476
        %3478 = vmatprep.mubr.f32.mxu0 0.0
        %3479 = vmatmul.mubr.f32.gmra.mxu0 %v3292
        %v3480 = vpop.f32.mrf.mxu0
        %v3481 = vadd.f32 0.0, %v3480
        %v3482 = vpop.f32.mrf.mxu0
        %v3483 = vadd.f32 0.0, %v3482
        %3484 = vmatprep.mubr.f32.mxu0 0.0
        %3485 = vmatmul.mubr.f32.gmra.mxu0 %v3295
        %v3486 = vpop.f32.mrf.mxu0
        %v3487 = vadd.f32 0.0, %v3486
        %v3488 = vpop.f32.mrf.mxu0
        %v3489 = vadd.f32 0.0, %v3488
        %3490 = vmatprep.mubr.f32.mxu0 0.0
        %3491 = vmatmul.mubr.f32.gmra.mxu0 %v3298
        %v3492 = vpop.f32.mrf.mxu0
        %v3493 = vadd.f32 0.0, %v3492
        %v3494 = vpop.f32.mrf.mxu0
        %v3495 = vadd.f32 0.0, %v3494
        %3496 = vmatprep.mubr.f32.mxu0 0.0
        %3497 = vmatmul.mubr.f32.gmra.mxu0 %v3301
        %v3498 = vpop.f32.mrf.mxu0
        %v3499 = vadd.f32 0.0, %v3498
        %v3500 = vpop.f32.mrf.mxu0
        %v3501 = vadd.f32 0.0, %v3500
        %3502 = vmatprep.mubr.f32.mxu0 0.0
        %3503 = vmatmul.mubr.f32.gmra.mxu0 %v3304
        %v3504 = vpop.f32.mrf.mxu0
        %v3505 = vadd.f32 0.0, %v3504
        %v3506 = vpop.f32.mrf.mxu0
        %v3507 = vadd.f32 0.0, %v3506
        %3508 = vmatprep.mubr.f32.mxu0 0.0
        %3509 = vmatmul.mubr.f32.gmra.mxu0 %v3307
        %v3510 = vpop.f32.mrf.mxu0
        %v3511 = vadd.f32 0.0, %v3510
        %v3512 = vpop.f32.mrf.mxu0
        %v3513 = vadd.f32 0.0, %v3512
        %3514 = vmatprep.mubr.f32.mxu0 0.0
        %3515 = vmatmul.mubr.f32.gmra.mxu0 %v3310
        %v3516 = vpop.f32.mrf.mxu0
        %v3517 = vadd.f32 0.0, %v3516
        %v3518 = vpop.f32.mrf.mxu0
        %v3519 = vadd.f32 0.0, %v3518
        %3520 = vmatprep.mubr.f32.mxu0 0.0
        %3521 = vmatmul.mubr.f32.gmra.mxu0 %v3313
        %v3522 = vpop.f32.mrf.mxu0
        %v3523 = vadd.f32 0.0, %v3522
        %v3524 = vpop.f32.mrf.mxu0
        %v3525 = vadd.f32 0.0, %v3524
        %3526 = vmatprep.mubr.f32.mxu0 0.0
        %3527 = vmatmul.mubr.f32.gmra.mxu0 %v3316
        %v3528 = vpop.f32.mrf.mxu0
        %v3529 = vadd.f32 0.0, %v3528
        %v3530 = vpop.f32.mrf.mxu0
        %v3531 = vadd.f32 0.0, %v3530
        %3532 = vmatprep.mubr.f32.mxu0 0.0
        %3533 = vmatmul.mubr.f32.gmra.mxu0 %v3319
        %v3534 = vpop.f32.mrf.mxu0
        %v3535 = vadd.f32 0.0, %v3534
        %v3536 = vpop.f32.mrf.mxu0
        %v3537 = vadd.f32 0.0, %v3536
        %3538 = vmatprep.mubr.f32.mxu0 0.0
        %3539 = vmatmul.mubr.f32.gmra.mxu0 %v3322
        %v3540 = vpop.f32.mrf.mxu0
        %v3541 = vadd.f32 0.0, %v3540
        %v3542 = vpop.f32.mrf.mxu0
        %v3543 = vadd.f32 0.0, %v3542
        %3544 = vmatprep.mubr.f32.mxu0 0.0
        %3545 = vmatmul.mubr.f32.gmra.mxu0 %v3325
        %v3546 = vpop.f32.mrf.mxu0
        %v3547 = vadd.f32 0.0, %v3546
        %v3548 = vpop.f32.mrf.mxu0
        %v3549 = vadd.f32 0.0, %v3548
        %3550 = vmatprep.mubr.f32.mxu0 0.0
        %3551 = vmatmul.mubr.f32.gmra.mxu0 %v3328
        %v3552 = vpop.f32.mrf.mxu0
        %v3553 = vadd.f32 0.0, %v3552
        %v3554 = vpop.f32.mrf.mxu0
        %v3555 = vadd.f32 0.0, %v3554
        %3556 = vmatprep.mubr.f32.mxu0 0.0
        %3557 = vmatmul.mubr.f32.gmra.mxu0 %v3331
        %v3558 = vpop.f32.mrf.mxu0
        %v3559 = vadd.f32 0.0, %v3558
        %v3560 = vpop.f32.mrf.mxu0
        %v3561 = vadd.f32 0.0, %v3560
        %3562 = vmatprep.mubr.f32.mxu0 0.0
        %3563 = vmatmul.mubr.f32.gmra.mxu0 %v3334
        %v3564 = vpop.f32.mrf.mxu0
        %v3565 = vadd.f32 0.0, %v3564
        %v3566 = vpop.f32.mrf.mxu0
        %v3567 = vadd.f32 0.0, %v3566
        %3568 = vmatprep.mubr.f32.mxu0 0.0
        %3569 = vmatmul.mubr.f32.gmra.mxu0 %v3337
        %v3570 = vpop.f32.mrf.mxu0
        %v3571 = vadd.f32 0.0, %v3570
        %v3572 = vpop.f32.mrf.mxu0
        %v3573 = vadd.f32 0.0, %v3572
        %3574 = vmatprep.mubr.f32.mxu0 0.0
        %3575 = vmatmul.mubr.f32.gmra.mxu0 %v3340
        %v3576 = vpop.f32.mrf.mxu0
        %v3577 = vadd.f32 0.0, %v3576
        %v3578 = vpop.f32.mrf.mxu0
        %v3579 = vadd.f32 0.0, %v3578
        %3580 = vmatprep.mubr.f32.mxu0 0.0
        %3581 = vmatmul.mubr.f32.gmra.mxu0 %v3343
        %v3582 = vpop.f32.mrf.mxu0
        %v3583 = vadd.f32 0.0, %v3582
        %v3584 = vpop.f32.mrf.mxu0
        %v3585 = vadd.f32 0.0, %v3584
        %3586 = vmatprep.mubr.f32.mxu0 0.0
        %3587 = vmatmul.mubr.f32.gmra.mxu0 %v3346
        %v3588 = vpop.f32.mrf.mxu0
        %v3589 = vadd.f32 0.0, %v3588
        %v3590 = vpop.f32.mrf.mxu0
        %v3591 = vadd.f32 0.0, %v3590
        %3592 = vmatprep.mubr.f32.mxu0 0.0
        %3593 = vmatmul.mubr.f32.gmra.mxu0 %v3349
        %v3594 = vpop.f32.mrf.mxu0
        %v3595 = vadd.f32 0.0, %v3594
        %v3596 = vpop.f32.mrf.mxu0
        %v3597 = vadd.f32 0.0, %v3596
        %3598 = vmatprep.mubr.f32.mxu0 0.0
        %3599 = vmatmul.mubr.f32.gmra.mxu0 %v3352
        %v3600 = vpop.f32.mrf.mxu0
        %v3601 = vadd.f32 0.0, %v3600
        %v3602 = vpop.f32.mrf.mxu0
        %v3603 = vadd.f32 0.0, %v3602
        %3604 = vmatprep.mubr.f32.mxu0 0.0
        %3605 = vmatmul.mubr.f32.gmra.mxu0 %v3355
        %v3606 = vpop.f32.mrf.mxu0
        %v3607 = vadd.f32 0.0, %v3606
        %v3608 = vpop.f32.mrf.mxu0
        %v3609 = vadd.f32 0.0, %v3608
        %3610 = vmatprep.mubr.f32.mxu0 0.0
        %3611 = vmatmul.mubr.f32.gmra.mxu0 %v3358
        %v3612 = vpop.f32.mrf.mxu0
        %v3613 = vadd.f32 0.0, %v3612
        %v3614 = vpop.f32.mrf.mxu0
        %v3615 = vadd.f32 0.0, %v3614
        %3616 = vmatprep.mubr.f32.mxu0 0.0
        %3617 = vmatmul.mubr.f32.gmra.mxu0 %v3361
        %v3618 = vpop.f32.mrf.mxu0
        %v3619 = vadd.f32 0.0, %v3618
        %v3620 = vpop.f32.mrf.mxu0
        %v3621 = vadd.f32 0.0, %v3620
        %3622 = vmatprep.mubr.f32.mxu0 0.0
        %3623 = vmatmul.mubr.f32.gmra.mxu0 %v3364
        %v3624 = vpop.f32.mrf.mxu0
        %v3625 = vadd.f32 0.0, %v3624
        %v3626 = vpop.f32.mrf.mxu0
        %v3627 = vadd.f32 0.0, %v3626
        %3628 = vmatprep.mubr.f32.mxu0 0.0
        %3629 = vmatmul.mubr.f32.gmra.mxu0 %v3367
        %v3630 = vpop.f32.mrf.mxu0
        %v3631 = vadd.f32 0.0, %v3630
        %v3632 = vpop.f32.mrf.mxu0
        %v3633 = vadd.f32 0.0, %v3632
        %3634 = vmatprep.mubr.f32.mxu0 0.0
        %3635 = vmatmul.mubr.f32.gmra.mxu0 %v3370
        %v3636 = vpop.f32.mrf.mxu0
        %v3637 = vadd.f32 0.0, %v3636
        %v3638 = vpop.f32.mrf.mxu0
        %v3639 = vadd.f32 0.0, %v3638
        %3640 = vmatprep.mubr.f32.mxu0 0.0
        %3641 = vmatmul.mubr.f32.gmra.mxu0 %v3373
        %v3642 = vpop.f32.mrf.mxu0
        %v3643 = vadd.f32 0.0, %v3642
        %v3644 = vpop.f32.mrf.mxu0
        %v3645 = vadd.f32 0.0, %v3644
        %3646 = vmatprep.mubr.f32.mxu0 0.0
        %3647 = vmatmul.mubr.f32.gmra.mxu0 %v3376
        %v3648 = vpop.f32.mrf.mxu0
        %v3649 = vadd.f32 0.0, %v3648
        %v3650 = vpop.f32.mrf.mxu0
        %v3651 = vadd.f32 0.0, %v3650
        %3652 = vmatprep.mubr.f32.mxu0 0.0
        %3653 = vmatmul.mubr.f32.gmra.mxu0 %v3379
        %v3654 = vpop.f32.mrf.mxu0
        %v3655 = vadd.f32 0.0, %v3654
        %v3656 = vpop.f32.mrf.mxu0
        %v3657 = vadd.f32 0.0, %v3656
        %3658 = vmatprep.mubr.f32.mxu0 0.0
        %3659 = vmatmul.mubr.f32.gmra.mxu0 %v3382
        %v3660 = vpop.f32.mrf.mxu0
        %v3661 = vadd.f32 0.0, %v3660
        %v3662 = vpop.f32.mrf.mxu0
        %v3663 = vadd.f32 0.0, %v3662
        %3664 = vdwg.mxu0
        %3665 = vmatprep.subr.mxu0 0.0
        %3666 = vmatpush1.msra.mxu0 0.0
        %3667 = vmatprep.subr.mxu0 0.0
        %3668 = vmatpush1.msra.mxu0 0.0
        %3669 = vmatprep.subr.mxu0 0.0
        %3670 = vmatpush1.msra.mxu0 0.0
        %3671 = vmatprep.subr.mxu0 0.0
        %3672 = vmatpush1.msra.mxu0 0.0
        %3673 = vmatprep.subr.mxu0 0.0
        %3674 = vmatpush1.msra.mxu0 0.0
        %3675 = vmatprep.subr.mxu0 0.0
        %3676 = vmatpush1.msra.mxu0 0.0
        %3677 = vmatprep.subr.mxu0 0.0
        %3678 = vmatpush1.msra.mxu0 0.0
        %3679 = vmatprep.subr.mxu0 0.0
        %3680 = vmatpush1.msra.mxu0 0.0
        %3681 = vmatprep.subr.mxu0 0.0
        %3682 = vmatpush1.msra.mxu0 0.0
        %3683 = vmatprep.subr.mxu0 0.0
        %3684 = vmatpush1.msra.mxu0 0.0
        %3685 = vmatprep.subr.mxu0 0.0
        %3686 = vmatpush1.msra.mxu0 0.0
        %3687 = vmatprep.subr.mxu0 0.0
        %3688 = vmatpush1.msra.mxu0 0.0
        %3689 = vmatprep.subr.mxu0 %v3238
        %3690 = vmatpush1.msra.mxu0 %v3237
        %3691 = vmatprep.subr.mxu0 %v3234
        %3692 = vmatpush1.msra.mxu0 %v3233
        %3693 = vmatprep.subr.mxu0 %v3230
        %3694 = vmatpush1.msra.mxu0 %v3229
        %3695 = vmatprep.subr.mxu0 %v3226
        %3696 = vmatpush1.msra.mxu0 %v3225
        %3697 = vmatprep.subr.mxu0 0.0
        %3698 = vmatpush2.msra.mxu0 0.0
        %3699 = vmatprep.subr.mxu0 0.0
        %3700 = vmatpush2.msra.mxu0 0.0
        %3701 = vmatprep.subr.mxu0 0.0
        %3702 = vmatpush2.msra.mxu0 0.0
        %3703 = vmatprep.subr.mxu0 0.0
        %3704 = vmatpush2.msra.mxu0 0.0
        %3705 = vmatprep.subr.mxu0 0.0
        %3706 = vmatpush2.msra.mxu0 0.0
        %3707 = vmatprep.subr.mxu0 0.0
        %3708 = vmatpush2.msra.mxu0 0.0
        %3709 = vmatprep.subr.mxu0 0.0
        %3710 = vmatpush2.msra.mxu0 0.0
        %3711 = vmatprep.subr.mxu0 0.0
        %3712 = vmatpush2.msra.mxu0 0.0
        %3713 = vmatprep.subr.mxu0 0.0
        %3714 = vmatpush2.msra.mxu0 0.0
        %3715 = vmatprep.subr.mxu0 0.0
        %3716 = vmatpush2.msra.mxu0 0.0
        %3717 = vmatprep.subr.mxu0 0.0
        %3718 = vmatpush2.msra.mxu0 0.0
        %3719 = vmatprep.subr.mxu0 0.0
        %3720 = vmatpush2.msra.mxu0 0.0
        %3721 = vmatprep.subr.mxu0 0.0
        %3722 = vmatpush2.msra.mxu0 0.0
        %3723 = vmatprep.subr.mxu0 0.0
        %3724 = vmatpush2.msra.mxu0 0.0
        %3725 = vmatprep.subr.mxu0 0.0
        %3726 = vmatpush2.msra.mxu0 0.0
        %3727 = vmatprep.subr.mxu0 0.0
        %3728 = vmatpush2.msra.mxu0 0.0
        %3729 = vmatprep.mubr.f32.mxu0 0.0
        %3730 = vmatmul.mubr.f32.gmra.mxu0 %v3277
        %v3731 = vpop.f32.mrf.mxu0
        %v3732 = vadd.f32 0.0, %v3731
        %v3733 = vpop.f32.mrf.mxu0
        %v3734 = vadd.f32 0.0, %v3733
        %3735 = vmatprep.mubr.f32.mxu0 0.0
        %3736 = vmatmul.mubr.f32.gmra.mxu0 %v3280
        %v3737 = vpop.f32.mrf.mxu0
        %v3738 = vadd.f32 0.0, %v3737
        %v3739 = vpop.f32.mrf.mxu0
        %v3740 = vadd.f32 0.0, %v3739
        %3741 = vmatprep.mubr.f32.mxu0 0.0
        %3742 = vmatmul.mubr.f32.gmra.mxu0 %v3283
        %v3743 = vpop.f32.mrf.mxu0
        %v3744 = vadd.f32 0.0, %v3743
        %v3745 = vpop.f32.mrf.mxu0
        %v3746 = vadd.f32 0.0, %v3745
        %3747 = vmatprep.mubr.f32.mxu0 0.0
        %3748 = vmatmul.mubr.f32.gmra.mxu0 %v3286
        %v3749 = vpop.f32.mrf.mxu0
        %v3750 = vadd.f32 0.0, %v3749
        %v3751 = vpop.f32.mrf.mxu0
        %v3752 = vadd.f32 0.0, %v3751
        %3753 = vmatprep.mubr.f32.mxu0 0.0
        %3754 = vmatmul.mubr.f32.gmra.mxu0 %v3289
        %v3755 = vpop.f32.mrf.mxu0
        %v3756 = vadd.f32 0.0, %v3755
        %v3757 = vpop.f32.mrf.mxu0
        %v3758 = vadd.f32 0.0, %v3757
        %3759 = vmatprep.mubr.f32.mxu0 0.0
        %3760 = vmatmul.mubr.f32.gmra.mxu0 %v3292
        %v3761 = vpop.f32.mrf.mxu0
        %v3762 = vadd.f32 0.0, %v3761
        %v3763 = vpop.f32.mrf.mxu0
        %v3764 = vadd.f32 0.0, %v3763
        %3765 = vmatprep.mubr.f32.mxu0 0.0
        %3766 = vmatmul.mubr.f32.gmra.mxu0 %v3295
        %v3767 = vpop.f32.mrf.mxu0
        %v3768 = vadd.f32 0.0, %v3767
        %v3769 = vpop.f32.mrf.mxu0
        %v3770 = vadd.f32 0.0, %v3769
        %3771 = vmatprep.mubr.f32.mxu0 0.0
        %3772 = vmatmul.mubr.f32.gmra.mxu0 %v3298
        %v3773 = vpop.f32.mrf.mxu0
        %v3774 = vadd.f32 0.0, %v3773
        %v3775 = vpop.f32.mrf.mxu0
        %v3776 = vadd.f32 0.0, %v3775
        %3777 = vmatprep.mubr.f32.mxu0 0.0
        %3778 = vmatmul.mubr.f32.gmra.mxu0 %v3301
        %v3779 = vpop.f32.mrf.mxu0
        %v3780 = vadd.f32 0.0, %v3779
        %v3781 = vpop.f32.mrf.mxu0
        %v3782 = vadd.f32 0.0, %v3781
        %3783 = vmatprep.mubr.f32.mxu0 0.0
        %3784 = vmatmul.mubr.f32.gmra.mxu0 %v3304
        %v3785 = vpop.f32.mrf.mxu0
        %v3786 = vadd.f32 0.0, %v3785
        %v3787 = vpop.f32.mrf.mxu0
        %v3788 = vadd.f32 0.0, %v3787
        %3789 = vmatprep.mubr.f32.mxu0 0.0
        %3790 = vmatmul.mubr.f32.gmra.mxu0 %v3307
        %v3791 = vpop.f32.mrf.mxu0
        %v3792 = vadd.f32 0.0, %v3791
        %v3793 = vpop.f32.mrf.mxu0
        %v3794 = vadd.f32 0.0, %v3793
        %3795 = vmatprep.mubr.f32.mxu0 0.0
        %3796 = vmatmul.mubr.f32.gmra.mxu0 %v3310
        %v3797 = vpop.f32.mrf.mxu0
        %v3798 = vadd.f32 0.0, %v3797
        %v3799 = vpop.f32.mrf.mxu0
        %v3800 = vadd.f32 0.0, %v3799
        %3801 = vmatprep.mubr.f32.mxu0 0.0
        %3802 = vmatmul.mubr.f32.gmra.mxu0 %v3313
        %v3803 = vpop.f32.mrf.mxu0
        %v3804 = vadd.f32 0.0, %v3803
        %v3805 = vpop.f32.mrf.mxu0
        %v3806 = vadd.f32 0.0, %v3805
        %3807 = vmatprep.mubr.f32.mxu0 0.0
        %3808 = vmatmul.mubr.f32.gmra.mxu0 %v3316
        %v3809 = vpop.f32.mrf.mxu0
        %v3810 = vadd.f32 0.0, %v3809
        %v3811 = vpop.f32.mrf.mxu0
        %v3812 = vadd.f32 0.0, %v3811
        %3813 = vmatprep.mubr.f32.mxu0 0.0
        %3814 = vmatmul.mubr.f32.gmra.mxu0 %v3319
        %v3815 = vpop.f32.mrf.mxu0
        %v3816 = vadd.f32 0.0, %v3815
        %v3817 = vpop.f32.mrf.mxu0
        %v3818 = vadd.f32 0.0, %v3817
        %3819 = vmatprep.mubr.f32.mxu0 0.0
        %3820 = vmatmul.mubr.f32.gmra.mxu0 %v3322
        %v3821 = vpop.f32.mrf.mxu0
        %v3822 = vadd.f32 0.0, %v3821
        %v3823 = vpop.f32.mrf.mxu0
        %v3824 = vadd.f32 0.0, %v3823
        %3825 = vmatprep.mubr.f32.mxu0 0.0
        %3826 = vmatmul.mubr.f32.gmra.mxu0 %v3325
        %v3827 = vpop.f32.mrf.mxu0
        %v3828 = vadd.f32 0.0, %v3827
        %v3829 = vpop.f32.mrf.mxu0
        %v3830 = vadd.f32 0.0, %v3829
        %3831 = vmatprep.mubr.f32.mxu0 0.0
        %3832 = vmatmul.mubr.f32.gmra.mxu0 %v3328
        %v3833 = vpop.f32.mrf.mxu0
        %v3834 = vadd.f32 0.0, %v3833
        %v3835 = vpop.f32.mrf.mxu0
        %v3836 = vadd.f32 0.0, %v3835
        %3837 = vmatprep.mubr.f32.mxu0 0.0
        %3838 = vmatmul.mubr.f32.gmra.mxu0 %v3331
        %v3839 = vpop.f32.mrf.mxu0
        %v3840 = vadd.f32 0.0, %v3839
        %v3841 = vpop.f32.mrf.mxu0
        %v3842 = vadd.f32 0.0, %v3841
        %3843 = vmatprep.mubr.f32.mxu0 0.0
        %3844 = vmatmul.mubr.f32.gmra.mxu0 %v3334
        %v3845 = vpop.f32.mrf.mxu0
        %v3846 = vadd.f32 0.0, %v3845
        %v3847 = vpop.f32.mrf.mxu0
        %v3848 = vadd.f32 0.0, %v3847
        %3849 = vmatprep.mubr.f32.mxu0 0.0
        %3850 = vmatmul.mubr.f32.gmra.mxu0 %v3337
        %v3851 = vpop.f32.mrf.mxu0
        %v3852 = vadd.f32 0.0, %v3851
        %v3853 = vpop.f32.mrf.mxu0
        %v3854 = vadd.f32 0.0, %v3853
        %3855 = vmatprep.mubr.f32.mxu0 0.0
        %3856 = vmatmul.mubr.f32.gmra.mxu0 %v3340
        %v3857 = vpop.f32.mrf.mxu0
        %v3858 = vadd.f32 0.0, %v3857
        %v3859 = vpop.f32.mrf.mxu0
        %v3860 = vadd.f32 0.0, %v3859
        %3861 = vmatprep.mubr.f32.mxu0 0.0
        %3862 = vmatmul.mubr.f32.gmra.mxu0 %v3343
        %v3863 = vpop.f32.mrf.mxu0
        %v3864 = vadd.f32 0.0, %v3863
        %v3865 = vpop.f32.mrf.mxu0
        %v3866 = vadd.f32 0.0, %v3865
        %3867 = vmatprep.mubr.f32.mxu0 0.0
        %3868 = vmatmul.mubr.f32.gmra.mxu0 %v3346
        %v3869 = vpop.f32.mrf.mxu0
        %v3870 = vadd.f32 0.0, %v3869
        %v3871 = vpop.f32.mrf.mxu0
        %v3872 = vadd.f32 0.0, %v3871
        %3873 = vmatprep.mubr.f32.mxu0 0.0
        %3874 = vmatmul.mubr.f32.gmra.mxu0 %v3349
        %v3875 = vpop.f32.mrf.mxu0
        %v3876 = vadd.f32 0.0, %v3875
        %v3877 = vpop.f32.mrf.mxu0
        %v3878 = vadd.f32 0.0, %v3877
        %3879 = vmatprep.mubr.f32.mxu0 0.0
        %3880 = vmatmul.mubr.f32.gmra.mxu0 %v3352
        %v3881 = vpop.f32.mrf.mxu0
        %v3882 = vadd.f32 0.0, %v3881
        %v3883 = vpop.f32.mrf.mxu0
        %v3884 = vadd.f32 0.0, %v3883
        %3885 = vmatprep.mubr.f32.mxu0 0.0
        %3886 = vmatmul.mubr.f32.gmra.mxu0 %v3355
        %v3887 = vpop.f32.mrf.mxu0
        %v3888 = vadd.f32 0.0, %v3887
        %v3889 = vpop.f32.mrf.mxu0
        %v3890 = vadd.f32 0.0, %v3889
        %3891 = vmatprep.mubr.f32.mxu0 0.0
        %3892 = vmatmul.mubr.f32.gmra.mxu0 %v3358
        %v3893 = vpop.f32.mrf.mxu0
        %v3894 = vadd.f32 0.0, %v3893
        %v3895 = vpop.f32.mrf.mxu0
        %v3896 = vadd.f32 0.0, %v3895
        %3897 = vmatprep.mubr.f32.mxu0 0.0
        %3898 = vmatmul.mubr.f32.gmra.mxu0 %v3361
        %v3899 = vpop.f32.mrf.mxu0
        %v3900 = vadd.f32 0.0, %v3899
        %v3901 = vpop.f32.mrf.mxu0
        %v3902 = vadd.f32 0.0, %v3901
        %3903 = vmatprep.mubr.f32.mxu0 0.0
        %3904 = vmatmul.mubr.f32.gmra.mxu0 %v3364
        %v3905 = vpop.f32.mrf.mxu0
        %v3906 = vadd.f32 0.0, %v3905
        %v3907 = vpop.f32.mrf.mxu0
        %v3908 = vadd.f32 0.0, %v3907
        %3909 = vmatprep.mubr.f32.mxu0 0.0
        %3910 = vmatmul.mubr.f32.gmra.mxu0 %v3367
        %v3911 = vpop.f32.mrf.mxu0
        %v3912 = vadd.f32 0.0, %v3911
        %v3913 = vpop.f32.mrf.mxu0
        %v3914 = vadd.f32 0.0, %v3913
        %3915 = vmatprep.mubr.f32.mxu0 0.0
        %3916 = vmatmul.mubr.f32.gmra.mxu0 %v3370
        %v3917 = vpop.f32.mrf.mxu0
        %v3918 = vadd.f32 0.0, %v3917
        %v3919 = vpop.f32.mrf.mxu0
        %v3920 = vadd.f32 0.0, %v3919
        %3921 = vmatprep.mubr.f32.mxu0 0.0
        %3922 = vmatmul.mubr.f32.gmra.mxu0 %v3373
        %v3923 = vpop.f32.mrf.mxu0
        %v3924 = vadd.f32 0.0, %v3923
        %v3925 = vpop.f32.mrf.mxu0
        %v3926 = vadd.f32 0.0, %v3925
        %3927 = vmatprep.mubr.f32.mxu0 0.0
        %3928 = vmatmul.mubr.f32.gmra.mxu0 %v3376
        %v3929 = vpop.f32.mrf.mxu0
        %v3930 = vadd.f32 0.0, %v3929
        %v3931 = vpop.f32.mrf.mxu0
        %v3932 = vadd.f32 0.0, %v3931
        %3933 = vmatprep.mubr.f32.mxu0 0.0
        %3934 = vmatmul.mubr.f32.gmra.mxu0 %v3379
        %v3935 = vpop.f32.mrf.mxu0
        %v3936 = vadd.f32 0.0, %v3935
        %v3937 = vpop.f32.mrf.mxu0
        %v3938 = vadd.f32 0.0, %v3937
        %3939 = vmatprep.mubr.f32.mxu0 0.0
        %3940 = vmatmul.mubr.f32.gmra.mxu0 %v3382
        %v3941 = vpop.f32.mrf.mxu0
        %v3942 = vadd.f32 0.0, %v3941
        %v3943 = vpop.f32.mrf.mxu0
        %v3944 = vadd.f32 0.0, %v3943
        %3945 = vdwg.mxu0
        %v3946 = vadd.f32 %v1725, %v3643
        %v3947 = vadd.f32 %v1727, %v3645
        %v3948 = vadd.f32 %v1938, %v3924
        %v3949 = vadd.f32 %v1940, %v3926
        %v3950 = vadd.f32 %v1731, %v3649
        %v3951 = vadd.f32 %v1733, %v3651
        %v3952 = vadd.f32 %v1944, %v3930
        %v3953 = vadd.f32 %v1946, %v3932
        %v3954 = vadd.f32 %v1737, %v3655
        %v3955 = vadd.f32 %v1739, %v3657
        %v3956 = vadd.f32 %v1950, %v3936
        %v3957 = vadd.f32 %v1952, %v3938
        %v3958 = vadd.f32 %v1743, %v3661
        %v3959 = vadd.f32 %v1745, %v3663
        %v3960 = vadd.f32 %v1956, %v3942
        %v3961 = vadd.f32 %v1958, %v3944
        %v3962 = vmul.f32 %v2842, %v3451
        %v3963 = vmul.f32 %v2846, %v3453
        %v3964 = vmul.f32 %v2850, %v3732
        %v3965 = vmul.f32 %v2854, %v3734
        %v3966 = vmul.f32 %v2842, %v3457
        %v3967 = vmul.f32 %v2846, %v3459
        %v3968 = vmul.f32 %v2850, %v3738
        %v3969 = vmul.f32 %v2854, %v3740
        %v3970 = vmul.f32 %v2842, %v3463
        %v3971 = vmul.f32 %v2846, %v3465
        %v3972 = vmul.f32 %v2850, %v3744
        %v3973 = vmul.f32 %v2854, %v3746
        %v3974 = vmul.f32 %v2842, %v3469
        %v3975 = vmul.f32 %v2846, %v3471
        %v3976 = vmul.f32 %v2850, %v3750
        %v3977 = vmul.f32 %v2854, %v3752
        %v3978 = vadd.f32 %v3946, %v3962
        %v3979 = vadd.f32 %v3947, %v3963
        %v3980 = vadd.f32 %v3948, %v3964
        %v3981 = vadd.f32 %v3949, %v3965
        %v3982 = vadd.f32 %v3950, %v3966
        %v3983 = vadd.f32 %v3951, %v3967
        %v3984 = vadd.f32 %v3952, %v3968
        %v3985 = vadd.f32 %v3953, %v3969
        %v3986 = vadd.f32 %v3954, %v3970
        %v3987 = vadd.f32 %v3955, %v3971
        %v3988 = vadd.f32 %v3956, %v3972
        %v3989 = vadd.f32 %v3957, %v3973
        %v3990 = vadd.f32 %v3958, %v3974
        %v3991 = vadd.f32 %v3959, %v3975
        %v3992 = vadd.f32 %v3960, %v3976
        %v3993 = vadd.f32 %v3961, %v3977
        %v3994 = vmul.f32 %v2890, %v3475
        %v3995 = vmul.f32 %v2894, %v3477
        %v3996 = vmul.f32 %v2898, %v3756
        %v3997 = vmul.f32 %v2902, %v3758
        %v3998 = vmul.f32 %v2890, %v3481
        %v3999 = vmul.f32 %v2894, %v3483
        %v4000 = vmul.f32 %v2898, %v3762
        %v4001 = vmul.f32 %v2902, %v3764
        %v4002 = vmul.f32 %v2890, %v3487
        %v4003 = vmul.f32 %v2894, %v3489
        %v4004 = vmul.f32 %v2898, %v3768
        %v4005 = vmul.f32 %v2902, %v3770
        %v4006 = vmul.f32 %v2890, %v3493
        %v4007 = vmul.f32 %v2894, %v3495
        %v4008 = vmul.f32 %v2898, %v3774
        %v4009 = vmul.f32 %v2902, %v3776
        %v4010 = vadd.f32 %v3978, %v3994
        %v4011 = vadd.f32 %v3979, %v3995
        %v4012 = vadd.f32 %v3980, %v3996
        %v4013 = vadd.f32 %v3981, %v3997
        %v4014 = vadd.f32 %v3982, %v3998
        %v4015 = vadd.f32 %v3983, %v3999
        %v4016 = vadd.f32 %v3984, %v4000
        %v4017 = vadd.f32 %v3985, %v4001
        %v4018 = vadd.f32 %v3986, %v4002
        %v4019 = vadd.f32 %v3987, %v4003
        %v4020 = vadd.f32 %v3988, %v4004
        %v4021 = vadd.f32 %v3989, %v4005
        %v4022 = vadd.f32 %v3990, %v4006
        %v4023 = vadd.f32 %v3991, %v4007
        %v4024 = vadd.f32 %v3992, %v4008
        %v4025 = vadd.f32 %v3993, %v4009
        %v4026 = vmul.f32 %v2938, %v3499
        %v4027 = vmul.f32 %v2942, %v3501
        %v4028 = vmul.f32 %v2946, %v3780
        %v4029 = vmul.f32 %v2950, %v3782
        %v4030 = vmul.f32 %v2938, %v3505
        %v4031 = vmul.f32 %v2942, %v3507
        %v4032 = vmul.f32 %v2946, %v3786
        %v4033 = vmul.f32 %v2950, %v3788
        %v4034 = vmul.f32 %v2938, %v3511
        %v4035 = vmul.f32 %v2942, %v3513
        %v4036 = vmul.f32 %v2946, %v3792
        %v4037 = vmul.f32 %v2950, %v3794
        %v4038 = vmul.f32 %v2938, %v3517
        %v4039 = vmul.f32 %v2942, %v3519
        %v4040 = vmul.f32 %v2946, %v3798
        %v4041 = vmul.f32 %v2950, %v3800
        %v4042 = vadd.f32 %v4010, %v4026
        %v4043 = vadd.f32 %v4011, %v4027
        %v4044 = vadd.f32 %v4012, %v4028
        %v4045 = vadd.f32 %v4013, %v4029
        %v4046 = vadd.f32 %v4014, %v4030
        %v4047 = vadd.f32 %v4015, %v4031
        %v4048 = vadd.f32 %v4016, %v4032
        %v4049 = vadd.f32 %v4017, %v4033
        %v4050 = vadd.f32 %v4018, %v4034
        %v4051 = vadd.f32 %v4019, %v4035
        %v4052 = vadd.f32 %v4020, %v4036
        %v4053 = vadd.f32 %v4021, %v4037
        %v4054 = vadd.f32 %v4022, %v4038
        %v4055 = vadd.f32 %v4023, %v4039
        %v4056 = vadd.f32 %v4024, %v4040
        %v4057 = vadd.f32 %v4025, %v4041
        %v4058 = vmul.f32 %v2986, %v3523
        %v4059 = vmul.f32 %v2990, %v3525
        %v4060 = vmul.f32 %v2994, %v3804
        %v4061 = vmul.f32 %v2998, %v3806
        %v4062 = vmul.f32 %v2986, %v3529
        %v4063 = vmul.f32 %v2990, %v3531
        %v4064 = vmul.f32 %v2994, %v3810
        %v4065 = vmul.f32 %v2998, %v3812
        %v4066 = vmul.f32 %v2986, %v3535
        %v4067 = vmul.f32 %v2990, %v3537
        %v4068 = vmul.f32 %v2994, %v3816
        %v4069 = vmul.f32 %v2998, %v3818
        %v4070 = vmul.f32 %v2986, %v3541
        %v4071 = vmul.f32 %v2990, %v3543
        %v4072 = vmul.f32 %v2994, %v3822
        %v4073 = vmul.f32 %v2998, %v3824
        %v4074 = vadd.f32 %v4042, %v4058
        %v4075 = vadd.f32 %v4043, %v4059
        %v4076 = vadd.f32 %v4044, %v4060
        %v4077 = vadd.f32 %v4045, %v4061
        %v4078 = vadd.f32 %v4046, %v4062
        %v4079 = vadd.f32 %v4047, %v4063
        %v4080 = vadd.f32 %v4048, %v4064
        %v4081 = vadd.f32 %v4049, %v4065
        %v4082 = vadd.f32 %v4050, %v4066
        %v4083 = vadd.f32 %v4051, %v4067
        %v4084 = vadd.f32 %v4052, %v4068
        %v4085 = vadd.f32 %v4053, %v4069
        %v4086 = vadd.f32 %v4054, %v4070
        %v4087 = vadd.f32 %v4055, %v4071
        %v4088 = vadd.f32 %v4056, %v4072
        %v4089 = vadd.f32 %v4057, %v4073
        %v4090 = vmul.f32 %v3034, %v3547
        %v4091 = vmul.f32 %v3038, %v3549
        %v4092 = vmul.f32 %v3042, %v3828
        %v4093 = vmul.f32 %v3046, %v3830
        %v4094 = vmul.f32 %v3034, %v3553
        %v4095 = vmul.f32 %v3038, %v3555
        %v4096 = vmul.f32 %v3042, %v3834
        %v4097 = vmul.f32 %v3046, %v3836
        %v4098 = vmul.f32 %v3034, %v3559
        %v4099 = vmul.f32 %v3038, %v3561
        %v4100 = vmul.f32 %v3042, %v3840
        %v4101 = vmul.f32 %v3046, %v3842
        %v4102 = vmul.f32 %v3034, %v3565
        %v4103 = vmul.f32 %v3038, %v3567
        %v4104 = vmul.f32 %v3042, %v3846
        %v4105 = vmul.f32 %v3046, %v3848
        %v4106 = vadd.f32 %v4074, %v4090
        %v4107 = vadd.f32 %v4075, %v4091
        %v4108 = vadd.f32 %v4076, %v4092
        %v4109 = vadd.f32 %v4077, %v4093
        %v4110 = vadd.f32 %v4078, %v4094
        %v4111 = vadd.f32 %v4079, %v4095
        %v4112 = vadd.f32 %v4080, %v4096
        %v4113 = vadd.f32 %v4081, %v4097
        %v4114 = vadd.f32 %v4082, %v4098
        %v4115 = vadd.f32 %v4083, %v4099
        %v4116 = vadd.f32 %v4084, %v4100
        %v4117 = vadd.f32 %v4085, %v4101
        %v4118 = vadd.f32 %v4086, %v4102
        %v4119 = vadd.f32 %v4087, %v4103
        %v4120 = vadd.f32 %v4088, %v4104
        %v4121 = vadd.f32 %v4089, %v4105
        %v4122 = vmul.f32 %v3082, %v3571
        %v4123 = vmul.f32 %v3086, %v3573
        %v4124 = vmul.f32 %v3090, %v3852
        %v4125 = vmul.f32 %v3094, %v3854
        %v4126 = vmul.f32 %v3082, %v3577
        %v4127 = vmul.f32 %v3086, %v3579
        %v4128 = vmul.f32 %v3090, %v3858
        %v4129 = vmul.f32 %v3094, %v3860
        %v4130 = vmul.f32 %v3082, %v3583
        %v4131 = vmul.f32 %v3086, %v3585
        %v4132 = vmul.f32 %v3090, %v3864
        %v4133 = vmul.f32 %v3094, %v3866
        %v4134 = vmul.f32 %v3082, %v3589
        %v4135 = vmul.f32 %v3086, %v3591
        %v4136 = vmul.f32 %v3090, %v3870
        %v4137 = vmul.f32 %v3094, %v3872
        %v4138 = vadd.f32 %v4106, %v4122
        %v4139 = vadd.f32 %v4107, %v4123
        %v4140 = vadd.f32 %v4108, %v4124
        %v4141 = vadd.f32 %v4109, %v4125
        %v4142 = vadd.f32 %v4110, %v4126
        %v4143 = vadd.f32 %v4111, %v4127
        %v4144 = vadd.f32 %v4112, %v4128
        %v4145 = vadd.f32 %v4113, %v4129
        %v4146 = vadd.f32 %v4114, %v4130
        %v4147 = vadd.f32 %v4115, %v4131
        %v4148 = vadd.f32 %v4116, %v4132
        %v4149 = vadd.f32 %v4117, %v4133
        %v4150 = vadd.f32 %v4118, %v4134
        %v4151 = vadd.f32 %v4119, %v4135
        %v4152 = vadd.f32 %v4120, %v4136
        %v4153 = vadd.f32 %v4121, %v4137
        %v4154 = vmul.f32 %v3130, %v3595
        %v4155 = vmul.f32 %v3134, %v3597
        %v4156 = vmul.f32 %v3138, %v3876
        %v4157 = vmul.f32 %v3142, %v3878
        %v4158 = vmul.f32 %v3130, %v3601
        %v4159 = vmul.f32 %v3134, %v3603
        %v4160 = vmul.f32 %v3138, %v3882
        %v4161 = vmul.f32 %v3142, %v3884
        %v4162 = vmul.f32 %v3130, %v3607
        %v4163 = vmul.f32 %v3134, %v3609
        %v4164 = vmul.f32 %v3138, %v3888
        %v4165 = vmul.f32 %v3142, %v3890
        %v4166 = vmul.f32 %v3130, %v3613
        %v4167 = vmul.f32 %v3134, %v3615
        %v4168 = vmul.f32 %v3138, %v3894
        %v4169 = vmul.f32 %v3142, %v3896
        %v4170 = vadd.f32 %v4138, %v4154
        %v4171 = vadd.f32 %v4139, %v4155
        %v4172 = vadd.f32 %v4140, %v4156
        %v4173 = vadd.f32 %v4141, %v4157
        %v4174 = vadd.f32 %v4142, %v4158
        %v4175 = vadd.f32 %v4143, %v4159
        %v4176 = vadd.f32 %v4144, %v4160
        %v4177 = vadd.f32 %v4145, %v4161
        %v4178 = vadd.f32 %v4146, %v4162
        %v4179 = vadd.f32 %v4147, %v4163
        %v4180 = vadd.f32 %v4148, %v4164
        %v4181 = vadd.f32 %v4149, %v4165
        %v4182 = vadd.f32 %v4150, %v4166
        %v4183 = vadd.f32 %v4151, %v4167
        %v4184 = vadd.f32 %v4152, %v4168
        %v4185 = vadd.f32 %v4153, %v4169
        %v4186 = vmul.f32 %v3178, %v3619
        %v4187 = vmul.f32 %v3182, %v3621
        %v4188 = vmul.f32 %v3186, %v3900
        %v4189 = vmul.f32 %v3190, %v3902
        %v4190 = vmul.f32 %v3178, %v3625
        %v4191 = vmul.f32 %v3182, %v3627
        %v4192 = vmul.f32 %v3186, %v3906
        %v4193 = vmul.f32 %v3190, %v3908
        %v4194 = vmul.f32 %v3178, %v3631
        %v4195 = vmul.f32 %v3182, %v3633
        %v4196 = vmul.f32 %v3186, %v3912
        %v4197 = vmul.f32 %v3190, %v3914
        %v4198 = vmul.f32 %v3178, %v3637
        %v4199 = vmul.f32 %v3182, %v3639
        %v4200 = vmul.f32 %v3186, %v3918
        %v4201 = vmul.f32 %v3190, %v3920
        %v4202 = vadd.f32 %v4170, %v4186
        %v4203 = vadd.f32 %v4171, %v4187
        %v4204 = vadd.f32 %v4172, %v4188
        %v4205 = vadd.f32 %v4173, %v4189
        %v4206 = vadd.f32 %v4174, %v4190
        %v4207 = vadd.f32 %v4175, %v4191
        %v4208 = vadd.f32 %v4176, %v4192
        %v4209 = vadd.f32 %v4177, %v4193
        %v4210 = vadd.f32 %v4178, %v4194
        %v4211 = vadd.f32 %v4179, %v4195
        %v4212 = vadd.f32 %v4180, %v4196
        %v4213 = vadd.f32 %v4181, %v4197
        %v4214 = vadd.f32 %v4182, %v4198
        %v4215 = vadd.f32 %v4183, %v4199
        %v4216 = vadd.f32 %v4184, %v4200
        %v4217 = vadd.f32 %v4185, %v4201
        %v4218 = vtanh.pop %v4202
        %v4219 = vtanh.pop %v4203
        %v4220 = vtanh.pop %v4204
        %v4221 = vtanh.pop %v4205
        %v4222 = vtanh.pop %v4206
        %v4223 = vtanh.pop %v4207
        %v4224 = vtanh.pop %v4208
        %v4225 = vtanh.pop %v4209
        %v4226 = vtanh.pop %v4210
        %v4227 = vtanh.pop %v4211
        %v4228 = vtanh.pop %v4212
        %v4229 = vtanh.pop %v4213
        %v4230 = vtanh.pop %v4214
        %v4231 = vtanh.pop %v4215
        %v4232 = vtanh.pop %v4216
        %v4233 = vtanh.pop %v4217
        %v4234 = vmul.f32 %v4218, %v1653
        %v4235 = vmul.f32 %v4219, %v1655
        %v4236 = vmul.f32 %v4220, %v1866
        %v4237 = vmul.f32 %v4221, %v1868
        %v4238 = vmul.f32 %v4222, %v1659
        %v4239 = vmul.f32 %v4223, %v1661
        %v4240 = vmul.f32 %v4224, %v1872
        %v4241 = vmul.f32 %v4225, %v1874
        %v4242 = vmul.f32 %v4226, %v1665
        %v4243 = vmul.f32 %v4227, %v1667
        %v4244 = vmul.f32 %v4228, %v1878
        %v4245 = vmul.f32 %v4229, %v1880
        %v4246 = vmul.f32 %v4230, %v1671
        %v4247 = vmul.f32 %v4231, %v1673
        %v4248 = vmul.f32 %v4232, %v1884
        %v4249 = vmul.f32 %v4233, %v1886
        %v4250 = vadd.f32 %v4234, %v4238
        %v4251 = vadd.f32 %v4250, %v4242
        %v4252 = vadd.f32 %v4251, %v4246
        %v4253 = vrot.slane %v4252, 4
        %v4254 = vadd.f32 %v4252, %v4253
        %v4255 = vrot.slane %v4254, 2
        %v4256 = vadd.f32 %v4254, %v4255
        %v4257 = vrot.slane %v4256, 1
        %v4258 = vadd.f32 %v4256, %v4257
        %v4259 = vadd.f32 %v4235, %v4239
        %v4260 = vadd.f32 %v4259, %v4243
        %v4261 = vadd.f32 %v4260, %v4247
        %v4262 = vrot.slane %v4261, 4
        %v4263 = vadd.f32 %v4261, %v4262
        %v4264 = vrot.slane %v4263, 2
        %v4265 = vadd.f32 %v4263, %v4264
        %v4266 = vrot.slane %v4265, 1
        %v4267 = vadd.f32 %v4265, %v4266
        %v4268 = vadd.f32 %v4236, %v4240
        %v4269 = vadd.f32 %v4268, %v4244
        %v4270 = vadd.f32 %v4269, %v4248
        %v4271 = vrot.slane %v4270, 4
        %v4272 = vadd.f32 %v4270, %v4271
        %v4273 = vrot.slane %v4272, 2
        %v4274 = vadd.f32 %v4272, %v4273
        %v4275 = vrot.slane %v4274, 1
        %v4276 = vadd.f32 %v4274, %v4275
        %v4277 = vadd.f32 %v4237, %v4241
        %v4278 = vadd.f32 %v4277, %v4245
        %v4279 = vadd.f32 %v4278, %v4249
        %v4280 = vrot.slane %v4279, 4
        %v4281 = vadd.f32 %v4279, %v4280
        %v4282 = vrot.slane %v4281, 2
        %v4283 = vadd.f32 %v4281, %v4282
        %v4284 = vrot.slane %v4283, 1
        %v4285 = vadd.f32 %v4283, %v4284
        %v4286 = vadd.f32 %v4258, %v1725
        %v4287 = vadd.f32 %v4267, %v1727
        %v4288 = vadd.f32 %v4276, %v1938
        %v4289 = vadd.f32 %v4285, %v1940
        %v4294 = vcombine.low %v4286, %v4287
        %v4295 = vcombine.low %v4288, %v4289
        %v4297 = vunpack.c.l.s4 1966171168
        %v4298 = vunpack.c.0.s8 %v4297
        %v4299 = vlaneseq
        %v4300 = vshrl.u32 %v4299, 7
        %v4301 = vsub.s32 %v4298, %v4300
        %v4302 = vrot.slane %v4294, %v4301
        %v4304 = vunpack.c.l.s4 1966171168
        %v4305 = vunpack.c.0.s8 %v4304
        %v4306 = vlaneseq
        %v4307 = vshrl.u32 %v4306, 7
        %v4308 = vsub.s32 %v4305, %v4307
        %v4309 = vrot.slane %v4295, %v4308
        %v4310 = vcombine.low %v4302, %v4309
        %v4312 = vunpack.c.l.s4 1966171168
        %v4313 = vunpack.c.0.s8 %v4312
        %v4314 = vlaneseq
        %v4315 = vshrl.u32 %v4314, 7
        %v4316 = vsub.s32 %v4313, %v4315
        %v4317 = vrot.slane %v4310, %v4316
        %v4319 = vlaneseq
        %vm4320 = vcmp.ge.s32.totalorder %v4319, 0
        %vm4321 = vcmp.lt.s32.totalorder %v4319, 512
        %vm4322 = vmand %vm4320, %vm4321
        %4323 = vst.msk [vmem:[%s396] sm:$0xf] %vm4322, %v4317
        %s4324 = sand.u32 %s274, 1
        %s4325 = scalar_lea.sflag [#allocation3], %s4324
        %s4326 = sand.u32 %s274, 1
        %s4327 = smul.addr %s4326, 4
        %s4328 = scalar_lea.vmem [#allocation2], %s4327
        // Predicated region
        $region65: #{tpu_custom_call.1} parent=63 // pred_check
          %p4329 = pneg %p284
        $region66: #{tpu_custom_call.1} parent=63 // pred_check_branch
          %4331 = sbr.rel (%p4329) target = $region68
        $region67: #{tpu_custom_call.1} parent=63 // pred_region
          %s4332 = smul.u32 4, %s25
          %s4334 = ssub.s32 64, 64
          %4335 = vsyncadd %s4325, %s4334
          %s4336 = smul.addr %s4332, 16
          %s4337 = scalar_lea.hbm %s11, %s4336
          %s4339 = sshll.u32 %s4328, 4
          %s4340 = int_to_ptr.vmem [resolvable:$true] %s4339
          %4342 = dma.vmem_to_hbm [thread:$0]  %s4340, 64, %s4337, %s4325
        $region68: #{tpu_custom_call.1} parent=63 // pred_fallthru
          _
      $region64: #{tpu_custom_call.1} parent=5 // pred_fallthru
        _
      %p4343 = scmp.le.s32.totalorder 2, %s20
      // Predicated region
      $region69: #{tpu_custom_call.1} parent=5 // pred_check
        %p4344 = pneg %p4343
      $region70: #{tpu_custom_call.1} parent=5 // pred_check_branch
        %4346 = sbr.rel (%p4344) target = $region72
      $region71: #{tpu_custom_call.1} parent=5 // pred_region
        %s4347 = ssub.s32 %s20, 2
        // Predicated region
        $region73: #{tpu_custom_call.1} parent=71 // pred_check
          %p4348 = pneg %p290
        $region74: #{tpu_custom_call.1} parent=71 // pred_check_branch
          %4350 = sbr.rel (%p4348) target = $region76
        $region75: #{tpu_custom_call.1} parent=71 // pred_region
          %s4351 = sand.u32 %s275, 1
          %s4352 = scalar_lea.sflag [#allocation3], %s4351
          %s4353 = sand.u32 %s275, 1
          %s4354 = smul.addr %s4353, 4
          %s4355 = scalar_lea.vmem [#allocation2], %s4354
          %4356 = dma.done %s4352, 64
        $region76: #{tpu_custom_call.1} parent=71 // pred_fallthru
          _
      $region72: #{tpu_custom_call.1} parent=5 // pred_fallthru
        _
    $region6: #{tpu_custom_call.1} parent=1 // loop_footer
      %s24 = sadd.s32 1, %s20
    $region7: #{tpu_custom_call.1} parent=1 // loop_footer_branch
      %19 = sbr.rel target = $region3
    $region8: #{tpu_custom_call.1} parent=1 // loop_exit
      _
    %4357 = vsyncpa [#allocation3], 1
    %s4358 = scalar_lea.sflag [#allocation3], 1
    %4359 = vsyncpa %s4358, 1

</llo_original>
